<compile_context>
chip_gen: v6e
topology: v6e:2x2x1
jax: 0.10.0
libtpu: 0.0.40
codegen_flags: <defaults>
</compile_context>

<pallas_src>
import functools

import jax
import jax.numpy as jnp
from jax import lax
from jax.experimental import pallas as pl
from jax.experimental.pallas import tpu as pltpu

# ----------------------------- model config ---------------------------------
HIDDEN = 32
HEADS = 2
HEAD_DIM = HIDDEN // HEADS
LAYERS = 2
FFN = 64
VOCAB = 100
MAX_POS = 64
TYPE_VOCAB = 2
NUM_TAGS = 5
THETA = 0.6
LN_EPS = 1e-12

MXU_DTYPE = jnp.bfloat16      # dense-matmul operand dtype (accumulate in f32)
N_ENC_REFS = 18               # number of encoder refs passed to the kernels


# ----------------------------- in-kernel helpers ----------------------------
def _ln(x, g, b):
    mu = jnp.mean(x, axis=-1, keepdims=True)
    var = jnp.mean(jnp.square(x - mu), axis=-1, keepdims=True)
    return (x - mu) * lax.rsqrt(var + LN_EPS) * g + b


def _mm(a, w):
    # bf16 operands for the MXU, f32 accumulation (v6e/v7x native rate).
    return lax.dot_general(
        a.astype(MXU_DTYPE), w.astype(MXU_DTYPE),
        (((1,), (0,)), ((), ())),
        preferred_element_type=jnp.float32)


def _encode_body(enc_refs, *, B, S, heads, head_dim, layers):
    (we_ref, pe_ref, te_ref, eg_ref, eb_ref, amask_ref,
     wqkv_ref, bqkv_ref, wo_ref, bo_ref,
     w1_ref, b1_ref, w2_ref, b2_ref,
     ln1g_ref, ln1b_ref, ln2g_ref, ln2b_ref) = enc_refs

    f32 = jnp.float32
    H = heads * head_dim
    scale = 1.0 / (head_dim ** 0.5)

    # embedding sum + LayerNorm, fused (gathers done once in the XLA wrapper)
    x = (we_ref[...] + pe_ref[...] + te_ref[...]).astype(f32)          # (B*S, H)
    x = _ln(x, eg_ref[...].astype(f32), eb_ref[...].astype(f32))

    madd = (1.0 - amask_ref[...].astype(f32)) * jnp.float32(-1e9)      # (B, S)

    for l in range(layers):
        # fused QKV projection: one (H, 3H) matmul
        qkv = _mm(x, wqkv_ref[l]) + bqkv_ref[l].astype(f32)            # (B*S, 3H)

        # attention: head split/merge via static slices, all in-register
        ctx_rows = []
        for b in range(B):
            r0 = b * S
            m_b = madd[b:b + 1, :]                                     # (1, S) key mask
            head_cols = []
            for h in range(heads):
                c0 = h * head_dim
                q = qkv[r0:r0 + S, c0:c0 + head_dim]                   # (S, Dh)
                k = qkv[r0:r0 + S, H + c0:H + c0 + head_dim]
                v = qkv[r0:r0 + S, 2 * H + c0:2 * H + c0 + head_dim]
                s = lax.dot_general(q, k, (((1,), (1,)), ((), ())),
                                    preferred_element_type=f32) * scale + m_b
                s = s - jnp.max(s, axis=-1, keepdims=True)
                p = jnp.exp(s)
                p = p / jnp.sum(p, axis=-1, keepdims=True)
                head_cols.append(
                    lax.dot_general(p, v, (((1,), (0,)), ((), ())),
                                    preferred_element_type=f32))       # (S, Dh)
            ctx_rows.append(jnp.concatenate(head_cols, axis=1))        # (S, H)
        ctx = jnp.concatenate(ctx_rows, axis=0)                        # (B*S, H)

        # output proj + residual + LN (epilogue, stays in VMEM/registers)
        attn_out = _mm(ctx, wo_ref[l]) + bo_ref[l].astype(f32)
        x = _ln(x + attn_out, ln1g_ref[l].astype(f32), ln1b_ref[l].astype(f32))

        # FFN + gelu + residual + LN
        # TODO(synk): HF BERT uses exact erf GELU; tanh approximation used here.
        hmid = jax.nn.gelu(_mm(x, w1_ref[l]) + b1_ref[l].astype(f32), approximate=True)
        ffn_out = _mm(hmid, w2_ref[l]) + b2_ref[l].astype(f32)
        x = _ln(x + ffn_out, ln2g_ref[l].astype(f32), ln2b_ref[l].astype(f32))

    return x                                                            # (B*S, H) f32


# ----------------------------- fused model kernels --------------------------
def _train_kernel(*refs, B, S, heads, head_dim, layers):
    enc_refs = refs[:N_ENC_REFS]
    tagw_ref, tagb_ref, tgt_ref, ctx_ref, turn_ref, o_ref = refs[N_ENC_REFS:]
    f32 = jnp.float32

    rep = _encode_body(enc_refs, B=B, S=S, heads=heads,
                       head_dim=head_dim, layers=layers)
    # dropout -> identity (eval mode)

    # tag head + per-token CE fused: 5-wide logits never leave the kernel
    logits = jnp.dot(rep, tagw_ref[...].astype(f32),
                     preferred_element_type=f32) + tagb_ref[...].astype(f32)   # (B*S, 5)
    m = jnp.max(logits, axis=-1, keepdims=True)
    lse = jnp.log(jnp.sum(jnp.exp(logits - m), axis=-1, keepdims=True)) + m
    cls = lax.broadcasted_iota(jnp.int32, logits.shape, 1)
    picked = jnp.sum(jnp.where(cls == tgt_ref[...], logits, 0.0),
                     axis=-1, keepdims=True)
    nll = lse - picked                                                          # (B*S, 1)

    # turn / context selection masks + reductions, all in-kernel
    ctx_sel = ctx_ref[...] == 1
    turn = turn_ref[...]
    sel1 = jnp.where(jnp.logical_and(turn == 0, ctx_sel), 1.0, 0.0).astype(f32)
    sel2 = jnp.where(jnp.logical_and(turn == 1, ctx_sel), 1.0, 0.0).astype(f32)
    cols = jnp.concatenate([nll * sel1, sel1, nll * sel2, sel2], axis=1)        # (B*S, 4)
    o_ref[...] = jnp.sum(cols, axis=0, keepdims=True)                           # (1, 4)


def _infer_kernel(*refs, B, S, heads, head_dim, layers):
    enc_refs = refs[:N_ENC_REFS]
    tagw_ref, tagb_ref, o_ref = refs[N_ENC_REFS:]
    f32 = jnp.float32

    rep = _encode_body(enc_refs, B=B, S=S, heads=heads,
                       head_dim=head_dim, layers=layers)
    logits = jnp.dot(rep, tagw_ref[...].astype(f32),
                     preferred_element_type=f32) + tagb_ref[...].astype(f32)   # (B*S, 5)
    m = jnp.max(logits, axis=-1, keepdims=True)
    cls = lax.broadcasted_iota(jnp.int32, logits.shape, 1).astype(f32)
    cand = jnp.where(logits >= m, cls, jnp.float32(NUM_TAGS))
    idx = jnp.min(cand, axis=-1, keepdims=True)                                 # first argmax
    o_ref[...] = idx.astype(jnp.int32)                                          # (B*S, 1)


# ----------------------------- wrapper ---------------------------------------
def _full_specs(args):
    # every operand is a single whole-array VMEM block (grid=(1,))
    return [pl.BlockSpec(a.shape, lambda i, nd=a.ndim: (0,) * nd) for a in args]


def _encoder_inputs(params, input_ids, attention_mask, token_type_ids):
    B, S = input_ids.shape
    BS = B * S
    we = params["word_emb"][input_ids].reshape(BS, HIDDEN)
    pe = jnp.broadcast_to(params["pos_emb"][:S][None, :, :],
                          (B, S, HIDDEN)).reshape(BS, HIDDEN)
    te = params["type_emb"][token_type_ids].reshape(BS, HIDDEN)
    return (we, pe, te,
            params["emb_ln_g"], params["emb_ln_b"],
            attention_mask.astype(jnp.float32),
            params["wqkv"], params["bqkv"], params["wo"], params["bo"],
            params["w1"], params["b1"], params["w2"], params["b2"],
            params["ln1_g"], params["ln1_b"], params["ln2_g"], params["ln2_b"])


def forward(params, input_ids, attention_mask, token_type_ids,
            context_mask=None, turn_mask=None, target_tags=None, theta=THETA):
    B, S = input_ids.shape
    BS = B * S
    enc_args = _encoder_inputs(params, input_ids, attention_mask, token_type_ids)
    static = dict(B=B, S=S, heads=HEADS, head_dim=HEAD_DIM, layers=LAYERS)
    cparams = pltpu.CompilerParams(dimension_semantics=("arbitrary",))

    if target_tags is None:
        args = enc_args + (params["tag_w"], params["tag_b"])
        idx = pl.pallas_call(
            functools.partial(_infer_kernel, **static),
            out_shape=jax.ShapeDtypeStruct((BS, 1), jnp.int32),
            grid=(1,),
            in_specs=_full_specs(args),
            out_specs=pl.BlockSpec((BS, 1), lambda i: (0, 0)),
            compiler_params=cparams,
        )(*args)
        return idx.reshape(B, S)

    tgt = target_tags.reshape(BS, 1).astype(jnp.int32)
    ctx = context_mask.reshape(BS, 1).astype(jnp.int32)
    turn = jnp.broadcast_to(turn_mask[:, None], (B, S)).reshape(BS, 1).astype(jnp.int32)
    args = enc_args + (params["tag_w"], params["tag_b"], tgt, ctx, turn)
    sums = pl.pallas_call(
        functools.partial(_train_kernel, **static),
        out_shape=jax.ShapeDtypeStruct((1, 4), jnp.float32),
        grid=(1,),
        in_specs=_full_specs(args),
        out_specs=pl.BlockSpec((1, 4), lambda i: (0, 0)),
        compiler_params=cparams,
    )(*args)
    s1, n1, s2, n2 = sums[0, 0], sums[0, 1], sums[0, 2], sums[0, 3]
    loss1 = jnp.where(n1 > 0, s1 / jnp.maximum(n1, 1.0), 0.0)
    loss2 = jnp.where(n2 > 0, s2 / jnp.maximum(n2, 1.0), 0.0)
    # TODO(synk): HandshakingKernel + relH/relT relation heads of the original
    # model are approximated by the turn-2 tag loss term with weight (1 - theta).
    loss = theta * loss1 + (1.0 - theta) * loss2
    return loss, (loss1, loss2)


# ----------------------------- parameter init -------------------------------
def init_params(key):
    ks = jax.random.split(key, 4 + LAYERS)
    std = 0.02

    def nrm(k, shape):
        return jax.random.normal(k, shape, jnp.float32) * std

    params = {
        "word_emb": nrm(ks[0], (VOCAB, HIDDEN)),
        "pos_emb": nrm(ks[1], (MAX_POS, HIDDEN)),
        "type_emb": nrm(ks[2], (TYPE_VOCAB, HIDDEN)),
        "emb_ln_g": jnp.ones((1, HIDDEN), jnp.float32),
        "emb_ln_b": jnp.zeros((1, HIDDEN), jnp.float32),
        "tag_w": nrm(ks[3], (HIDDEN, NUM_TAGS)),
        "tag_b": jnp.zeros((1, NUM_TAGS), jnp.float32),
    }

    wqkv, bqkv, wo, bo, w1, b1, w2, b2 = [], [], [], [], [], [], [], []
    for l in range(LAYERS):
        lk = jax.random.split(ks[4 + l], 6)
        wq, wk, wv = (nrm(lk[0], (HIDDEN, HIDDEN)),
                      nrm(lk[1], (HIDDEN, HIDDEN)),
                      nrm(lk[2], (HIDDEN, HIDDEN)))
        wqkv.append(jnp.concatenate([wq, wk, wv], axis=1))          # (H, 3H)
        bqkv.append(jnp.zeros((1, 3 * HIDDEN), jnp.float32))
        wo.append(nrm(lk[3], (HIDDEN, HIDDEN)))
        bo.append(jnp.zeros((1, HIDDEN), jnp.float32))
        w1.append(nrm(lk[4], (HIDDEN, FFN)))
        b1.append(jnp.zeros((1, FFN), jnp.float32))
        w2.append(nrm(lk[5], (FFN, HIDDEN)))
        b2.append(jnp.zeros((1, HIDDEN), jnp.float32))

    params.update({
        "wqkv": jnp.stack(wqkv), "bqkv": jnp.stack(bqkv),
        "wo": jnp.stack(wo), "bo": jnp.stack(bo),
        "w1": jnp.stack(w1), "b1": jnp.stack(b1),
        "w2": jnp.stack(w2), "b2": jnp.stack(b2),
        "ln1_g": jnp.ones((LAYERS, 1, HIDDEN), jnp.float32),
        "ln1_b": jnp.zeros((LAYERS, 1, HIDDEN), jnp.float32),
        "ln2_g": jnp.ones((LAYERS, 1, HIDDEN), jnp.float32),
        "ln2_b": jnp.zeros((LAYERS, 1, HIDDEN), jnp.float32),
    })
    return params


# ----------------------------- demo ------------------------------------------
if __name__ == "__main__":
    key = jax.random.PRNGKey(0)
    k_param, k_ids, k_ctx, k_tag = jax.random.split(key, 4)

    B, S = 2, 8
    params = init_params(k_param)

    input_ids = jax.random.randint(k_ids, (B, S), 0, VOCAB, dtype=jnp.int32)
    attention_mask = jnp.ones((B, S), jnp.int32).at[:, -1].set(0)
    token_type_ids = jnp.zeros((B, S), jnp.int32)
    context_mask = jax.random.bernoulli(k_ctx, 0.7, (B, S)).astype(jnp.int32)
    turn_mask = jnp.array([0, 1], jnp.int32)
    target_tags = jax.random.randint(k_tag, (B, S), 0, NUM_TAGS, dtype=jnp.int32)

    train_step = jax.jit(
        lambda p, ids, am, tt, cm, tm, tg: forward(
            p, ids, am, tt, context_mask=cm, turn_mask=tm, target_tags=tg))
    infer_step = jax.jit(lambda p, ids, am, tt: forward(p, ids, am, tt))

    # training path (loss)
    loss, (l1, l2) = train_step(params, input_ids, attention_mask, token_type_ids,
                                context_mask, turn_mask, target_tags)
    jax.block_until_ready(loss)

    # inference path (argmax tags)
    tag_idx = infer_step(params, input_ids, attention_mask, token_type_ids)
    jax.block_until_ready(tag_idx)

    print("KERNEL_OK")
</pallas_src>

<mosaic_0001>
module attributes {stable_mosaic.version = 11 : i64} {
  func.func @_train_kernel(%arg0: i32, %arg1: memref<16x32xf32, #tpu.memory_space<vmem>>, %arg2: memref<16x32xf32, #tpu.memory_space<vmem>>, %arg3: memref<16x32xf32, #tpu.memory_space<vmem>>, %arg4: memref<1x32xf32, #tpu.memory_space<vmem>>, %arg5: memref<1x32xf32, #tpu.memory_space<vmem>>, %arg6: memref<2x8xf32, #tpu.memory_space<vmem>>, %arg7: memref<2x32x96xf32, #tpu.memory_space<vmem>>, %arg8: memref<2x1x96xf32, #tpu.memory_space<vmem>>, %arg9: memref<2x32x32xf32, #tpu.memory_space<vmem>>, %arg10: memref<2x1x32xf32, #tpu.memory_space<vmem>>, %arg11: memref<2x32x64xf32, #tpu.memory_space<vmem>>, %arg12: memref<2x1x64xf32, #tpu.memory_space<vmem>>, %arg13: memref<2x64x32xf32, #tpu.memory_space<vmem>>, %arg14: memref<2x1x32xf32, #tpu.memory_space<vmem>>, %arg15: memref<2x1x32xf32, #tpu.memory_space<vmem>>, %arg16: memref<2x1x32xf32, #tpu.memory_space<vmem>>, %arg17: memref<2x1x32xf32, #tpu.memory_space<vmem>>, %arg18: memref<2x1x32xf32, #tpu.memory_space<vmem>>, %arg19: memref<32x5xf32, #tpu.memory_space<vmem>>, %arg20: memref<1x5xf32, #tpu.memory_space<vmem>>, %arg21: memref<16x1xi32, #tpu.memory_space<vmem>>, %arg22: memref<16x1xi32, #tpu.memory_space<vmem>>, %arg23: memref<16x1xi32, #tpu.memory_space<vmem>>, %arg24: memref<1x4xf32, #tpu.memory_space<vmem>>) attributes {dimension_semantics = [#tpu.dimension_semantics<arbitrary>], iteration_bounds = array<i64: 1>, scalar_prefetch = 0 : i64, scratch_operands = 0 : i64, tpu.core_type = #tpu.core_type<tc>, window_params = [{pipeline_mode = #tpu.pipeline_mode<synchronous>, transform_indices = @transform_0, window_bounds = array<i64: 16, 32>}, {pipeline_mode = #tpu.pipeline_mode<synchronous>, transform_indices = @transform_1, window_bounds = array<i64: 16, 32>}, {pipeline_mode = #tpu.pipeline_mode<synchronous>, transform_indices = @transform_2, window_bounds = array<i64: 16, 32>}, {pipeline_mode = #tpu.pipeline_mode<synchronous>, transform_indices = @transform_3, window_bounds = array<i64: 1, 32>}, {pipeline_mode = #tpu.pipeline_mode<synchronous>, transform_indices = @transform_4, window_bounds = array<i64: 1, 32>}, {pipeline_mode = #tpu.pipeline_mode<synchronous>, transform_indices = @transform_5, window_bounds = array<i64: 2, 8>}, {pipeline_mode = #tpu.pipeline_mode<synchronous>, transform_indices = @transform_6, window_bounds = array<i64: 2, 32, 96>}, {pipeline_mode = #tpu.pipeline_mode<synchronous>, transform_indices = @transform_7, window_bounds = array<i64: 2, 1, 96>}, {pipeline_mode = #tpu.pipeline_mode<synchronous>, transform_indices = @transform_8, window_bounds = array<i64: 2, 32, 32>}, {pipeline_mode = #tpu.pipeline_mode<synchronous>, transform_indices = @transform_9, window_bounds = array<i64: 2, 1, 32>}, {pipeline_mode = #tpu.pipeline_mode<synchronous>, transform_indices = @transform_10, window_bounds = array<i64: 2, 32, 64>}, {pipeline_mode = #tpu.pipeline_mode<synchronous>, transform_indices = @transform_11, window_bounds = array<i64: 2, 1, 64>}, {pipeline_mode = #tpu.pipeline_mode<synchronous>, transform_indices = @transform_12, window_bounds = array<i64: 2, 64, 32>}, {pipeline_mode = #tpu.pipeline_mode<synchronous>, transform_indices = @transform_13, window_bounds = array<i64: 2, 1, 32>}, {pipeline_mode = #tpu.pipeline_mode<synchronous>, transform_indices = @transform_14, window_bounds = array<i64: 2, 1, 32>}, {pipeline_mode = #tpu.pipeline_mode<synchronous>, transform_indices = @transform_15, window_bounds = array<i64: 2, 1, 32>}, {pipeline_mode = #tpu.pipeline_mode<synchronous>, transform_indices = @transform_16, window_bounds = array<i64: 2, 1, 32>}, {pipeline_mode = #tpu.pipeline_mode<synchronous>, transform_indices = @transform_17, window_bounds = array<i64: 2, 1, 32>}, {pipeline_mode = #tpu.pipeline_mode<synchronous>, transform_indices = @transform_18, window_bounds = array<i64: 32, 5>}, {pipeline_mode = #tpu.pipeline_mode<synchronous>, transform_indices = @transform_19, window_bounds = array<i64: 1, 5>}, {pipeline_mode = #tpu.pipeline_mode<synchronous>, transform_indices = @transform_20, window_bounds = array<i64: 16, 1>}, {pipeline_mode = #tpu.pipeline_mode<synchronous>, transform_indices = @transform_21, window_bounds = array<i64: 16, 1>}, {pipeline_mode = #tpu.pipeline_mode<synchronous>, transform_indices = @transform_22, window_bounds = array<i64: 16, 1>}, {pipeline_mode = #tpu.pipeline_mode<synchronous>, transform_indices = @transform_23, window_bounds = array<i64: 1, 4>}]} {
    %c0 = arith.constant 0 : index
    %c0_0 = arith.constant 0 : index
    %0 = vector.load %arg1[%c0, %c0_0] : memref<16x32xf32, #tpu.memory_space<vmem>>, vector<16x32xf32>
    %c0_1 = arith.constant 0 : index
    %c0_2 = arith.constant 0 : index
    %1 = vector.load %arg2[%c0_1, %c0_2] : memref<16x32xf32, #tpu.memory_space<vmem>>, vector<16x32xf32>
    %2 = arith.addf %0, %1 : vector<16x32xf32>
    %c0_3 = arith.constant 0 : index
    %c0_4 = arith.constant 0 : index
    %3 = vector.load %arg3[%c0_3, %c0_4] : memref<16x32xf32, #tpu.memory_space<vmem>>, vector<16x32xf32>
    %4 = arith.addf %2, %3 : vector<16x32xf32>
    %c0_5 = arith.constant 0 : index
    %c0_6 = arith.constant 0 : index
    %5 = vector.load %arg4[%c0_5, %c0_6] : memref<1x32xf32, #tpu.memory_space<vmem>>, vector<1x32xf32>
    %c0_7 = arith.constant 0 : index
    %c0_8 = arith.constant 0 : index
    %6 = vector.load %arg5[%c0_7, %c0_8] : memref<1x32xf32, #tpu.memory_space<vmem>>, vector<1x32xf32>
    %cst = arith.constant dense<0.000000e+00> : vector<16xf32>
    %7 = vector.multi_reduction <add>, %4, %cst [1] : vector<16x32xf32> to vector<16xf32>
    %8 = vector.shape_cast %7 : vector<16xf32> to vector<16x1xf32>
    %cst_9 = arith.constant 3.200000e+01 : f32
    %9 = vector.broadcast %cst_9 : f32 to vector<16x1xf32>
    %10 = arith.divf %8, %9 : vector<16x1xf32>
    %11 = vector.broadcast %10 : vector<16x1xf32> to vector<16x32xf32>
    %12 = arith.subf %4, %11 : vector<16x32xf32>
    %13 = arith.mulf %12, %12 : vector<16x32xf32>
    %cst_10 = arith.constant dense<0.000000e+00> : vector<16xf32>
    %14 = vector.multi_reduction <add>, %13, %cst_10 [1] : vector<16x32xf32> to vector<16xf32>
    %15 = vector.shape_cast %14 : vector<16xf32> to vector<16x1xf32>
    %cst_11 = arith.constant 3.200000e+01 : f32
    %16 = vector.broadcast %cst_11 : f32 to vector<16x1xf32>
    %17 = arith.divf %15, %16 : vector<16x1xf32>
    %18 = vector.broadcast %10 : vector<16x1xf32> to vector<16x32xf32>
    %19 = arith.subf %4, %18 : vector<16x32xf32>
    %cst_12 = arith.constant 9.99999996E-13 : f32
    %20 = vector.broadcast %cst_12 : f32 to vector<16x1xf32>
    %21 = arith.addf %17, %20 : vector<16x1xf32>
    %22 = math.rsqrt %21 : vector<16x1xf32>
    %23 = vector.broadcast %22 : vector<16x1xf32> to vector<16x32xf32>
    %24 = arith.mulf %19, %23 : vector<16x32xf32>
    %25 = vector.broadcast %5 : vector<1x32xf32> to vector<16x32xf32>
    %26 = arith.mulf %24, %25 : vector<16x32xf32>
    %27 = vector.broadcast %6 : vector<1x32xf32> to vector<16x32xf32>
    %28 = arith.addf %26, %27 : vector<16x32xf32>
    %c0_13 = arith.constant 0 : index
    %c0_14 = arith.constant 0 : index
    %29 = vector.load %arg6[%c0_13, %c0_14] : memref<2x8xf32, #tpu.memory_space<vmem>>, vector<2x8xf32>
    %cst_15 = arith.constant 1.000000e+00 : f32
    %30 = vector.broadcast %cst_15 : f32 to vector<2x8xf32>
    %31 = arith.subf %30, %29 : vector<2x8xf32>
    %cst_16 = arith.constant -1.000000e+09 : f32
    %32 = vector.broadcast %cst_16 : f32 to vector<2x8xf32>
    %33 = arith.mulf %31, %32 : vector<2x8xf32>
    %c0_17 = arith.constant 0 : index
    %c0_18 = arith.constant 0 : index
    %c0_19 = arith.constant 0 : index
    %34 = vector.load %arg7[%c0_17, %c0_18, %c0_19] : memref<2x32x96xf32, #tpu.memory_space<vmem>>, vector<1x32x96xf32>
    %35 = vector.shape_cast %34 : vector<1x32x96xf32> to vector<32x96xf32>
    %36 = arith.truncf %28 : vector<16x32xf32> to vector<16x32xbf16>
    %37 = arith.truncf %35 : vector<32x96xf32> to vector<32x96xbf16>
    %cst_20 = arith.constant dense<0.000000e+00> : vector<16x96xf32>
    %38 = tpu.matmul %36, %37, %cst_20 {dimension_numbers = #tpu.dot_dimension_numbers<[1], [0], [0], [1], [0, 0, 1, 1], [], []>} : vector<16x32xbf16>, vector<32x96xbf16>, vector<16x96xf32> -> vector<16x96xf32>
    %c0_21 = arith.constant 0 : index
    %c0_22 = arith.constant 0 : index
    %c0_23 = arith.constant 0 : index
    %39 = vector.load %arg8[%c0_21, %c0_22, %c0_23] : memref<2x1x96xf32, #tpu.memory_space<vmem>>, vector<1x1x96xf32>
    %40 = vector.shape_cast %39 : vector<1x1x96xf32> to vector<1x96xf32>
    %41 = vector.broadcast %40 : vector<1x96xf32> to vector<16x96xf32>
    %42 = arith.addf %38, %41 : vector<16x96xf32>
    %43 = vector.extract_strided_slice %33 {offsets = [0, 0], sizes = [1, 8], strides = [1, 1]} : vector<2x8xf32> to vector<1x8xf32>
    %44 = vector.extract_strided_slice %42 {offsets = [0, 0], sizes = [8, 16], strides = [1, 1]} : vector<16x96xf32> to vector<8x16xf32>
    %45 = vector.extract_strided_slice %42 {offsets = [0, 32], sizes = [8, 16], strides = [1, 1]} : vector<16x96xf32> to vector<8x16xf32>
    %46 = vector.extract_strided_slice %42 {offsets = [0, 64], sizes = [8, 16], strides = [1, 1]} : vector<16x96xf32> to vector<8x16xf32>
    %cst_24 = arith.constant dense<0.000000e+00> : vector<8x8xf32>
    %47 = tpu.matmul %44, %45, %cst_24 {dimension_numbers = #tpu.dot_dimension_numbers<[1], [1], [0], [0], [0, 0, 1, 0], [], []>} : vector<8x16xf32>, vector<8x16xf32>, vector<8x8xf32> -> vector<8x8xf32>
    %cst_25 = arith.constant 2.500000e-01 : f32
    %48 = vector.broadcast %cst_25 : f32 to vector<8x8xf32>
    %49 = arith.mulf %47, %48 : vector<8x8xf32>
    %50 = vector.broadcast %43 : vector<1x8xf32> to vector<8x8xf32>
    %51 = arith.addf %49, %50 : vector<8x8xf32>
    %cst_26 = arith.constant dense<0xFF800000> : vector<8xf32>
    %52 = vector.multi_reduction <maximumf>, %51, %cst_26 [1] : vector<8x8xf32> to vector<8xf32>
    %53 = vector.shape_cast %52 : vector<8xf32> to vector<8x1xf32>
    %54 = vector.broadcast %53 : vector<8x1xf32> to vector<8x8xf32>
    %55 = arith.subf %51, %54 : vector<8x8xf32>
    %56 = math.exp %55 : vector<8x8xf32>
    %cst_27 = arith.constant dense<0.000000e+00> : vector<8xf32>
    %57 = vector.multi_reduction <add>, %56, %cst_27 [1] : vector<8x8xf32> to vector<8xf32>
    %58 = vector.shape_cast %57 : vector<8xf32> to vector<8x1xf32>
    %59 = vector.broadcast %58 : vector<8x1xf32> to vector<8x8xf32>
    %60 = arith.divf %56, %59 : vector<8x8xf32>
    %cst_28 = arith.constant dense<0.000000e+00> : vector<8x16xf32>
    %61 = tpu.matmul %60, %46, %cst_28 {dimension_numbers = #tpu.dot_dimension_numbers<[1], [0], [0], [1], [0, 0, 1, 1], [], []>} : vector<8x8xf32>, vector<8x16xf32>, vector<8x16xf32> -> vector<8x16xf32>
    %62 = vector.extract_strided_slice %42 {offsets = [0, 16], sizes = [8, 16], strides = [1, 1]} : vector<16x96xf32> to vector<8x16xf32>
    %63 = vector.extract_strided_slice %42 {offsets = [0, 48], sizes = [8, 16], strides = [1, 1]} : vector<16x96xf32> to vector<8x16xf32>
    %64 = vector.extract_strided_slice %42 {offsets = [0, 80], sizes = [8, 16], strides = [1, 1]} : vector<16x96xf32> to vector<8x16xf32>
    %cst_29 = arith.constant dense<0.000000e+00> : vector<8x8xf32>
    %65 = tpu.matmul %62, %63, %cst_29 {dimension_numbers = #tpu.dot_dimension_numbers<[1], [1], [0], [0], [0, 0, 1, 0], [], []>} : vector<8x16xf32>, vector<8x16xf32>, vector<8x8xf32> -> vector<8x8xf32>
    %cst_30 = arith.constant 2.500000e-01 : f32
    %66 = vector.broadcast %cst_30 : f32 to vector<8x8xf32>
    %67 = arith.mulf %65, %66 : vector<8x8xf32>
    %68 = vector.broadcast %43 : vector<1x8xf32> to vector<8x8xf32>
    %69 = arith.addf %67, %68 : vector<8x8xf32>
    %cst_31 = arith.constant dense<0xFF800000> : vector<8xf32>
    %70 = vector.multi_reduction <maximumf>, %69, %cst_31 [1] : vector<8x8xf32> to vector<8xf32>
    %71 = vector.shape_cast %70 : vector<8xf32> to vector<8x1xf32>
    %72 = vector.broadcast %71 : vector<8x1xf32> to vector<8x8xf32>
    %73 = arith.subf %69, %72 : vector<8x8xf32>
    %74 = math.exp %73 : vector<8x8xf32>
    %cst_32 = arith.constant dense<0.000000e+00> : vector<8xf32>
    %75 = vector.multi_reduction <add>, %74, %cst_32 [1] : vector<8x8xf32> to vector<8xf32>
    %76 = vector.shape_cast %75 : vector<8xf32> to vector<8x1xf32>
    %77 = vector.broadcast %76 : vector<8x1xf32> to vector<8x8xf32>
    %78 = arith.divf %74, %77 : vector<8x8xf32>
    %cst_33 = arith.constant dense<0.000000e+00> : vector<8x16xf32>
    %79 = tpu.matmul %78, %64, %cst_33 {dimension_numbers = #tpu.dot_dimension_numbers<[1], [0], [0], [1], [0, 0, 1, 1], [], []>} : vector<8x8xf32>, vector<8x16xf32>, vector<8x16xf32> -> vector<8x16xf32>
    %80 = tpu.concatenate %61, %79 in 1 : vector<8x16xf32>, vector<8x16xf32> -> vector<8x32xf32>
    %81 = vector.extract_strided_slice %33 {offsets = [1, 0], sizes = [1, 8], strides = [1, 1]} : vector<2x8xf32> to vector<1x8xf32>
    %82 = vector.extract_strided_slice %42 {offsets = [8, 0], sizes = [8, 16], strides = [1, 1]} : vector<16x96xf32> to vector<8x16xf32>
    %83 = vector.extract_strided_slice %42 {offsets = [8, 32], sizes = [8, 16], strides = [1, 1]} : vector<16x96xf32> to vector<8x16xf32>
    %84 = vector.extract_strided_slice %42 {offsets = [8, 64], sizes = [8, 16], strides = [1, 1]} : vector<16x96xf32> to vector<8x16xf32>
    %cst_34 = arith.constant dense<0.000000e+00> : vector<8x8xf32>
    %85 = tpu.matmul %82, %83, %cst_34 {dimension_numbers = #tpu.dot_dimension_numbers<[1], [1], [0], [0], [0, 0, 1, 0], [], []>} : vector<8x16xf32>, vector<8x16xf32>, vector<8x8xf32> -> vector<8x8xf32>
    %cst_35 = arith.constant 2.500000e-01 : f32
    %86 = vector.broadcast %cst_35 : f32 to vector<8x8xf32>
    %87 = arith.mulf %85, %86 : vector<8x8xf32>
    %88 = vector.broadcast %81 : vector<1x8xf32> to vector<8x8xf32>
    %89 = arith.addf %87, %88 : vector<8x8xf32>
    %cst_36 = arith.constant dense<0xFF800000> : vector<8xf32>
    %90 = vector.multi_reduction <maximumf>, %89, %cst_36 [1] : vector<8x8xf32> to vector<8xf32>
    %91 = vector.shape_cast %90 : vector<8xf32> to vector<8x1xf32>
    %92 = vector.broadcast %91 : vector<8x1xf32> to vector<8x8xf32>
    %93 = arith.subf %89, %92 : vector<8x8xf32>
    %94 = math.exp %93 : vector<8x8xf32>
    %cst_37 = arith.constant dense<0.000000e+00> : vector<8xf32>
    %95 = vector.multi_reduction <add>, %94, %cst_37 [1] : vector<8x8xf32> to vector<8xf32>
    %96 = vector.shape_cast %95 : vector<8xf32> to vector<8x1xf32>
    %97 = vector.broadcast %96 : vector<8x1xf32> to vector<8x8xf32>
    %98 = arith.divf %94, %97 : vector<8x8xf32>
    %cst_38 = arith.constant dense<0.000000e+00> : vector<8x16xf32>
    %99 = tpu.matmul %98, %84, %cst_38 {dimension_numbers = #tpu.dot_dimension_numbers<[1], [0], [0], [1], [0, 0, 1, 1], [], []>} : vector<8x8xf32>, vector<8x16xf32>, vector<8x16xf32> -> vector<8x16xf32>
    %100 = vector.extract_strided_slice %42 {offsets = [8, 16], sizes = [8, 16], strides = [1, 1]} : vector<16x96xf32> to vector<8x16xf32>
    %101 = vector.extract_strided_slice %42 {offsets = [8, 48], sizes = [8, 16], strides = [1, 1]} : vector<16x96xf32> to vector<8x16xf32>
    %102 = vector.extract_strided_slice %42 {offsets = [8, 80], sizes = [8, 16], strides = [1, 1]} : vector<16x96xf32> to vector<8x16xf32>
    %cst_39 = arith.constant dense<0.000000e+00> : vector<8x8xf32>
    %103 = tpu.matmul %100, %101, %cst_39 {dimension_numbers = #tpu.dot_dimension_numbers<[1], [1], [0], [0], [0, 0, 1, 0], [], []>} : vector<8x16xf32>, vector<8x16xf32>, vector<8x8xf32> -> vector<8x8xf32>
    %cst_40 = arith.constant 2.500000e-01 : f32
    %104 = vector.broadcast %cst_40 : f32 to vector<8x8xf32>
    %105 = arith.mulf %103, %104 : vector<8x8xf32>
    %106 = vector.broadcast %81 : vector<1x8xf32> to vector<8x8xf32>
    %107 = arith.addf %105, %106 : vector<8x8xf32>
    %cst_41 = arith.constant dense<0xFF800000> : vector<8xf32>
    %108 = vector.multi_reduction <maximumf>, %107, %cst_41 [1] : vector<8x8xf32> to vector<8xf32>
    %109 = vector.shape_cast %108 : vector<8xf32> to vector<8x1xf32>
    %110 = vector.broadcast %109 : vector<8x1xf32> to vector<8x8xf32>
    %111 = arith.subf %107, %110 : vector<8x8xf32>
    %112 = math.exp %111 : vector<8x8xf32>
    %cst_42 = arith.constant dense<0.000000e+00> : vector<8xf32>
    %113 = vector.multi_reduction <add>, %112, %cst_42 [1] : vector<8x8xf32> to vector<8xf32>
    %114 = vector.shape_cast %113 : vector<8xf32> to vector<8x1xf32>
    %115 = vector.broadcast %114 : vector<8x1xf32> to vector<8x8xf32>
    %116 = arith.divf %112, %115 : vector<8x8xf32>
    %cst_43 = arith.constant dense<0.000000e+00> : vector<8x16xf32>
    %117 = tpu.matmul %116, %102, %cst_43 {dimension_numbers = #tpu.dot_dimension_numbers<[1], [0], [0], [1], [0, 0, 1, 1], [], []>} : vector<8x8xf32>, vector<8x16xf32>, vector<8x16xf32> -> vector<8x16xf32>
    %118 = tpu.concatenate %99, %117 in 1 : vector<8x16xf32>, vector<8x16xf32> -> vector<8x32xf32>
    %119 = tpu.concatenate %80, %118 in 0 : vector<8x32xf32>, vector<8x32xf32> -> vector<16x32xf32>
    %c0_44 = arith.constant 0 : index
    %c0_45 = arith.constant 0 : index
    %c0_46 = arith.constant 0 : index
    %120 = vector.load %arg9[%c0_44, %c0_45, %c0_46] : memref<2x32x32xf32, #tpu.memory_space<vmem>>, vector<1x32x32xf32>
    %121 = vector.shape_cast %120 : vector<1x32x32xf32> to vector<32x32xf32>
    %122 = arith.truncf %119 : vector<16x32xf32> to vector<16x32xbf16>
    %123 = arith.truncf %121 : vector<32x32xf32> to vector<32x32xbf16>
    %cst_47 = arith.constant dense<0.000000e+00> : vector<16x32xf32>
    %124 = tpu.matmul %122, %123, %cst_47 {dimension_numbers = #tpu.dot_dimension_numbers<[1], [0], [0], [1], [0, 0, 1, 1], [], []>} : vector<16x32xbf16>, vector<32x32xbf16>, vector<16x32xf32> -> vector<16x32xf32>
    %c0_48 = arith.constant 0 : index
    %c0_49 = arith.constant 0 : index
    %c0_50 = arith.constant 0 : index
    %125 = vector.load %arg10[%c0_48, %c0_49, %c0_50] : memref<2x1x32xf32, #tpu.memory_space<vmem>>, vector<1x1x32xf32>
    %126 = vector.shape_cast %125 : vector<1x1x32xf32> to vector<1x32xf32>
    %127 = vector.broadcast %126 : vector<1x32xf32> to vector<16x32xf32>
    %128 = arith.addf %124, %127 : vector<16x32xf32>
    %129 = arith.addf %28, %128 : vector<16x32xf32>
    %c0_51 = arith.constant 0 : index
    %c0_52 = arith.constant 0 : index
    %c0_53 = arith.constant 0 : index
    %130 = vector.load %arg15[%c0_51, %c0_52, %c0_53] : memref<2x1x32xf32, #tpu.memory_space<vmem>>, vector<1x1x32xf32>
    %131 = vector.shape_cast %130 : vector<1x1x32xf32> to vector<1x32xf32>
    %c0_54 = arith.constant 0 : index
    %c0_55 = arith.constant 0 : index
    %c0_56 = arith.constant 0 : index
    %132 = vector.load %arg16[%c0_54, %c0_55, %c0_56] : memref<2x1x32xf32, #tpu.memory_space<vmem>>, vector<1x1x32xf32>
    %133 = vector.shape_cast %132 : vector<1x1x32xf32> to vector<1x32xf32>
    %cst_57 = arith.constant dense<0.000000e+00> : vector<16xf32>
    %134 = vector.multi_reduction <add>, %129, %cst_57 [1] : vector<16x32xf32> to vector<16xf32>
    %135 = vector.shape_cast %134 : vector<16xf32> to vector<16x1xf32>
    %cst_58 = arith.constant 3.200000e+01 : f32
    %136 = vector.broadcast %cst_58 : f32 to vector<16x1xf32>
    %137 = arith.divf %135, %136 : vector<16x1xf32>
    %138 = vector.broadcast %137 : vector<16x1xf32> to vector<16x32xf32>
    %139 = arith.subf %129, %138 : vector<16x32xf32>
    %140 = arith.mulf %139, %139 : vector<16x32xf32>
    %cst_59 = arith.constant dense<0.000000e+00> : vector<16xf32>
    %141 = vector.multi_reduction <add>, %140, %cst_59 [1] : vector<16x32xf32> to vector<16xf32>
    %142 = vector.shape_cast %141 : vector<16xf32> to vector<16x1xf32>
    %cst_60 = arith.constant 3.200000e+01 : f32
    %143 = vector.broadcast %cst_60 : f32 to vector<16x1xf32>
    %144 = arith.divf %142, %143 : vector<16x1xf32>
    %145 = vector.broadcast %137 : vector<16x1xf32> to vector<16x32xf32>
    %146 = arith.subf %129, %145 : vector<16x32xf32>
    %cst_61 = arith.constant 9.99999996E-13 : f32
    %147 = vector.broadcast %cst_61 : f32 to vector<16x1xf32>
    %148 = arith.addf %144, %147 : vector<16x1xf32>
    %149 = math.rsqrt %148 : vector<16x1xf32>
    %150 = vector.broadcast %149 : vector<16x1xf32> to vector<16x32xf32>
    %151 = arith.mulf %146, %150 : vector<16x32xf32>
    %152 = vector.broadcast %131 : vector<1x32xf32> to vector<16x32xf32>
    %153 = arith.mulf %151, %152 : vector<16x32xf32>
    %154 = vector.broadcast %133 : vector<1x32xf32> to vector<16x32xf32>
    %155 = arith.addf %153, %154 : vector<16x32xf32>
    %c0_62 = arith.constant 0 : index
    %c0_63 = arith.constant 0 : index
    %c0_64 = arith.constant 0 : index
    %156 = vector.load %arg11[%c0_62, %c0_63, %c0_64] : memref<2x32x64xf32, #tpu.memory_space<vmem>>, vector<1x32x64xf32>
    %157 = vector.shape_cast %156 : vector<1x32x64xf32> to vector<32x64xf32>
    %158 = arith.truncf %155 : vector<16x32xf32> to vector<16x32xbf16>
    %159 = arith.truncf %157 : vector<32x64xf32> to vector<32x64xbf16>
    %cst_65 = arith.constant dense<0.000000e+00> : vector<16x64xf32>
    %160 = tpu.matmul %158, %159, %cst_65 {dimension_numbers = #tpu.dot_dimension_numbers<[1], [0], [0], [1], [0, 0, 1, 1], [], []>} : vector<16x32xbf16>, vector<32x64xbf16>, vector<16x64xf32> -> vector<16x64xf32>
    %c0_66 = arith.constant 0 : index
    %c0_67 = arith.constant 0 : index
    %c0_68 = arith.constant 0 : index
    %161 = vector.load %arg12[%c0_66, %c0_67, %c0_68] : memref<2x1x64xf32, #tpu.memory_space<vmem>>, vector<1x1x64xf32>
    %162 = vector.shape_cast %161 : vector<1x1x64xf32> to vector<1x64xf32>
    %163 = vector.broadcast %162 : vector<1x64xf32> to vector<16x64xf32>
    %164 = arith.addf %160, %163 : vector<16x64xf32>
    %165 = arith.mulf %164, %164 : vector<16x64xf32>
    %166 = arith.mulf %164, %165 : vector<16x64xf32>
    %cst_69 = arith.constant 4.471500e-02 : f32
    %167 = vector.broadcast %cst_69 : f32 to vector<16x64xf32>
    %168 = arith.mulf %167, %166 : vector<16x64xf32>
    %169 = arith.addf %164, %168 : vector<16x64xf32>
    %cst_70 = arith.constant 0.797884583 : f32
    %170 = vector.broadcast %cst_70 : f32 to vector<16x64xf32>
    %171 = arith.mulf %170, %169 : vector<16x64xf32>
    %172 = math.tanh %171 : vector<16x64xf32>
    %cst_71 = arith.constant 1.000000e+00 : f32
    %173 = vector.broadcast %cst_71 : f32 to vector<16x64xf32>
    %174 = arith.addf %173, %172 : vector<16x64xf32>
    %cst_72 = arith.constant 5.000000e-01 : f32
    %175 = vector.broadcast %cst_72 : f32 to vector<16x64xf32>
    %176 = arith.mulf %175, %174 : vector<16x64xf32>
    %177 = arith.mulf %164, %176 : vector<16x64xf32>
    %c0_73 = arith.constant 0 : index
    %c0_74 = arith.constant 0 : index
    %c0_75 = arith.constant 0 : index
    %178 = vector.load %arg13[%c0_73, %c0_74, %c0_75] : memref<2x64x32xf32, #tpu.memory_space<vmem>>, vector<1x64x32xf32>
    %179 = vector.shape_cast %178 : vector<1x64x32xf32> to vector<64x32xf32>
    %180 = arith.truncf %177 : vector<16x64xf32> to vector<16x64xbf16>
    %181 = arith.truncf %179 : vector<64x32xf32> to vector<64x32xbf16>
    %cst_76 = arith.constant dense<0.000000e+00> : vector<16x32xf32>
    %182 = tpu.matmul %180, %181, %cst_76 {dimension_numbers = #tpu.dot_dimension_numbers<[1], [0], [0], [1], [0, 0, 1, 1], [], []>} : vector<16x64xbf16>, vector<64x32xbf16>, vector<16x32xf32> -> vector<16x32xf32>
    %c0_77 = arith.constant 0 : index
    %c0_78 = arith.constant 0 : index
    %c0_79 = arith.constant 0 : index
    %183 = vector.load %arg14[%c0_77, %c0_78, %c0_79] : memref<2x1x32xf32, #tpu.memory_space<vmem>>, vector<1x1x32xf32>
    %184 = vector.shape_cast %183 : vector<1x1x32xf32> to vector<1x32xf32>
    %185 = vector.broadcast %184 : vector<1x32xf32> to vector<16x32xf32>
    %186 = arith.addf %182, %185 : vector<16x32xf32>
    %187 = arith.addf %155, %186 : vector<16x32xf32>
    %c0_80 = arith.constant 0 : index
    %c0_81 = arith.constant 0 : index
    %c0_82 = arith.constant 0 : index
    %188 = vector.load %arg17[%c0_80, %c0_81, %c0_82] : memref<2x1x32xf32, #tpu.memory_space<vmem>>, vector<1x1x32xf32>
    %189 = vector.shape_cast %188 : vector<1x1x32xf32> to vector<1x32xf32>
    %c0_83 = arith.constant 0 : index
    %c0_84 = arith.constant 0 : index
    %c0_85 = arith.constant 0 : index
    %190 = vector.load %arg18[%c0_83, %c0_84, %c0_85] : memref<2x1x32xf32, #tpu.memory_space<vmem>>, vector<1x1x32xf32>
    %191 = vector.shape_cast %190 : vector<1x1x32xf32> to vector<1x32xf32>
    %cst_86 = arith.constant dense<0.000000e+00> : vector<16xf32>
    %192 = vector.multi_reduction <add>, %187, %cst_86 [1] : vector<16x32xf32> to vector<16xf32>
    %193 = vector.shape_cast %192 : vector<16xf32> to vector<16x1xf32>
    %cst_87 = arith.constant 3.200000e+01 : f32
    %194 = vector.broadcast %cst_87 : f32 to vector<16x1xf32>
    %195 = arith.divf %193, %194 : vector<16x1xf32>
    %196 = vector.broadcast %195 : vector<16x1xf32> to vector<16x32xf32>
    %197 = arith.subf %187, %196 : vector<16x32xf32>
    %198 = arith.mulf %197, %197 : vector<16x32xf32>
    %cst_88 = arith.constant dense<0.000000e+00> : vector<16xf32>
    %199 = vector.multi_reduction <add>, %198, %cst_88 [1] : vector<16x32xf32> to vector<16xf32>
    %200 = vector.shape_cast %199 : vector<16xf32> to vector<16x1xf32>
    %cst_89 = arith.constant 3.200000e+01 : f32
    %201 = vector.broadcast %cst_89 : f32 to vector<16x1xf32>
    %202 = arith.divf %200, %201 : vector<16x1xf32>
    %203 = vector.broadcast %195 : vector<16x1xf32> to vector<16x32xf32>
    %204 = arith.subf %187, %203 : vector<16x32xf32>
    %cst_90 = arith.constant 9.99999996E-13 : f32
    %205 = vector.broadcast %cst_90 : f32 to vector<16x1xf32>
    %206 = arith.addf %202, %205 : vector<16x1xf32>
    %207 = math.rsqrt %206 : vector<16x1xf32>
    %208 = vector.broadcast %207 : vector<16x1xf32> to vector<16x32xf32>
    %209 = arith.mulf %204, %208 : vector<16x32xf32>
    %210 = vector.broadcast %189 : vector<1x32xf32> to vector<16x32xf32>
    %211 = arith.mulf %209, %210 : vector<16x32xf32>
    %212 = vector.broadcast %191 : vector<1x32xf32> to vector<16x32xf32>
    %213 = arith.addf %211, %212 : vector<16x32xf32>
    %c1 = arith.constant 1 : index
    %c0_91 = arith.constant 0 : index
    %c0_92 = arith.constant 0 : index
    %214 = vector.load %arg7[%c1, %c0_91, %c0_92] : memref<2x32x96xf32, #tpu.memory_space<vmem>>, vector<1x32x96xf32>
    %215 = vector.shape_cast %214 : vector<1x32x96xf32> to vector<32x96xf32>
    %216 = arith.truncf %213 : vector<16x32xf32> to vector<16x32xbf16>
    %217 = arith.truncf %215 : vector<32x96xf32> to vector<32x96xbf16>
    %cst_93 = arith.constant dense<0.000000e+00> : vector<16x96xf32>
    %218 = tpu.matmul %216, %217, %cst_93 {dimension_numbers = #tpu.dot_dimension_numbers<[1], [0], [0], [1], [0, 0, 1, 1], [], []>} : vector<16x32xbf16>, vector<32x96xbf16>, vector<16x96xf32> -> vector<16x96xf32>
    %c1_94 = arith.constant 1 : index
    %c0_95 = arith.constant 0 : index
    %c0_96 = arith.constant 0 : index
    %219 = vector.load %arg8[%c1_94, %c0_95, %c0_96] : memref<2x1x96xf32, #tpu.memory_space<vmem>>, vector<1x1x96xf32>
    %220 = vector.shape_cast %219 : vector<1x1x96xf32> to vector<1x96xf32>
    %221 = vector.broadcast %220 : vector<1x96xf32> to vector<16x96xf32>
    %222 = arith.addf %218, %221 : vector<16x96xf32>
    %223 = vector.extract_strided_slice %33 {offsets = [0, 0], sizes = [1, 8], strides = [1, 1]} : vector<2x8xf32> to vector<1x8xf32>
    %224 = vector.extract_strided_slice %222 {offsets = [0, 0], sizes = [8, 16], strides = [1, 1]} : vector<16x96xf32> to vector<8x16xf32>
    %225 = vector.extract_strided_slice %222 {offsets = [0, 32], sizes = [8, 16], strides = [1, 1]} : vector<16x96xf32> to vector<8x16xf32>
    %226 = vector.extract_strided_slice %222 {offsets = [0, 64], sizes = [8, 16], strides = [1, 1]} : vector<16x96xf32> to vector<8x16xf32>
    %cst_97 = arith.constant dense<0.000000e+00> : vector<8x8xf32>
    %227 = tpu.matmul %224, %225, %cst_97 {dimension_numbers = #tpu.dot_dimension_numbers<[1], [1], [0], [0], [0, 0, 1, 0], [], []>} : vector<8x16xf32>, vector<8x16xf32>, vector<8x8xf32> -> vector<8x8xf32>
    %cst_98 = arith.constant 2.500000e-01 : f32
    %228 = vector.broadcast %cst_98 : f32 to vector<8x8xf32>
    %229 = arith.mulf %227, %228 : vector<8x8xf32>
    %230 = vector.broadcast %223 : vector<1x8xf32> to vector<8x8xf32>
    %231 = arith.addf %229, %230 : vector<8x8xf32>
    %cst_99 = arith.constant dense<0xFF800000> : vector<8xf32>
    %232 = vector.multi_reduction <maximumf>, %231, %cst_99 [1] : vector<8x8xf32> to vector<8xf32>
    %233 = vector.shape_cast %232 : vector<8xf32> to vector<8x1xf32>
    %234 = vector.broadcast %233 : vector<8x1xf32> to vector<8x8xf32>
    %235 = arith.subf %231, %234 : vector<8x8xf32>
    %236 = math.exp %235 : vector<8x8xf32>
    %cst_100 = arith.constant dense<0.000000e+00> : vector<8xf32>
    %237 = vector.multi_reduction <add>, %236, %cst_100 [1] : vector<8x8xf32> to vector<8xf32>
    %238 = vector.shape_cast %237 : vector<8xf32> to vector<8x1xf32>
    %239 = vector.broadcast %238 : vector<8x1xf32> to vector<8x8xf32>
    %240 = arith.divf %236, %239 : vector<8x8xf32>
    %cst_101 = arith.constant dense<0.000000e+00> : vector<8x16xf32>
    %241 = tpu.matmul %240, %226, %cst_101 {dimension_numbers = #tpu.dot_dimension_numbers<[1], [0], [0], [1], [0, 0, 1, 1], [], []>} : vector<8x8xf32>, vector<8x16xf32>, vector<8x16xf32> -> vector<8x16xf32>
    %242 = vector.extract_strided_slice %222 {offsets = [0, 16], sizes = [8, 16], strides = [1, 1]} : vector<16x96xf32> to vector<8x16xf32>
    %243 = vector.extract_strided_slice %222 {offsets = [0, 48], sizes = [8, 16], strides = [1, 1]} : vector<16x96xf32> to vector<8x16xf32>
    %244 = vector.extract_strided_slice %222 {offsets = [0, 80], sizes = [8, 16], strides = [1, 1]} : vector<16x96xf32> to vector<8x16xf32>
    %cst_102 = arith.constant dense<0.000000e+00> : vector<8x8xf32>
    %245 = tpu.matmul %242, %243, %cst_102 {dimension_numbers = #tpu.dot_dimension_numbers<[1], [1], [0], [0], [0, 0, 1, 0], [], []>} : vector<8x16xf32>, vector<8x16xf32>, vector<8x8xf32> -> vector<8x8xf32>
    %cst_103 = arith.constant 2.500000e-01 : f32
    %246 = vector.broadcast %cst_103 : f32 to vector<8x8xf32>
    %247 = arith.mulf %245, %246 : vector<8x8xf32>
    %248 = vector.broadcast %223 : vector<1x8xf32> to vector<8x8xf32>
    %249 = arith.addf %247, %248 : vector<8x8xf32>
    %cst_104 = arith.constant dense<0xFF800000> : vector<8xf32>
    %250 = vector.multi_reduction <maximumf>, %249, %cst_104 [1] : vector<8x8xf32> to vector<8xf32>
    %251 = vector.shape_cast %250 : vector<8xf32> to vector<8x1xf32>
    %252 = vector.broadcast %251 : vector<8x1xf32> to vector<8x8xf32>
    %253 = arith.subf %249, %252 : vector<8x8xf32>
    %254 = math.exp %253 : vector<8x8xf32>
    %cst_105 = arith.constant dense<0.000000e+00> : vector<8xf32>
    %255 = vector.multi_reduction <add>, %254, %cst_105 [1] : vector<8x8xf32> to vector<8xf32>
    %256 = vector.shape_cast %255 : vector<8xf32> to vector<8x1xf32>
    %257 = vector.broadcast %256 : vector<8x1xf32> to vector<8x8xf32>
    %258 = arith.divf %254, %257 : vector<8x8xf32>
    %cst_106 = arith.constant dense<0.000000e+00> : vector<8x16xf32>
    %259 = tpu.matmul %258, %244, %cst_106 {dimension_numbers = #tpu.dot_dimension_numbers<[1], [0], [0], [1], [0, 0, 1, 1], [], []>} : vector<8x8xf32>, vector<8x16xf32>, vector<8x16xf32> -> vector<8x16xf32>
    %260 = tpu.concatenate %241, %259 in 1 : vector<8x16xf32>, vector<8x16xf32> -> vector<8x32xf32>
    %261 = vector.extract_strided_slice %33 {offsets = [1, 0], sizes = [1, 8], strides = [1, 1]} : vector<2x8xf32> to vector<1x8xf32>
    %262 = vector.extract_strided_slice %222 {offsets = [8, 0], sizes = [8, 16], strides = [1, 1]} : vector<16x96xf32> to vector<8x16xf32>
    %263 = vector.extract_strided_slice %222 {offsets = [8, 32], sizes = [8, 16], strides = [1, 1]} : vector<16x96xf32> to vector<8x16xf32>
    %264 = vector.extract_strided_slice %222 {offsets = [8, 64], sizes = [8, 16], strides = [1, 1]} : vector<16x96xf32> to vector<8x16xf32>
    %cst_107 = arith.constant dense<0.000000e+00> : vector<8x8xf32>
    %265 = tpu.matmul %262, %263, %cst_107 {dimension_numbers = #tpu.dot_dimension_numbers<[1], [1], [0], [0], [0, 0, 1, 0], [], []>} : vector<8x16xf32>, vector<8x16xf32>, vector<8x8xf32> -> vector<8x8xf32>
    %cst_108 = arith.constant 2.500000e-01 : f32
    %266 = vector.broadcast %cst_108 : f32 to vector<8x8xf32>
    %267 = arith.mulf %265, %266 : vector<8x8xf32>
    %268 = vector.broadcast %261 : vector<1x8xf32> to vector<8x8xf32>
    %269 = arith.addf %267, %268 : vector<8x8xf32>
    %cst_109 = arith.constant dense<0xFF800000> : vector<8xf32>
    %270 = vector.multi_reduction <maximumf>, %269, %cst_109 [1] : vector<8x8xf32> to vector<8xf32>
    %271 = vector.shape_cast %270 : vector<8xf32> to vector<8x1xf32>
    %272 = vector.broadcast %271 : vector<8x1xf32> to vector<8x8xf32>
    %273 = arith.subf %269, %272 : vector<8x8xf32>
    %274 = math.exp %273 : vector<8x8xf32>
    %cst_110 = arith.constant dense<0.000000e+00> : vector<8xf32>
    %275 = vector.multi_reduction <add>, %274, %cst_110 [1] : vector<8x8xf32> to vector<8xf32>
    %276 = vector.shape_cast %275 : vector<8xf32> to vector<8x1xf32>
    %277 = vector.broadcast %276 : vector<8x1xf32> to vector<8x8xf32>
    %278 = arith.divf %274, %277 : vector<8x8xf32>
    %cst_111 = arith.constant dense<0.000000e+00> : vector<8x16xf32>
    %279 = tpu.matmul %278, %264, %cst_111 {dimension_numbers = #tpu.dot_dimension_numbers<[1], [0], [0], [1], [0, 0, 1, 1], [], []>} : vector<8x8xf32>, vector<8x16xf32>, vector<8x16xf32> -> vector<8x16xf32>
    %280 = vector.extract_strided_slice %222 {offsets = [8, 16], sizes = [8, 16], strides = [1, 1]} : vector<16x96xf32> to vector<8x16xf32>
    %281 = vector.extract_strided_slice %222 {offsets = [8, 48], sizes = [8, 16], strides = [1, 1]} : vector<16x96xf32> to vector<8x16xf32>
    %282 = vector.extract_strided_slice %222 {offsets = [8, 80], sizes = [8, 16], strides = [1, 1]} : vector<16x96xf32> to vector<8x16xf32>
    %cst_112 = arith.constant dense<0.000000e+00> : vector<8x8xf32>
    %283 = tpu.matmul %280, %281, %cst_112 {dimension_numbers = #tpu.dot_dimension_numbers<[1], [1], [0], [0], [0, 0, 1, 0], [], []>} : vector<8x16xf32>, vector<8x16xf32>, vector<8x8xf32> -> vector<8x8xf32>
    %cst_113 = arith.constant 2.500000e-01 : f32
    %284 = vector.broadcast %cst_113 : f32 to vector<8x8xf32>
    %285 = arith.mulf %283, %284 : vector<8x8xf32>
    %286 = vector.broadcast %261 : vector<1x8xf32> to vector<8x8xf32>
    %287 = arith.addf %285, %286 : vector<8x8xf32>
    %cst_114 = arith.constant dense<0xFF800000> : vector<8xf32>
    %288 = vector.multi_reduction <maximumf>, %287, %cst_114 [1] : vector<8x8xf32> to vector<8xf32>
    %289 = vector.shape_cast %288 : vector<8xf32> to vector<8x1xf32>
    %290 = vector.broadcast %289 : vector<8x1xf32> to vector<8x8xf32>
    %291 = arith.subf %287, %290 : vector<8x8xf32>
    %292 = math.exp %291 : vector<8x8xf32>
    %cst_115 = arith.constant dense<0.000000e+00> : vector<8xf32>
    %293 = vector.multi_reduction <add>, %292, %cst_115 [1] : vector<8x8xf32> to vector<8xf32>
    %294 = vector.shape_cast %293 : vector<8xf32> to vector<8x1xf32>
    %295 = vector.broadcast %294 : vector<8x1xf32> to vector<8x8xf32>
    %296 = arith.divf %292, %295 : vector<8x8xf32>
    %cst_116 = arith.constant dense<0.000000e+00> : vector<8x16xf32>
    %297 = tpu.matmul %296, %282, %cst_116 {dimension_numbers = #tpu.dot_dimension_numbers<[1], [0], [0], [1], [0, 0, 1, 1], [], []>} : vector<8x8xf32>, vector<8x16xf32>, vector<8x16xf32> -> vector<8x16xf32>
    %298 = tpu.concatenate %279, %297 in 1 : vector<8x16xf32>, vector<8x16xf32> -> vector<8x32xf32>
    %299 = tpu.concatenate %260, %298 in 0 : vector<8x32xf32>, vector<8x32xf32> -> vector<16x32xf32>
    %c1_117 = arith.constant 1 : index
    %c0_118 = arith.constant 0 : index
    %c0_119 = arith.constant 0 : index
    %300 = vector.load %arg9[%c1_117, %c0_118, %c0_119] : memref<2x32x32xf32, #tpu.memory_space<vmem>>, vector<1x32x32xf32>
    %301 = vector.shape_cast %300 : vector<1x32x32xf32> to vector<32x32xf32>
    %302 = arith.truncf %299 : vector<16x32xf32> to vector<16x32xbf16>
    %303 = arith.truncf %301 : vector<32x32xf32> to vector<32x32xbf16>
    %cst_120 = arith.constant dense<0.000000e+00> : vector<16x32xf32>
    %304 = tpu.matmul %302, %303, %cst_120 {dimension_numbers = #tpu.dot_dimension_numbers<[1], [0], [0], [1], [0, 0, 1, 1], [], []>} : vector<16x32xbf16>, vector<32x32xbf16>, vector<16x32xf32> -> vector<16x32xf32>
    %c1_121 = arith.constant 1 : index
    %c0_122 = arith.constant 0 : index
    %c0_123 = arith.constant 0 : index
    %305 = vector.load %arg10[%c1_121, %c0_122, %c0_123] : memref<2x1x32xf32, #tpu.memory_space<vmem>>, vector<1x1x32xf32>
    %306 = vector.shape_cast %305 : vector<1x1x32xf32> to vector<1x32xf32>
    %307 = vector.broadcast %306 : vector<1x32xf32> to vector<16x32xf32>
    %308 = arith.addf %304, %307 : vector<16x32xf32>
    %309 = arith.addf %213, %308 : vector<16x32xf32>
    %c1_124 = arith.constant 1 : index
    %c0_125 = arith.constant 0 : index
    %c0_126 = arith.constant 0 : index
    %310 = vector.load %arg15[%c1_124, %c0_125, %c0_126] : memref<2x1x32xf32, #tpu.memory_space<vmem>>, vector<1x1x32xf32>
    %311 = vector.shape_cast %310 : vector<1x1x32xf32> to vector<1x32xf32>
    %c1_127 = arith.constant 1 : index
    %c0_128 = arith.constant 0 : index
    %c0_129 = arith.constant 0 : index
    %312 = vector.load %arg16[%c1_127, %c0_128, %c0_129] : memref<2x1x32xf32, #tpu.memory_space<vmem>>, vector<1x1x32xf32>
    %313 = vector.shape_cast %312 : vector<1x1x32xf32> to vector<1x32xf32>
    %cst_130 = arith.constant dense<0.000000e+00> : vector<16xf32>
    %314 = vector.multi_reduction <add>, %309, %cst_130 [1] : vector<16x32xf32> to vector<16xf32>
    %315 = vector.shape_cast %314 : vector<16xf32> to vector<16x1xf32>
    %cst_131 = arith.constant 3.200000e+01 : f32
    %316 = vector.broadcast %cst_131 : f32 to vector<16x1xf32>
    %317 = arith.divf %315, %316 : vector<16x1xf32>
    %318 = vector.broadcast %317 : vector<16x1xf32> to vector<16x32xf32>
    %319 = arith.subf %309, %318 : vector<16x32xf32>
    %320 = arith.mulf %319, %319 : vector<16x32xf32>
    %cst_132 = arith.constant dense<0.000000e+00> : vector<16xf32>
    %321 = vector.multi_reduction <add>, %320, %cst_132 [1] : vector<16x32xf32> to vector<16xf32>
    %322 = vector.shape_cast %321 : vector<16xf32> to vector<16x1xf32>
    %cst_133 = arith.constant 3.200000e+01 : f32
    %323 = vector.broadcast %cst_133 : f32 to vector<16x1xf32>
    %324 = arith.divf %322, %323 : vector<16x1xf32>
    %325 = vector.broadcast %317 : vector<16x1xf32> to vector<16x32xf32>
    %326 = arith.subf %309, %325 : vector<16x32xf32>
    %cst_134 = arith.constant 9.99999996E-13 : f32
    %327 = vector.broadcast %cst_134 : f32 to vector<16x1xf32>
    %328 = arith.addf %324, %327 : vector<16x1xf32>
    %329 = math.rsqrt %328 : vector<16x1xf32>
    %330 = vector.broadcast %329 : vector<16x1xf32> to vector<16x32xf32>
    %331 = arith.mulf %326, %330 : vector<16x32xf32>
    %332 = vector.broadcast %311 : vector<1x32xf32> to vector<16x32xf32>
    %333 = arith.mulf %331, %332 : vector<16x32xf32>
    %334 = vector.broadcast %313 : vector<1x32xf32> to vector<16x32xf32>
    %335 = arith.addf %333, %334 : vector<16x32xf32>
    %c1_135 = arith.constant 1 : index
    %c0_136 = arith.constant 0 : index
    %c0_137 = arith.constant 0 : index
    %336 = vector.load %arg11[%c1_135, %c0_136, %c0_137] : memref<2x32x64xf32, #tpu.memory_space<vmem>>, vector<1x32x64xf32>
    %337 = vector.shape_cast %336 : vector<1x32x64xf32> to vector<32x64xf32>
    %338 = arith.truncf %335 : vector<16x32xf32> to vector<16x32xbf16>
    %339 = arith.truncf %337 : vector<32x64xf32> to vector<32x64xbf16>
    %cst_138 = arith.constant dense<0.000000e+00> : vector<16x64xf32>
    %340 = tpu.matmul %338, %339, %cst_138 {dimension_numbers = #tpu.dot_dimension_numbers<[1], [0], [0], [1], [0, 0, 1, 1], [], []>} : vector<16x32xbf16>, vector<32x64xbf16>, vector<16x64xf32> -> vector<16x64xf32>
    %c1_139 = arith.constant 1 : index
    %c0_140 = arith.constant 0 : index
    %c0_141 = arith.constant 0 : index
    %341 = vector.load %arg12[%c1_139, %c0_140, %c0_141] : memref<2x1x64xf32, #tpu.memory_space<vmem>>, vector<1x1x64xf32>
    %342 = vector.shape_cast %341 : vector<1x1x64xf32> to vector<1x64xf32>
    %343 = vector.broadcast %342 : vector<1x64xf32> to vector<16x64xf32>
    %344 = arith.addf %340, %343 : vector<16x64xf32>
    %345 = arith.mulf %344, %344 : vector<16x64xf32>
    %346 = arith.mulf %344, %345 : vector<16x64xf32>
    %cst_142 = arith.constant 4.471500e-02 : f32
    %347 = vector.broadcast %cst_142 : f32 to vector<16x64xf32>
    %348 = arith.mulf %347, %346 : vector<16x64xf32>
    %349 = arith.addf %344, %348 : vector<16x64xf32>
    %cst_143 = arith.constant 0.797884583 : f32
    %350 = vector.broadcast %cst_143 : f32 to vector<16x64xf32>
    %351 = arith.mulf %350, %349 : vector<16x64xf32>
    %352 = math.tanh %351 : vector<16x64xf32>
    %cst_144 = arith.constant 1.000000e+00 : f32
    %353 = vector.broadcast %cst_144 : f32 to vector<16x64xf32>
    %354 = arith.addf %353, %352 : vector<16x64xf32>
    %cst_145 = arith.constant 5.000000e-01 : f32
    %355 = vector.broadcast %cst_145 : f32 to vector<16x64xf32>
    %356 = arith.mulf %355, %354 : vector<16x64xf32>
    %357 = arith.mulf %344, %356 : vector<16x64xf32>
    %c1_146 = arith.constant 1 : index
    %c0_147 = arith.constant 0 : index
    %c0_148 = arith.constant 0 : index
    %358 = vector.load %arg13[%c1_146, %c0_147, %c0_148] : memref<2x64x32xf32, #tpu.memory_space<vmem>>, vector<1x64x32xf32>
    %359 = vector.shape_cast %358 : vector<1x64x32xf32> to vector<64x32xf32>
    %360 = arith.truncf %357 : vector<16x64xf32> to vector<16x64xbf16>
    %361 = arith.truncf %359 : vector<64x32xf32> to vector<64x32xbf16>
    %cst_149 = arith.constant dense<0.000000e+00> : vector<16x32xf32>
    %362 = tpu.matmul %360, %361, %cst_149 {dimension_numbers = #tpu.dot_dimension_numbers<[1], [0], [0], [1], [0, 0, 1, 1], [], []>} : vector<16x64xbf16>, vector<64x32xbf16>, vector<16x32xf32> -> vector<16x32xf32>
    %c1_150 = arith.constant 1 : index
    %c0_151 = arith.constant 0 : index
    %c0_152 = arith.constant 0 : index
    %363 = vector.load %arg14[%c1_150, %c0_151, %c0_152] : memref<2x1x32xf32, #tpu.memory_space<vmem>>, vector<1x1x32xf32>
    %364 = vector.shape_cast %363 : vector<1x1x32xf32> to vector<1x32xf32>
    %365 = vector.broadcast %364 : vector<1x32xf32> to vector<16x32xf32>
    %366 = arith.addf %362, %365 : vector<16x32xf32>
    %367 = arith.addf %335, %366 : vector<16x32xf32>
    %c1_153 = arith.constant 1 : index
    %c0_154 = arith.constant 0 : index
    %c0_155 = arith.constant 0 : index
    %368 = vector.load %arg17[%c1_153, %c0_154, %c0_155] : memref<2x1x32xf32, #tpu.memory_space<vmem>>, vector<1x1x32xf32>
    %369 = vector.shape_cast %368 : vector<1x1x32xf32> to vector<1x32xf32>
    %c1_156 = arith.constant 1 : index
    %c0_157 = arith.constant 0 : index
    %c0_158 = arith.constant 0 : index
    %370 = vector.load %arg18[%c1_156, %c0_157, %c0_158] : memref<2x1x32xf32, #tpu.memory_space<vmem>>, vector<1x1x32xf32>
    %371 = vector.shape_cast %370 : vector<1x1x32xf32> to vector<1x32xf32>
    %cst_159 = arith.constant dense<0.000000e+00> : vector<16xf32>
    %372 = vector.multi_reduction <add>, %367, %cst_159 [1] : vector<16x32xf32> to vector<16xf32>
    %373 = vector.shape_cast %372 : vector<16xf32> to vector<16x1xf32>
    %cst_160 = arith.constant 3.200000e+01 : f32
    %374 = vector.broadcast %cst_160 : f32 to vector<16x1xf32>
    %375 = arith.divf %373, %374 : vector<16x1xf32>
    %376 = vector.broadcast %375 : vector<16x1xf32> to vector<16x32xf32>
    %377 = arith.subf %367, %376 : vector<16x32xf32>
    %378 = arith.mulf %377, %377 : vector<16x32xf32>
    %cst_161 = arith.constant dense<0.000000e+00> : vector<16xf32>
    %379 = vector.multi_reduction <add>, %378, %cst_161 [1] : vector<16x32xf32> to vector<16xf32>
    %380 = vector.shape_cast %379 : vector<16xf32> to vector<16x1xf32>
    %cst_162 = arith.constant 3.200000e+01 : f32
    %381 = vector.broadcast %cst_162 : f32 to vector<16x1xf32>
    %382 = arith.divf %380, %381 : vector<16x1xf32>
    %383 = vector.broadcast %375 : vector<16x1xf32> to vector<16x32xf32>
    %384 = arith.subf %367, %383 : vector<16x32xf32>
    %cst_163 = arith.constant 9.99999996E-13 : f32
    %385 = vector.broadcast %cst_163 : f32 to vector<16x1xf32>
    %386 = arith.addf %382, %385 : vector<16x1xf32>
    %387 = math.rsqrt %386 : vector<16x1xf32>
    %388 = vector.broadcast %387 : vector<16x1xf32> to vector<16x32xf32>
    %389 = arith.mulf %384, %388 : vector<16x32xf32>
    %390 = vector.broadcast %369 : vector<1x32xf32> to vector<16x32xf32>
    %391 = arith.mulf %389, %390 : vector<16x32xf32>
    %392 = vector.broadcast %371 : vector<1x32xf32> to vector<16x32xf32>
    %393 = arith.addf %391, %392 : vector<16x32xf32>
    %c0_164 = arith.constant 0 : index
    %c0_165 = arith.constant 0 : index
    %394 = vector.load %arg19[%c0_164, %c0_165] : memref<32x5xf32, #tpu.memory_space<vmem>>, vector<32x5xf32>
    %cst_166 = arith.constant dense<0.000000e+00> : vector<16x5xf32>
    %395 = tpu.matmul %393, %394, %cst_166 {dimension_numbers = #tpu.dot_dimension_numbers<[1], [0], [0], [1], [0, 0, 1, 1], [], []>} : vector<16x32xf32>, vector<32x5xf32>, vector<16x5xf32> -> vector<16x5xf32>
    %c0_167 = arith.constant 0 : index
    %c0_168 = arith.constant 0 : index
    %396 = vector.load %arg20[%c0_167, %c0_168] : memref<1x5xf32, #tpu.memory_space<vmem>>, vector<1x5xf32>
    %397 = vector.broadcast %396 : vector<1x5xf32> to vector<16x5xf32>
    %398 = arith.addf %395, %397 : vector<16x5xf32>
    %cst_169 = arith.constant dense<0xFF800000> : vector<16xf32>
    %399 = vector.multi_reduction <maximumf>, %398, %cst_169 [1] : vector<16x5xf32> to vector<16xf32>
    %400 = vector.shape_cast %399 : vector<16xf32> to vector<16x1xf32>
    %401 = vector.broadcast %400 : vector<16x1xf32> to vector<16x5xf32>
    %402 = arith.subf %398, %401 : vector<16x5xf32>
    %403 = math.exp %402 : vector<16x5xf32>
    %cst_170 = arith.constant dense<0.000000e+00> : vector<16xf32>
    %404 = vector.multi_reduction <add>, %403, %cst_170 [1] : vector<16x5xf32> to vector<16xf32>
    %405 = vector.shape_cast %404 : vector<16xf32> to vector<16x1xf32>
    %406 = math.log %405 : vector<16x1xf32>
    %407 = arith.addf %406, %400 : vector<16x1xf32>
    %408 = tpu.iota {dimensions = array<i32: 1>} : vector<16x5xi32>
    %c0_171 = arith.constant 0 : index
    %c0_172 = arith.constant 0 : index
    %409 = vector.load %arg21[%c0_171, %c0_172] : memref<16x1xi32, #tpu.memory_space<vmem>>, vector<16x1xi32>
    %410 = vector.broadcast %409 : vector<16x1xi32> to vector<16x5xi32>
    %411 = arith.cmpi eq, %408, %410 : vector<16x5xi32>
    %cst_173 = arith.constant 0.000000e+00 : f32
    %412 = vector.broadcast %cst_173 : f32 to vector<16x5xf32>
    %413 = arith.select %411, %398, %412 : vector<16x5xi1>, vector<16x5xf32>
    %cst_174 = arith.constant dense<0.000000e+00> : vector<16xf32>
    %414 = vector.multi_reduction <add>, %413, %cst_174 [1] : vector<16x5xf32> to vector<16xf32>
    %415 = vector.shape_cast %414 : vector<16xf32> to vector<16x1xf32>
    %416 = arith.subf %407, %415 : vector<16x1xf32>
    %c0_175 = arith.constant 0 : index
    %c0_176 = arith.constant 0 : index
    %417 = vector.load %arg22[%c0_175, %c0_176] : memref<16x1xi32, #tpu.memory_space<vmem>>, vector<16x1xi32>
    %c1_i32 = arith.constant 1 : i32
    %418 = vector.broadcast %c1_i32 : i32 to vector<16x1xi32>
    %419 = arith.cmpi eq, %417, %418 : vector<16x1xi32>
    %c0_177 = arith.constant 0 : index
    %c0_178 = arith.constant 0 : index
    %420 = vector.load %arg23[%c0_177, %c0_178] : memref<16x1xi32, #tpu.memory_space<vmem>>, vector<16x1xi32>
    %c0_i32 = arith.constant 0 : i32
    %421 = vector.broadcast %c0_i32 : i32 to vector<16x1xi32>
    %422 = arith.cmpi eq, %420, %421 : vector<16x1xi32>
    %423 = arith.andi %422, %419 : vector<16x1xi1>
    %cst_179 = arith.constant 1.000000e+00 : f32
    %cst_180 = arith.constant 0.000000e+00 : f32
    %424 = vector.broadcast %cst_179 : f32 to vector<16x1xf32>
    %425 = vector.broadcast %cst_180 : f32 to vector<16x1xf32>
    %426 = arith.select %423, %424, %425 : vector<16x1xi1>, vector<16x1xf32>
    %c1_i32_181 = arith.constant 1 : i32
    %427 = vector.broadcast %c1_i32_181 : i32 to vector<16x1xi32>
    %428 = arith.cmpi eq, %420, %427 : vector<16x1xi32>
    %429 = arith.andi %428, %419 : vector<16x1xi1>
    %cst_182 = arith.constant 1.000000e+00 : f32
    %cst_183 = arith.constant 0.000000e+00 : f32
    %430 = vector.broadcast %cst_182 : f32 to vector<16x1xf32>
    %431 = vector.broadcast %cst_183 : f32 to vector<16x1xf32>
    %432 = arith.select %429, %430, %431 : vector<16x1xi1>, vector<16x1xf32>
    %433 = arith.mulf %416, %426 : vector<16x1xf32>
    %434 = arith.mulf %416, %432 : vector<16x1xf32>
    %435 = tpu.concatenate %433, %426, %434, %432 in 1 : vector<16x1xf32>, vector<16x1xf32>, vector<16x1xf32>, vector<16x1xf32> -> vector<16x4xf32>
    %cst_184 = arith.constant dense<0.000000e+00> : vector<4xf32>
    %436 = vector.multi_reduction <add>, %435, %cst_184 [0] : vector<16x4xf32> to vector<4xf32>
    %437 = vector.shape_cast %436 : vector<4xf32> to vector<1x4xf32>
    %c0_185 = arith.constant 0 : index
    %c0_186 = arith.constant 0 : index
    %438 = vector.load %arg24[%c0_185, %c0_186] : memref<1x4xf32, #tpu.memory_space<vmem>>, vector<1x4xf32>
    tpu.vector_store %arg24[%c0_185, %c0_186], %437 {strides = array<i32>} : memref<1x4xf32, #tpu.memory_space<vmem>>, vector<1x4xf32>,
    return
  }
  func.func @transform_0(%arg0: i32) -> (i32, i32) {
    %c0_i32 = arith.constant 0 : i32
    %c0_i32_0 = arith.constant 0 : i32
    %c0_i32_1 = arith.constant 0 : i32
    return %c0_i32, %c0_i32_0 : i32, i32
  }
  func.func @transform_1(%arg0: i32) -> (i32, i32) {
    %c0_i32 = arith.constant 0 : i32
    %c0_i32_0 = arith.constant 0 : i32
    %c0_i32_1 = arith.constant 0 : i32
    return %c0_i32, %c0_i32_0 : i32, i32
  }
  func.func @transform_2(%arg0: i32) -> (i32, i32) {
    %c0_i32 = arith.constant 0 : i32
    %c0_i32_0 = arith.constant 0 : i32
    %c0_i32_1 = arith.constant 0 : i32
    return %c0_i32, %c0_i32_0 : i32, i32
  }
  func.func @transform_3(%arg0: i32) -> (i32, i32) {
    %c0_i32 = arith.constant 0 : i32
    %c0_i32_0 = arith.constant 0 : i32
    %c0_i32_1 = arith.constant 0 : i32
    return %c0_i32, %c0_i32_0 : i32, i32
  }
  func.func @transform_4(%arg0: i32) -> (i32, i32) {
    %c0_i32 = arith.constant 0 : i32
    %c0_i32_0 = arith.constant 0 : i32
    %c0_i32_1 = arith.constant 0 : i32
    return %c0_i32, %c0_i32_0 : i32, i32
  }
  func.func @transform_5(%arg0: i32) -> (i32, i32) {
    %c0_i32 = arith.constant 0 : i32
    %c0_i32_0 = arith.constant 0 : i32
    %c0_i32_1 = arith.constant 0 : i32
    return %c0_i32, %c0_i32_0 : i32, i32
  }
  func.func @transform_6(%arg0: i32) -> (i32, i32, i32) {
    %c0_i32 = arith.constant 0 : i32
    %c0_i32_0 = arith.constant 0 : i32
    %c0_i32_1 = arith.constant 0 : i32
    %c0_i32_2 = arith.constant 0 : i32
    return %c0_i32, %c0_i32_0, %c0_i32_1 : i32, i32, i32
  }
  func.func @transform_7(%arg0: i32) -> (i32, i32, i32) {
    %c0_i32 = arith.constant 0 : i32
    %c0_i32_0 = arith.constant 0 : i32
    %c0_i32_1 = arith.constant 0 : i32
    %c0_i32_2 = arith.constant 0 : i32
    return %c0_i32, %c0_i32_0, %c0_i32_1 : i32, i32, i32
  }
  func.func @transform_8(%arg0: i32) -> (i32, i32, i32) {
    %c0_i32 = arith.constant 0 : i32
    %c0_i32_0 = arith.constant 0 : i32
    %c0_i32_1 = arith.constant 0 : i32
    %c0_i32_2 = arith.constant 0 : i32
    return %c0_i32, %c0_i32_0, %c0_i32_1 : i32, i32, i32
  }
  func.func @transform_9(%arg0: i32) -> (i32, i32, i32) {
    %c0_i32 = arith.constant 0 : i32
    %c0_i32_0 = arith.constant 0 : i32
    %c0_i32_1 = arith.constant 0 : i32
    %c0_i32_2 = arith.constant 0 : i32
    return %c0_i32, %c0_i32_0, %c0_i32_1 : i32, i32, i32
  }
  func.func @transform_10(%arg0: i32) -> (i32, i32, i32) {
    %c0_i32 = arith.constant 0 : i32
    %c0_i32_0 = arith.constant 0 : i32
    %c0_i32_1 = arith.constant 0 : i32
    %c0_i32_2 = arith.constant 0 : i32
    return %c0_i32, %c0_i32_0, %c0_i32_1 : i32, i32, i32
  }
  func.func @transform_11(%arg0: i32) -> (i32, i32, i32) {
    %c0_i32 = arith.constant 0 : i32
    %c0_i32_0 = arith.constant 0 : i32
    %c0_i32_1 = arith.constant 0 : i32
    %c0_i32_2 = arith.constant 0 : i32
    return %c0_i32, %c0_i32_0, %c0_i32_1 : i32, i32, i32
  }
  func.func @transform_12(%arg0: i32) -> (i32, i32, i32) {
    %c0_i32 = arith.constant 0 : i32
    %c0_i32_0 = arith.constant 0 : i32
    %c0_i32_1 = arith.constant 0 : i32
    %c0_i32_2 = arith.constant 0 : i32
    return %c0_i32, %c0_i32_0, %c0_i32_1 : i32, i32, i32
  }
  func.func @transform_13(%arg0: i32) -> (i32, i32, i32) {
    %c0_i32 = arith.constant 0 : i32
    %c0_i32_0 = arith.constant 0 : i32
    %c0_i32_1 = arith.constant 0 : i32
    %c0_i32_2 = arith.constant 0 : i32
    return %c0_i32, %c0_i32_0, %c0_i32_1 : i32, i32, i32
  }
  func.func @transform_14(%arg0: i32) -> (i32, i32, i32) {
    %c0_i32 = arith.constant 0 : i32
    %c0_i32_0 = arith.constant 0 : i32
    %c0_i32_1 = arith.constant 0 : i32
    %c0_i32_2 = arith.constant 0 : i32
    return %c0_i32, %c0_i32_0, %c0_i32_1 : i32, i32, i32
  }
  func.func @transform_15(%arg0: i32) -> (i32, i32, i32) {
    %c0_i32 = arith.constant 0 : i32
    %c0_i32_0 = arith.constant 0 : i32
    %c0_i32_1 = arith.constant 0 : i32
    %c0_i32_2 = arith.constant 0 : i32
    return %c0_i32, %c0_i32_0, %c0_i32_1 : i32, i32, i32
  }
  func.func @transform_16(%arg0: i32) -> (i32, i32, i32) {
    %c0_i32 = arith.constant 0 : i32
    %c0_i32_0 = arith.constant 0 : i32
    %c0_i32_1 = arith.constant 0 : i32
    %c0_i32_2 = arith.constant 0 : i32
    return %c0_i32, %c0_i32_0, %c0_i32_1 : i32, i32, i32
  }
  func.func @transform_17(%arg0: i32) -> (i32, i32, i32) {
    %c0_i32 = arith.constant 0 : i32
    %c0_i32_0 = arith.constant 0 : i32
    %c0_i32_1 = arith.constant 0 : i32
    %c0_i32_2 = arith.constant 0 : i32
    return %c0_i32, %c0_i32_0, %c0_i32_1 : i32, i32, i32
  }
  func.func @transform_18(%arg0: i32) -> (i32, i32) {
    %c0_i32 = arith.constant 0 : i32
    %c0_i32_0 = arith.constant 0 : i32
    %c0_i32_1 = arith.constant 0 : i32
    return %c0_i32, %c0_i32_0 : i32, i32
  }
  func.func @transform_19(%arg0: i32) -> (i32, i32) {
    %c0_i32 = arith.constant 0 : i32
    %c0_i32_0 = arith.constant 0 : i32
    %c0_i32_1 = arith.constant 0 : i32
    return %c0_i32, %c0_i32_0 : i32, i32
  }
  func.func @transform_20(%arg0: i32) -> (i32, i32) {
    %c0_i32 = arith.constant 0 : i32
    %c0_i32_0 = arith.constant 0 : i32
    %c0_i32_1 = arith.constant 0 : i32
    return %c0_i32, %c0_i32_0 : i32, i32
  }
  func.func @transform_21(%arg0: i32) -> (i32, i32) {
    %c0_i32 = arith.constant 0 : i32
    %c0_i32_0 = arith.constant 0 : i32
    %c0_i32_1 = arith.constant 0 : i32
    return %c0_i32, %c0_i32_0 : i32, i32
  }
  func.func @transform_22(%arg0: i32) -> (i32, i32) {
    %c0_i32 = arith.constant 0 : i32
    %c0_i32_0 = arith.constant 0 : i32
    %c0_i32_1 = arith.constant 0 : i32
    return %c0_i32, %c0_i32_0 : i32, i32
  }
  func.func @transform_23(%arg0: i32) -> (i32, i32) {
    %c0_i32 = arith.constant 0 : i32
    %c0_i32_0 = arith.constant 0 : i32
    %c0_i32_1 = arith.constant 0 : i32
    return %c0_i32, %c0_i32_0 : i32, i32
  }
}

</mosaic_0001>

<llo_original>
// kernel: _lambda_.1
$region0: #{_lambda_.1}
  #allocation0 [shape = 'u32[]', space=smem, size = 0x4, offset = 0x4, fixed_abs, tag = 'smem constant byte address 0x4 - core index']
  #allocation1 [shape = 'u32[144,128]{1,0:T(1,128)}', space=vmem, size = 0x12000, scoped, tag = 'internal scratch']
  %s0 = inlined_call_operand.vmem [shape: f32[16,32], index: 0, kind: input, shape index: {}]
  %s1 = inlined_call_operand.vmem [shape: f32[16,32], index: 1, kind: input, shape index: {}]
  %s2 = inlined_call_operand.vmem [shape: f32[16,32], index: 2, kind: input, shape index: {}]
  %s3 = inlined_call_operand.vmem [shape: f32[1,32], index: 3, kind: input, shape index: {}]
  %s4 = inlined_call_operand.vmem [shape: f32[1,32], index: 4, kind: input, shape index: {}]
  %s5 = inlined_call_operand.vmem [shape: f32[2,8], index: 5, kind: input, shape index: {}]
  %s6 = inlined_call_operand.vmem [shape: f32[2,32,96], index: 6, kind: input, shape index: {}]
  %s7 = inlined_call_operand.vmem [shape: f32[2,1,96], index: 7, kind: input, shape index: {}]
  %s8 = inlined_call_operand.vmem [shape: f32[2,32,32], index: 8, kind: input, shape index: {}]
  %s9 = inlined_call_operand.vmem [shape: f32[2,1,32], index: 9, kind: input, shape index: {}]
  %s10 = inlined_call_operand.vmem [shape: f32[2,32,64], index: 10, kind: input, shape index: {}]
  %s11 = inlined_call_operand.vmem [shape: f32[2,1,64], index: 11, kind: input, shape index: {}]
  %s12 = inlined_call_operand.vmem [shape: f32[2,64,32], index: 12, kind: input, shape index: {}]
  %s13 = inlined_call_operand.vmem [shape: f32[2,1,32], index: 13, kind: input, shape index: {}]
  %s14 = inlined_call_operand.vmem [shape: f32[2,1,32], index: 14, kind: input, shape index: {}]
  %s15 = inlined_call_operand.vmem [shape: f32[2,1,32], index: 15, kind: input, shape index: {}]
  %s16 = inlined_call_operand.vmem [shape: f32[2,1,32], index: 16, kind: input, shape index: {}]
  %s17 = inlined_call_operand.vmem [shape: f32[2,1,32], index: 17, kind: input, shape index: {}]
  %s18 = inlined_call_operand.vmem [shape: f32[32,5], index: 18, kind: input, shape index: {}]
  %s19 = inlined_call_operand.vmem [shape: f32[1,5], index: 19, kind: input, shape index: {}]
  %s20 = inlined_call_operand.vmem [shape: s32[16,1], index: 20, kind: input, shape index: {}]
  %s21 = inlined_call_operand.vmem [shape: s32[16,1], index: 21, kind: input, shape index: {}]
  %s22 = inlined_call_operand.vmem [shape: s32[16,1], index: 22, kind: input, shape index: {}]
  %s23 = inlined_call_operand.vmem [shape: f32[1,4], index: 23, kind: output, shape index: {}]
  %s24 = sld [smem:[#allocation0]]
  $region102: #{_lambda_.1} parent=0
    _
  %s26 = ssub.s32 1, %s24
  %s27 = scalar_select 0, %s26, %s24
  // Predicated region
  $region2: #{_lambda_.1} parent=0 // pred_check
    _
  $region3: #{_lambda_.1} parent=0 // pred_check_branch
    %29 = sbr.rel (0) target = $region5
  $region4: #{_lambda_.1} parent=0 // pred_region
    _
  $region5: #{_lambda_.1} parent=0 // pred_fallthru
    _
  // Predicated region
  $region6: #{_lambda_.1} parent=0 // pred_check
    _
  $region7: #{_lambda_.1} parent=0 // pred_check_branch
    %31 = sbr.rel (0) target = $region9
  $region8: #{_lambda_.1} parent=0 // pred_region
    _
  $region9: #{_lambda_.1} parent=0 // pred_fallthru
    _
  // Predicated region
  $region10: #{_lambda_.1} parent=0 // pred_check
    _
  $region11: #{_lambda_.1} parent=0 // pred_check_branch
    %33 = sbr.rel (0) target = $region13
  $region12: #{_lambda_.1} parent=0 // pred_region
    _
  $region13: #{_lambda_.1} parent=0 // pred_fallthru
    _
  // Predicated region
  $region14: #{_lambda_.1} parent=0 // pred_check
    _
  $region15: #{_lambda_.1} parent=0 // pred_check_branch
    %35 = sbr.rel (0) target = $region17
  $region16: #{_lambda_.1} parent=0 // pred_region
    _
  $region17: #{_lambda_.1} parent=0 // pred_fallthru
    _
  // Predicated region
  $region18: #{_lambda_.1} parent=0 // pred_check
    _
  $region19: #{_lambda_.1} parent=0 // pred_check_branch
    %37 = sbr.rel (0) target = $region21
  $region20: #{_lambda_.1} parent=0 // pred_region
    _
  $region21: #{_lambda_.1} parent=0 // pred_fallthru
    _
  // Predicated region
  $region22: #{_lambda_.1} parent=0 // pred_check
    _
  $region23: #{_lambda_.1} parent=0 // pred_check_branch
    %39 = sbr.rel (0) target = $region25
  $region24: #{_lambda_.1} parent=0 // pred_region
    _
  $region25: #{_lambda_.1} parent=0 // pred_fallthru
    _
  // Predicated region
  $region26: #{_lambda_.1} parent=0 // pred_check
    _
  $region27: #{_lambda_.1} parent=0 // pred_check_branch
    %41 = sbr.rel (0) target = $region29
  $region28: #{_lambda_.1} parent=0 // pred_region
    _
  $region29: #{_lambda_.1} parent=0 // pred_fallthru
    _
  // Predicated region
  $region30: #{_lambda_.1} parent=0 // pred_check
    _
  $region31: #{_lambda_.1} parent=0 // pred_check_branch
    %43 = sbr.rel (0) target = $region33
  $region32: #{_lambda_.1} parent=0 // pred_region
    _
  $region33: #{_lambda_.1} parent=0 // pred_fallthru
    _
  // Predicated region
  $region34: #{_lambda_.1} parent=0 // pred_check
    _
  $region35: #{_lambda_.1} parent=0 // pred_check_branch
    %45 = sbr.rel (0) target = $region37
  $region36: #{_lambda_.1} parent=0 // pred_region
    _
  $region37: #{_lambda_.1} parent=0 // pred_fallthru
    _
  // Predicated region
  $region38: #{_lambda_.1} parent=0 // pred_check
    _
  $region39: #{_lambda_.1} parent=0 // pred_check_branch
    %47 = sbr.rel (0) target = $region41
  $region40: #{_lambda_.1} parent=0 // pred_region
    _
  $region41: #{_lambda_.1} parent=0 // pred_fallthru
    _
  // Predicated region
  $region42: #{_lambda_.1} parent=0 // pred_check
    _
  $region43: #{_lambda_.1} parent=0 // pred_check_branch
    %49 = sbr.rel (0) target = $region45
  $region44: #{_lambda_.1} parent=0 // pred_region
    _
  $region45: #{_lambda_.1} parent=0 // pred_fallthru
    _
  // Predicated region
  $region46: #{_lambda_.1} parent=0 // pred_check
    _
  $region47: #{_lambda_.1} parent=0 // pred_check_branch
    %51 = sbr.rel (0) target = $region49
  $region48: #{_lambda_.1} parent=0 // pred_region
    _
  $region49: #{_lambda_.1} parent=0 // pred_fallthru
    _
  // Predicated region
  $region50: #{_lambda_.1} parent=0 // pred_check
    _
  $region51: #{_lambda_.1} parent=0 // pred_check_branch
    %53 = sbr.rel (0) target = $region53
  $region52: #{_lambda_.1} parent=0 // pred_region
    _
  $region53: #{_lambda_.1} parent=0 // pred_fallthru
    _
  // Predicated region
  $region54: #{_lambda_.1} parent=0 // pred_check
    _
  $region55: #{_lambda_.1} parent=0 // pred_check_branch
    %55 = sbr.rel (0) target = $region57
  $region56: #{_lambda_.1} parent=0 // pred_region
    _
  $region57: #{_lambda_.1} parent=0 // pred_fallthru
    _
  // Predicated region
  $region58: #{_lambda_.1} parent=0 // pred_check
    _
  $region59: #{_lambda_.1} parent=0 // pred_check_branch
    %57 = sbr.rel (0) target = $region61
  $region60: #{_lambda_.1} parent=0 // pred_region
    _
  $region61: #{_lambda_.1} parent=0 // pred_fallthru
    _
  // Predicated region
  $region62: #{_lambda_.1} parent=0 // pred_check
    _
  $region63: #{_lambda_.1} parent=0 // pred_check_branch
    %59 = sbr.rel (0) target = $region65
  $region64: #{_lambda_.1} parent=0 // pred_region
    _
  $region65: #{_lambda_.1} parent=0 // pred_fallthru
    _
  // Predicated region
  $region66: #{_lambda_.1} parent=0 // pred_check
    _
  $region67: #{_lambda_.1} parent=0 // pred_check_branch
    %61 = sbr.rel (0) target = $region69
  $region68: #{_lambda_.1} parent=0 // pred_region
    _
  $region69: #{_lambda_.1} parent=0 // pred_fallthru
    _
  // Predicated region
  $region70: #{_lambda_.1} parent=0 // pred_check
    _
  $region71: #{_lambda_.1} parent=0 // pred_check_branch
    %63 = sbr.rel (0) target = $region73
  $region72: #{_lambda_.1} parent=0 // pred_region
    _
  $region73: #{_lambda_.1} parent=0 // pred_fallthru
    _
  // Predicated region
  $region74: #{_lambda_.1} parent=0 // pred_check
    _
  $region75: #{_lambda_.1} parent=0 // pred_check_branch
    %65 = sbr.rel (0) target = $region77
  $region76: #{_lambda_.1} parent=0 // pred_region
    _
  $region77: #{_lambda_.1} parent=0 // pred_fallthru
    _
  // Predicated region
  $region78: #{_lambda_.1} parent=0 // pred_check
    _
  $region79: #{_lambda_.1} parent=0 // pred_check_branch
    %67 = sbr.rel (0) target = $region81
  $region80: #{_lambda_.1} parent=0 // pred_region
    _
  $region81: #{_lambda_.1} parent=0 // pred_fallthru
    _
  // Predicated region
  $region82: #{_lambda_.1} parent=0 // pred_check
    _
  $region83: #{_lambda_.1} parent=0 // pred_check_branch
    %69 = sbr.rel (0) target = $region85
  $region84: #{_lambda_.1} parent=0 // pred_region
    _
  $region85: #{_lambda_.1} parent=0 // pred_fallthru
    _
  // Predicated region
  $region86: #{_lambda_.1} parent=0 // pred_check
    _
  $region87: #{_lambda_.1} parent=0 // pred_check_branch
    %71 = sbr.rel (0) target = $region89
  $region88: #{_lambda_.1} parent=0 // pred_region
    _
  $region89: #{_lambda_.1} parent=0 // pred_fallthru
    _
  // Predicated region
  $region90: #{_lambda_.1} parent=0 // pred_check
    _
  $region91: #{_lambda_.1} parent=0 // pred_check_branch
    %73 = sbr.rel (0) target = $region93
  $region92: #{_lambda_.1} parent=0 // pred_region
    _
  $region93: #{_lambda_.1} parent=0 // pred_fallthru
    _
  %v75 = vld [vmem:[%s0] sm:$0xff]
  %v76 = vld [vmem:[%s0 + $0x8] sm:$0xff]
  %v77 = vld [vmem:[%s1] sm:$0xff]
  %v78 = vld [vmem:[%s1 + $0x8] sm:$0xff]
  %v79 = vadd.f32 %v75, %v77
  %v80 = vadd.f32 %v76, %v78
  %v81 = vld [vmem:[%s2] sm:$0xff]
  %v82 = vld [vmem:[%s2 + $0x8] sm:$0xff]
  %v83 = vadd.f32 %v79, %v81
  %v84 = vadd.f32 %v80, %v82
  %v85 = vld [vmem:[%s3] sm:$0x1]
  %v86 = vld [vmem:[%s4] sm:$0x1]
  %vm87 = vcmask 261120
  %v88 = vsel %vm87, %v83, 0.0
  %89 = vadd.xlane.f32.xlu0 %v88
  %v90 = vpop.xlane.xlu0 %89
  %v91 = vsel %vm87, %v84, 0.0
  %92 = vadd.xlane.f32.xlu0 %v91
  %v93 = vpop.xlane.xlu0 %92
  %v94 = vrcp.pop 32.0
  %v95 = vmul.f32 %v90, %v94
  %v96 = vmul.f32 %v93, %v94
  %v97 = vsub.f32 %v83, %v95
  %v98 = vsub.f32 %v84, %v96
  %v99 = vmul.f32 %v97, %v97
  %v100 = vmul.f32 %v98, %v98
  %v101 = vsel %vm87, %v99, 0.0
  %102 = vadd.xlane.f32.xlu0 %v101
  %v103 = vpop.xlane.xlu0 %102
  %v104 = vsel %vm87, %v100, 0.0
  %105 = vadd.xlane.f32.xlu0 %v104
  %v106 = vpop.xlane.xlu0 %105
  %v107 = vmul.f32 %v103, %v94
  %v108 = vmul.f32 %v106, %v94
  %v109 = vadd.f32 %v107, 1e-12
  %v110 = vadd.f32 %v108, 1e-12
  %v111 = vrsqrt.pop %v109
  %v112 = vrsqrt.pop %v110
  %v113 = vmul.f32 %v97, %v111
  %v114 = vmul.f32 %v98, %v112
  %v116 = vlaneseq
  %v117 = vshrl.u32 %v116, 7
  %v118 = vsub.s32 0, %v117
  %v119 = vrot.slane %v85, %v118
  %v121 = vmul.f32 %v113, %v119
  %v122 = vmul.f32 %v114, %v119
  %v124 = vlaneseq
  %v125 = vshrl.u32 %v124, 7
  %v126 = vsub.s32 0, %v125
  %v127 = vrot.slane %v86, %v126
  %v129 = vadd.f32 %v121, %v127
  %v130 = vadd.f32 %v122, %v127
  %v131 = vld [vmem:[%s5] sm:$0x3]
  %v132 = vsub.f32 1.0, %v131
  %v133 = vmul.f32 %v132, -1e+09
  %v134 = vld [vmem:[%s6] sm:$0xff]
  %v135 = vld [vmem:[%s6 + $0x8] sm:$0xff]
  %v136 = vld [vmem:[%s6 + $0x10] sm:$0xff]
  %v137 = vld [vmem:[%s6 + $0x18] sm:$0xff]
  %v138 = vpack.c.bf16 %v130, %v129
  %v139 = vpack.c.bf16 %v135, %v134
  %v140 = vpack.c.bf16 %v137, %v136
  %v141 = vld [vmem:[%s7] sm:$0x1]
  %v143 = vlaneseq
  %v144 = vshrl.u32 %v143, 7
  %v145 = vsub.s32 0, %v144
  %v146 = vrot.slane %v141, %v145
  %v149 = vsel %vm87, %v138, 0
  %151 = vmatprep.subr.bf16.mxu0 0
  %152 = vmatpush1.bf16.msra.mxu0 0
  %153 = vmatprep.subr.bf16.mxu0 0
  %154 = vmatpush1.bf16.msra.mxu0 0
  %155 = vmatprep.subr.bf16.mxu0 0
  %156 = vmatpush1.bf16.msra.mxu0 0
  %157 = vmatprep.subr.bf16.mxu0 0
  %158 = vmatpush1.bf16.msra.mxu0 0
  %159 = vmatprep.subr.bf16.mxu0 0
  %160 = vmatpush1.bf16.msra.mxu0 0
  %161 = vmatprep.subr.bf16.mxu0 0
  %162 = vmatpush1.bf16.msra.mxu0 0
  %163 = vmatprep.subr.bf16.mxu0 0
  %164 = vmatpush1.bf16.msra.mxu0 %v140
  %165 = vmatprep.subr.bf16.mxu0 0
  %166 = vmatpush1.bf16.msra.mxu0 %v139
  %167 = vmatprep.subr.bf16.mxu0 0
  %168 = vmatpush2.bf16.msra.mxu0 0
  %169 = vmatprep.subr.bf16.mxu0 0
  %170 = vmatpush2.bf16.msra.mxu0 0
  %171 = vmatprep.subr.bf16.mxu0 0
  %172 = vmatpush2.bf16.msra.mxu0 0
  %173 = vmatprep.subr.bf16.mxu0 0
  %174 = vmatpush2.bf16.msra.mxu0 0
  %175 = vmatprep.subr.bf16.mxu0 0
  %176 = vmatpush2.bf16.msra.mxu0 0
  %177 = vmatprep.subr.bf16.mxu0 0
  %178 = vmatpush2.bf16.msra.mxu0 0
  %179 = vmatprep.subr.bf16.mxu0 0
  %180 = vmatpush2.bf16.msra.mxu0 0
  %181 = vmatprep.subr.bf16.mxu0 0
  %182 = vmatpush2.bf16.msra.mxu0 0
  %183 = vmatprep.mubr.bf16.mxu0 0
  %184 = vmatmul.mubr.bf16.gmra.mxu0 %v149
  %v185 = vpop.f32.mrf.mxu0
  %v186 = vadd.f32 %v146, %v185
  %v187 = vpop.f32.mrf.mxu0
  %v188 = vpop.f32.mrf.mxu0
  %v189 = vadd.f32 %v146, %v188
  %v190 = vpop.f32.mrf.mxu0
  %191 = vdwg.mxu0
  %193 = vrot.lane.b32.xlu0 %v186, 96
  %v194 = vpop.permute.xlu0 %193
  %vm195 = vcmask 130048
  %v196 = vsel %vm195, %v186, 0
  %v198 = vsel %vm195, %v194, 0
  %200 = vmatprep.subr.mxu0 0.0
  %201 = vmatpush1.xpose.msra.mxu0 0.0
  %202 = vmatprep.subr.mxu0 0.0
  %203 = vmatpush1.xpose.msra.mxu0 0.0
  %204 = vmatprep.subr.mxu0 0.0
  %205 = vmatpush1.xpose.msra.mxu0 0.0
  %206 = vmatprep.subr.mxu0 0.0
  %207 = vmatpush1.xpose.msra.mxu0 0.0
  %208 = vmatprep.subr.mxu0 0.0
  %209 = vmatpush1.xpose.msra.mxu0 0.0
  %210 = vmatprep.subr.mxu0 0.0
  %211 = vmatpush1.xpose.msra.mxu0 0.0
  %212 = vmatprep.subr.mxu0 0.0
  %213 = vmatpush1.xpose.msra.mxu0 0.0
  %214 = vmatprep.subr.mxu0 0.0
  %215 = vmatpush1.xpose.msra.mxu0 0.0
  %216 = vmatprep.subr.mxu0 0.0
  %217 = vmatpush1.xpose.msra.mxu0 0.0
  %218 = vmatprep.subr.mxu0 0.0
  %219 = vmatpush1.xpose.msra.mxu0 0.0
  %220 = vmatprep.subr.mxu0 0.0
  %221 = vmatpush1.xpose.msra.mxu0 0.0
  %222 = vmatprep.subr.mxu0 0.0
  %223 = vmatpush1.xpose.msra.mxu0 0.0
  %224 = vmatprep.subr.mxu0 0.0
  %225 = vmatpush1.xpose.msra.mxu0 0.0
  %226 = vmatprep.subr.mxu0 0.0
  %227 = vmatpush1.xpose.msra.mxu0 0.0
  %228 = vmatprep.subr.mxu0 0.0
  %229 = vmatpush1.xpose.msra.mxu0 0.0
  %230 = vmatprep.subr.mxu0 0.0
  %231 = vmatpush1.xpose.msra.mxu0 %v198
  %232 = vmatprep.subr.mxu0 0.0
  %233 = vmatpush2.xpose.msra.mxu0 0.0
  %234 = vmatprep.subr.mxu0 0.0
  %235 = vmatpush2.xpose.msra.mxu0 0.0
  %236 = vmatprep.subr.mxu0 0.0
  %237 = vmatpush2.xpose.msra.mxu0 0.0
  %238 = vmatprep.subr.mxu0 0.0
  %239 = vmatpush2.xpose.msra.mxu0 0.0
  %240 = vmatprep.subr.mxu0 0.0
  %241 = vmatpush2.xpose.msra.mxu0 0.0
  %242 = vmatprep.subr.mxu0 0.0
  %243 = vmatpush2.xpose.msra.mxu0 0.0
  %244 = vmatprep.subr.mxu0 0.0
  %245 = vmatpush2.xpose.msra.mxu0 0.0
  %246 = vmatprep.subr.mxu0 0.0
  %247 = vmatpush2.xpose.msra.mxu0 0.0
  %248 = vmatprep.subr.mxu0 0.0
  %249 = vmatpush2.xpose.msra.mxu0 0.0
  %250 = vmatprep.subr.mxu0 0.0
  %251 = vmatpush2.xpose.msra.mxu0 0.0
  %252 = vmatprep.subr.mxu0 0.0
  %253 = vmatpush2.xpose.msra.mxu0 0.0
  %254 = vmatprep.subr.mxu0 0.0
  %255 = vmatpush2.xpose.msra.mxu0 0.0
  %256 = vmatprep.subr.mxu0 0.0
  %257 = vmatpush2.xpose.msra.mxu0 0.0
  %258 = vmatprep.subr.mxu0 0.0
  %259 = vmatpush2.xpose.msra.mxu0 0.0
  %260 = vmatprep.subr.mxu0 0.0
  %261 = vmatpush2.xpose.msra.mxu0 0.0
  %262 = vmatprep.subr.mxu0 0.0
  %263 = vmatpush2.xpose.msra.mxu0 0.0
  %264 = vmatprep.mubr.f32.mxu0 0.0
  %265 = vmatmul.mubr.f32.gmra.mxu0 %v196
  %v266 = vpop.f32.mrf.mxu0
  %v267 = vadd.f32 0.0, %v266
  %v268 = vpop.f32.mrf.mxu0
  %269 = vdwg.mxu0
  %v270 = vmul.f32 %v267, 0.25
  %v271 = vlaneseq
  %v272 = vshrl.u32 %v271, 7
  %v273 = vsub.s32 0, %v272
  %v274 = vrot.slane %v133, %v273
  %v275 = vadd.f32 %v270, %v274
  %vm276 = vcmask 64512
  %v277 = vsel %vm276, %v275, -inf
  %278 = vmax.xlane.f32.xlu0 %v277
  %v279 = vpop.xlane.xlu0 %278
  %v280 = vsub.f32 %v275, %v279
  %v281 = vmul.f32 %v280, 1.442695
  %v282 = vpow.pop %v281
  %v283 = vsel %vm276, %v282, 0.0
  %284 = vadd.xlane.f32.xlu0 %v283
  %v285 = vpop.xlane.xlu0 %284
  %v286 = vrcp.pop %v285
  %v287 = vmul.f32 %v282, %v286
  %288 = vrot.lane.b32.xlu0 %v186, 64
  %v289 = vpop.permute.xlu0 %288
  %v292 = vsel %vm276, %v287, 0
  %294 = vmatprep.subr.mxu0 0.0
  %295 = vmatpush1.msra.mxu0 0.0
  %296 = vmatprep.subr.mxu0 0.0
  %297 = vmatpush1.msra.mxu0 0.0
  %298 = vmatprep.subr.mxu0 0.0
  %299 = vmatpush1.msra.mxu0 0.0
  %300 = vmatprep.subr.mxu0 0.0
  %301 = vmatpush1.msra.mxu0 0.0
  %302 = vmatprep.subr.mxu0 0.0
  %303 = vmatpush1.msra.mxu0 0.0
  %304 = vmatprep.subr.mxu0 0.0
  %305 = vmatpush1.msra.mxu0 0.0
  %306 = vmatprep.subr.mxu0 0.0
  %307 = vmatpush1.msra.mxu0 0.0
  %308 = vmatprep.subr.mxu0 0.0
  %309 = vmatpush1.msra.mxu0 0.0
  %310 = vmatprep.subr.mxu0 0.0
  %311 = vmatpush1.msra.mxu0 0.0
  %312 = vmatprep.subr.mxu0 0.0
  %313 = vmatpush1.msra.mxu0 0.0
  %314 = vmatprep.subr.mxu0 0.0
  %315 = vmatpush1.msra.mxu0 0.0
  %316 = vmatprep.subr.mxu0 0.0
  %317 = vmatpush1.msra.mxu0 0.0
  %318 = vmatprep.subr.mxu0 0.0
  %319 = vmatpush1.msra.mxu0 0.0
  %320 = vmatprep.subr.mxu0 0.0
  %321 = vmatpush1.msra.mxu0 0.0
  %322 = vmatprep.subr.mxu0 0.0
  %323 = vmatpush1.msra.mxu0 0.0
  %324 = vmatprep.subr.mxu0 0.0
  %325 = vmatpush1.msra.mxu0 %v289
  %326 = vmatprep.subr.mxu0 0.0
  %327 = vmatpush2.msra.mxu0 0.0
  %328 = vmatprep.subr.mxu0 0.0
  %329 = vmatpush2.msra.mxu0 0.0
  %330 = vmatprep.subr.mxu0 0.0
  %331 = vmatpush2.msra.mxu0 0.0
  %332 = vmatprep.subr.mxu0 0.0
  %333 = vmatpush2.msra.mxu0 0.0
  %334 = vmatprep.subr.mxu0 0.0
  %335 = vmatpush2.msra.mxu0 0.0
  %336 = vmatprep.subr.mxu0 0.0
  %337 = vmatpush2.msra.mxu0 0.0
  %338 = vmatprep.subr.mxu0 0.0
  %339 = vmatpush2.msra.mxu0 0.0
  %340 = vmatprep.subr.mxu0 0.0
  %341 = vmatpush2.msra.mxu0 0.0
  %342 = vmatprep.subr.mxu0 0.0
  %343 = vmatpush2.msra.mxu0 0.0
  %344 = vmatprep.subr.mxu0 0.0
  %345 = vmatpush2.msra.mxu0 0.0
  %346 = vmatprep.subr.mxu0 0.0
  %347 = vmatpush2.msra.mxu0 0.0
  %348 = vmatprep.subr.mxu0 0.0
  %349 = vmatpush2.msra.mxu0 0.0
  %350 = vmatprep.subr.mxu0 0.0
  %351 = vmatpush2.msra.mxu0 0.0
  %352 = vmatprep.subr.mxu0 0.0
  %353 = vmatpush2.msra.mxu0 0.0
  %354 = vmatprep.subr.mxu0 0.0
  %355 = vmatpush2.msra.mxu0 0.0
  %356 = vmatprep.subr.mxu0 0.0
  %357 = vmatpush2.msra.mxu0 0.0
  %358 = vmatprep.mubr.f32.mxu0 0.0
  %359 = vmatmul.mubr.f32.gmra.mxu0 %v292
  %v360 = vpop.f32.mrf.mxu0
  %v361 = vadd.f32 0.0, %v360
  %v362 = vpop.f32.mrf.mxu0
  %363 = vdwg.mxu0
  %364 = vrot.lane.b32.xlu0 %v186, 112
  %v365 = vpop.permute.xlu0 %364
  %366 = vrot.lane.b32.xlu0 %v186, 80
  %v367 = vpop.permute.xlu0 %366
  %v368 = vsel %vm195, %v365, 0
  %v370 = vsel %vm195, %v367, 0
  %372 = vmatprep.subr.mxu0 0.0
  %373 = vmatpush1.xpose.msra.mxu0 0.0
  %374 = vmatprep.subr.mxu0 0.0
  %375 = vmatpush1.xpose.msra.mxu0 0.0
  %376 = vmatprep.subr.mxu0 0.0
  %377 = vmatpush1.xpose.msra.mxu0 0.0
  %378 = vmatprep.subr.mxu0 0.0
  %379 = vmatpush1.xpose.msra.mxu0 0.0
  %380 = vmatprep.subr.mxu0 0.0
  %381 = vmatpush1.xpose.msra.mxu0 0.0
  %382 = vmatprep.subr.mxu0 0.0
  %383 = vmatpush1.xpose.msra.mxu0 0.0
  %384 = vmatprep.subr.mxu0 0.0
  %385 = vmatpush1.xpose.msra.mxu0 0.0
  %386 = vmatprep.subr.mxu0 0.0
  %387 = vmatpush1.xpose.msra.mxu0 0.0
  %388 = vmatprep.subr.mxu0 0.0
  %389 = vmatpush1.xpose.msra.mxu0 0.0
  %390 = vmatprep.subr.mxu0 0.0
  %391 = vmatpush1.xpose.msra.mxu0 0.0
  %392 = vmatprep.subr.mxu0 0.0
  %393 = vmatpush1.xpose.msra.mxu0 0.0
  %394 = vmatprep.subr.mxu0 0.0
  %395 = vmatpush1.xpose.msra.mxu0 0.0
  %396 = vmatprep.subr.mxu0 0.0
  %397 = vmatpush1.xpose.msra.mxu0 0.0
  %398 = vmatprep.subr.mxu0 0.0
  %399 = vmatpush1.xpose.msra.mxu0 0.0
  %400 = vmatprep.subr.mxu0 0.0
  %401 = vmatpush1.xpose.msra.mxu0 0.0
  %402 = vmatprep.subr.mxu0 0.0
  %403 = vmatpush1.xpose.msra.mxu0 %v370
  %404 = vmatprep.subr.mxu0 0.0
  %405 = vmatpush2.xpose.msra.mxu0 0.0
  %406 = vmatprep.subr.mxu0 0.0
  %407 = vmatpush2.xpose.msra.mxu0 0.0
  %408 = vmatprep.subr.mxu0 0.0
  %409 = vmatpush2.xpose.msra.mxu0 0.0
  %410 = vmatprep.subr.mxu0 0.0
  %411 = vmatpush2.xpose.msra.mxu0 0.0
  %412 = vmatprep.subr.mxu0 0.0
  %413 = vmatpush2.xpose.msra.mxu0 0.0
  %414 = vmatprep.subr.mxu0 0.0
  %415 = vmatpush2.xpose.msra.mxu0 0.0
  %416 = vmatprep.subr.mxu0 0.0
  %417 = vmatpush2.xpose.msra.mxu0 0.0
  %418 = vmatprep.subr.mxu0 0.0
  %419 = vmatpush2.xpose.msra.mxu0 0.0
  %420 = vmatprep.subr.mxu0 0.0
  %421 = vmatpush2.xpose.msra.mxu0 0.0
  %422 = vmatprep.subr.mxu0 0.0
  %423 = vmatpush2.xpose.msra.mxu0 0.0
  %424 = vmatprep.subr.mxu0 0.0
  %425 = vmatpush2.xpose.msra.mxu0 0.0
  %426 = vmatprep.subr.mxu0 0.0
  %427 = vmatpush2.xpose.msra.mxu0 0.0
  %428 = vmatprep.subr.mxu0 0.0
  %429 = vmatpush2.xpose.msra.mxu0 0.0
  %430 = vmatprep.subr.mxu0 0.0
  %431 = vmatpush2.xpose.msra.mxu0 0.0
  %432 = vmatprep.subr.mxu0 0.0
  %433 = vmatpush2.xpose.msra.mxu0 0.0
  %434 = vmatprep.subr.mxu0 0.0
  %435 = vmatpush2.xpose.msra.mxu0 0.0
  %436 = vmatprep.mubr.f32.mxu0 0.0
  %437 = vmatmul.mubr.f32.gmra.mxu0 %v368
  %v438 = vpop.f32.mrf.mxu0
  %v439 = vadd.f32 0.0, %v438
  %v440 = vpop.f32.mrf.mxu0
  %441 = vdwg.mxu0
  %v442 = vmul.f32 %v439, 0.25
  %v443 = vadd.f32 %v442, %v274
  %v444 = vsel %vm276, %v443, -inf
  %445 = vmax.xlane.f32.xlu0 %v444
  %v446 = vpop.xlane.xlu0 %445
  %v447 = vsub.f32 %v443, %v446
  %v448 = vmul.f32 %v447, 1.442695
  %v449 = vpow.pop %v448
  %v450 = vsel %vm276, %v449, 0.0
  %451 = vadd.xlane.f32.xlu0 %v450
  %v452 = vpop.xlane.xlu0 %451
  %v453 = vrcp.pop %v452
  %v454 = vmul.f32 %v449, %v453
  %455 = vrot.lane.b32.xlu0 %v186, 48
  %v456 = vpop.permute.xlu0 %455
  %v459 = vsel %vm276, %v454, 0
  %461 = vmatprep.subr.mxu0 0.0
  %462 = vmatpush1.msra.mxu0 0.0
  %463 = vmatprep.subr.mxu0 0.0
  %464 = vmatpush1.msra.mxu0 0.0
  %465 = vmatprep.subr.mxu0 0.0
  %466 = vmatpush1.msra.mxu0 0.0
  %467 = vmatprep.subr.mxu0 0.0
  %468 = vmatpush1.msra.mxu0 0.0
  %469 = vmatprep.subr.mxu0 0.0
  %470 = vmatpush1.msra.mxu0 0.0
  %471 = vmatprep.subr.mxu0 0.0
  %472 = vmatpush1.msra.mxu0 0.0
  %473 = vmatprep.subr.mxu0 0.0
  %474 = vmatpush1.msra.mxu0 0.0
  %475 = vmatprep.subr.mxu0 0.0
  %476 = vmatpush1.msra.mxu0 0.0
  %477 = vmatprep.subr.mxu0 0.0
  %478 = vmatpush1.msra.mxu0 0.0
  %479 = vmatprep.subr.mxu0 0.0
  %480 = vmatpush1.msra.mxu0 0.0
  %481 = vmatprep.subr.mxu0 0.0
  %482 = vmatpush1.msra.mxu0 0.0
  %483 = vmatprep.subr.mxu0 0.0
  %484 = vmatpush1.msra.mxu0 0.0
  %485 = vmatprep.subr.mxu0 0.0
  %486 = vmatpush1.msra.mxu0 0.0
  %487 = vmatprep.subr.mxu0 0.0
  %488 = vmatpush1.msra.mxu0 0.0
  %489 = vmatprep.subr.mxu0 0.0
  %490 = vmatpush1.msra.mxu0 0.0
  %491 = vmatprep.subr.mxu0 0.0
  %492 = vmatpush1.msra.mxu0 %v456
  %493 = vmatprep.subr.mxu0 0.0
  %494 = vmatpush2.msra.mxu0 0.0
  %495 = vmatprep.subr.mxu0 0.0
  %496 = vmatpush2.msra.mxu0 0.0
  %497 = vmatprep.subr.mxu0 0.0
  %498 = vmatpush2.msra.mxu0 0.0
  %499 = vmatprep.subr.mxu0 0.0
  %500 = vmatpush2.msra.mxu0 0.0
  %501 = vmatprep.subr.mxu0 0.0
  %502 = vmatpush2.msra.mxu0 0.0
  %503 = vmatprep.subr.mxu0 0.0
  %504 = vmatpush2.msra.mxu0 0.0
  %505 = vmatprep.subr.mxu0 0.0
  %506 = vmatpush2.msra.mxu0 0.0
  %507 = vmatprep.subr.mxu0 0.0
  %508 = vmatpush2.msra.mxu0 0.0
  %509 = vmatprep.subr.mxu0 0.0
  %510 = vmatpush2.msra.mxu0 0.0
  %511 = vmatprep.subr.mxu0 0.0
  %512 = vmatpush2.msra.mxu0 0.0
  %513 = vmatprep.subr.mxu0 0.0
  %514 = vmatpush2.msra.mxu0 0.0
  %515 = vmatprep.subr.mxu0 0.0
  %516 = vmatpush2.msra.mxu0 0.0
  %517 = vmatprep.subr.mxu0 0.0
  %518 = vmatpush2.msra.mxu0 0.0
  %519 = vmatprep.subr.mxu0 0.0
  %520 = vmatpush2.msra.mxu0 0.0
  %521 = vmatprep.subr.mxu0 0.0
  %522 = vmatpush2.msra.mxu0 0.0
  %523 = vmatprep.subr.mxu0 0.0
  %524 = vmatpush2.msra.mxu0 0.0
  %525 = vmatprep.mubr.f32.mxu0 0.0
  %526 = vmatmul.mubr.f32.gmra.mxu0 %v459
  %v527 = vpop.f32.mrf.mxu0
  %v528 = vadd.f32 0.0, %v527
  %v529 = vpop.f32.mrf.mxu0
  %530 = vdwg.mxu0
  %532 = vrot.lane.b32.xlu0 %v528, 16
  %v533 = vpop.permute.xlu0 %532
  %v535 = vsel %vm195, %v361, %v533
  %537 = vrot.lane.b32.xlu0 %v189, 96
  %v538 = vpop.permute.xlu0 %537
  %v539 = vsel %vm195, %v189, 0
  %v541 = vsel %vm195, %v538, 0
  %543 = vmatprep.subr.mxu0 0.0
  %544 = vmatpush1.xpose.msra.mxu0 0.0
  %545 = vmatprep.subr.mxu0 0.0
  %546 = vmatpush1.xpose.msra.mxu0 0.0
  %547 = vmatprep.subr.mxu0 0.0
  %548 = vmatpush1.xpose.msra.mxu0 0.0
  %549 = vmatprep.subr.mxu0 0.0
  %550 = vmatpush1.xpose.msra.mxu0 0.0
  %551 = vmatprep.subr.mxu0 0.0
  %552 = vmatpush1.xpose.msra.mxu0 0.0
  %553 = vmatprep.subr.mxu0 0.0
  %554 = vmatpush1.xpose.msra.mxu0 0.0
  %555 = vmatprep.subr.mxu0 0.0
  %556 = vmatpush1.xpose.msra.mxu0 0.0
  %557 = vmatprep.subr.mxu0 0.0
  %558 = vmatpush1.xpose.msra.mxu0 0.0
  %559 = vmatprep.subr.mxu0 0.0
  %560 = vmatpush1.xpose.msra.mxu0 0.0
  %561 = vmatprep.subr.mxu0 0.0
  %562 = vmatpush1.xpose.msra.mxu0 0.0
  %563 = vmatprep.subr.mxu0 0.0
  %564 = vmatpush1.xpose.msra.mxu0 0.0
  %565 = vmatprep.subr.mxu0 0.0
  %566 = vmatpush1.xpose.msra.mxu0 0.0
  %567 = vmatprep.subr.mxu0 0.0
  %568 = vmatpush1.xpose.msra.mxu0 0.0
  %569 = vmatprep.subr.mxu0 0.0
  %570 = vmatpush1.xpose.msra.mxu0 0.0
  %571 = vmatprep.subr.mxu0 0.0
  %572 = vmatpush1.xpose.msra.mxu0 0.0
  %573 = vmatprep.subr.mxu0 0.0
  %574 = vmatpush1.xpose.msra.mxu0 %v541
  %575 = vmatprep.subr.mxu0 0.0
  %576 = vmatpush2.xpose.msra.mxu0 0.0
  %577 = vmatprep.subr.mxu0 0.0
  %578 = vmatpush2.xpose.msra.mxu0 0.0
  %579 = vmatprep.subr.mxu0 0.0
  %580 = vmatpush2.xpose.msra.mxu0 0.0
  %581 = vmatprep.subr.mxu0 0.0
  %582 = vmatpush2.xpose.msra.mxu0 0.0
  %583 = vmatprep.subr.mxu0 0.0
  %584 = vmatpush2.xpose.msra.mxu0 0.0
  %585 = vmatprep.subr.mxu0 0.0
  %586 = vmatpush2.xpose.msra.mxu0 0.0
  %587 = vmatprep.subr.mxu0 0.0
  %588 = vmatpush2.xpose.msra.mxu0 0.0
  %589 = vmatprep.subr.mxu0 0.0
  %590 = vmatpush2.xpose.msra.mxu0 0.0
  %591 = vmatprep.subr.mxu0 0.0
  %592 = vmatpush2.xpose.msra.mxu0 0.0
  %593 = vmatprep.subr.mxu0 0.0
  %594 = vmatpush2.xpose.msra.mxu0 0.0
  %595 = vmatprep.subr.mxu0 0.0
  %596 = vmatpush2.xpose.msra.mxu0 0.0
  %597 = vmatprep.subr.mxu0 0.0
  %598 = vmatpush2.xpose.msra.mxu0 0.0
  %599 = vmatprep.subr.mxu0 0.0
  %600 = vmatpush2.xpose.msra.mxu0 0.0
  %601 = vmatprep.subr.mxu0 0.0
  %602 = vmatpush2.xpose.msra.mxu0 0.0
  %603 = vmatprep.subr.mxu0 0.0
  %604 = vmatpush2.xpose.msra.mxu0 0.0
  %605 = vmatprep.subr.mxu0 0.0
  %606 = vmatpush2.xpose.msra.mxu0 0.0
  %607 = vmatprep.mubr.f32.mxu0 0.0
  %608 = vmatmul.mubr.f32.gmra.mxu0 %v539
  %v609 = vpop.f32.mrf.mxu0
  %v610 = vadd.f32 0.0, %v609
  %v611 = vpop.f32.mrf.mxu0
  %612 = vdwg.mxu0
  %v613 = vmul.f32 %v610, 0.25
  %v614 = vlaneseq
  %v615 = vshrl.u32 %v614, 7
  %v616 = vsub.s32 1, %v615
  %v617 = vrot.slane %v133, %v616
  %v618 = vadd.f32 %v613, %v617
  %v619 = vsel %vm276, %v618, -inf
  %620 = vmax.xlane.f32.xlu0 %v619
  %v621 = vpop.xlane.xlu0 %620
  %v622 = vsub.f32 %v618, %v621
  %v623 = vmul.f32 %v622, 1.442695
  %v624 = vpow.pop %v623
  %v625 = vsel %vm276, %v624, 0.0
  %626 = vadd.xlane.f32.xlu0 %v625
  %v627 = vpop.xlane.xlu0 %626
  %v628 = vrcp.pop %v627
  %v629 = vmul.f32 %v624, %v628
  %630 = vrot.lane.b32.xlu0 %v189, 64
  %v631 = vpop.permute.xlu0 %630
  %v634 = vsel %vm276, %v629, 0
  %636 = vmatprep.subr.mxu0 0.0
  %637 = vmatpush1.msra.mxu0 0.0
  %638 = vmatprep.subr.mxu0 0.0
  %639 = vmatpush1.msra.mxu0 0.0
  %640 = vmatprep.subr.mxu0 0.0
  %641 = vmatpush1.msra.mxu0 0.0
  %642 = vmatprep.subr.mxu0 0.0
  %643 = vmatpush1.msra.mxu0 0.0
  %644 = vmatprep.subr.mxu0 0.0
  %645 = vmatpush1.msra.mxu0 0.0
  %646 = vmatprep.subr.mxu0 0.0
  %647 = vmatpush1.msra.mxu0 0.0
  %648 = vmatprep.subr.mxu0 0.0
  %649 = vmatpush1.msra.mxu0 0.0
  %650 = vmatprep.subr.mxu0 0.0
  %651 = vmatpush1.msra.mxu0 0.0
  %652 = vmatprep.subr.mxu0 0.0
  %653 = vmatpush1.msra.mxu0 0.0
  %654 = vmatprep.subr.mxu0 0.0
  %655 = vmatpush1.msra.mxu0 0.0
  %656 = vmatprep.subr.mxu0 0.0
  %657 = vmatpush1.msra.mxu0 0.0
  %658 = vmatprep.subr.mxu0 0.0
  %659 = vmatpush1.msra.mxu0 0.0
  %660 = vmatprep.subr.mxu0 0.0
  %661 = vmatpush1.msra.mxu0 0.0
  %662 = vmatprep.subr.mxu0 0.0
  %663 = vmatpush1.msra.mxu0 0.0
  %664 = vmatprep.subr.mxu0 0.0
  %665 = vmatpush1.msra.mxu0 0.0
  %666 = vmatprep.subr.mxu0 0.0
  %667 = vmatpush1.msra.mxu0 %v631
  %668 = vmatprep.subr.mxu0 0.0
  %669 = vmatpush2.msra.mxu0 0.0
  %670 = vmatprep.subr.mxu0 0.0
  %671 = vmatpush2.msra.mxu0 0.0
  %672 = vmatprep.subr.mxu0 0.0
  %673 = vmatpush2.msra.mxu0 0.0
  %674 = vmatprep.subr.mxu0 0.0
  %675 = vmatpush2.msra.mxu0 0.0
  %676 = vmatprep.subr.mxu0 0.0
  %677 = vmatpush2.msra.mxu0 0.0
  %678 = vmatprep.subr.mxu0 0.0
  %679 = vmatpush2.msra.mxu0 0.0
  %680 = vmatprep.subr.mxu0 0.0
  %681 = vmatpush2.msra.mxu0 0.0
  %682 = vmatprep.subr.mxu0 0.0
  %683 = vmatpush2.msra.mxu0 0.0
  %684 = vmatprep.subr.mxu0 0.0
  %685 = vmatpush2.msra.mxu0 0.0
  %686 = vmatprep.subr.mxu0 0.0
  %687 = vmatpush2.msra.mxu0 0.0
  %688 = vmatprep.subr.mxu0 0.0
  %689 = vmatpush2.msra.mxu0 0.0
  %690 = vmatprep.subr.mxu0 0.0
  %691 = vmatpush2.msra.mxu0 0.0
  %692 = vmatprep.subr.mxu0 0.0
  %693 = vmatpush2.msra.mxu0 0.0
  %694 = vmatprep.subr.mxu0 0.0
  %695 = vmatpush2.msra.mxu0 0.0
  %696 = vmatprep.subr.mxu0 0.0
  %697 = vmatpush2.msra.mxu0 0.0
  %698 = vmatprep.subr.mxu0 0.0
  %699 = vmatpush2.msra.mxu0 0.0
  %700 = vmatprep.mubr.f32.mxu0 0.0
  %701 = vmatmul.mubr.f32.gmra.mxu0 %v634
  %v702 = vpop.f32.mrf.mxu0
  %v703 = vadd.f32 0.0, %v702
  %v704 = vpop.f32.mrf.mxu0
  %705 = vdwg.mxu0
  %706 = vrot.lane.b32.xlu0 %v189, 112
  %v707 = vpop.permute.xlu0 %706
  %708 = vrot.lane.b32.xlu0 %v189, 80
  %v709 = vpop.permute.xlu0 %708
  %v710 = vsel %vm195, %v707, 0
  %v712 = vsel %vm195, %v709, 0
  %714 = vmatprep.subr.mxu0 0.0
  %715 = vmatpush1.xpose.msra.mxu0 0.0
  %716 = vmatprep.subr.mxu0 0.0
  %717 = vmatpush1.xpose.msra.mxu0 0.0
  %718 = vmatprep.subr.mxu0 0.0
  %719 = vmatpush1.xpose.msra.mxu0 0.0
  %720 = vmatprep.subr.mxu0 0.0
  %721 = vmatpush1.xpose.msra.mxu0 0.0
  %722 = vmatprep.subr.mxu0 0.0
  %723 = vmatpush1.xpose.msra.mxu0 0.0
  %724 = vmatprep.subr.mxu0 0.0
  %725 = vmatpush1.xpose.msra.mxu0 0.0
  %726 = vmatprep.subr.mxu0 0.0
  %727 = vmatpush1.xpose.msra.mxu0 0.0
  %728 = vmatprep.subr.mxu0 0.0
  %729 = vmatpush1.xpose.msra.mxu0 0.0
  %730 = vmatprep.subr.mxu0 0.0
  %731 = vmatpush1.xpose.msra.mxu0 0.0
  %732 = vmatprep.subr.mxu0 0.0
  %733 = vmatpush1.xpose.msra.mxu0 0.0
  %734 = vmatprep.subr.mxu0 0.0
  %735 = vmatpush1.xpose.msra.mxu0 0.0
  %736 = vmatprep.subr.mxu0 0.0
  %737 = vmatpush1.xpose.msra.mxu0 0.0
  %738 = vmatprep.subr.mxu0 0.0
  %739 = vmatpush1.xpose.msra.mxu0 0.0
  %740 = vmatprep.subr.mxu0 0.0
  %741 = vmatpush1.xpose.msra.mxu0 0.0
  %742 = vmatprep.subr.mxu0 0.0
  %743 = vmatpush1.xpose.msra.mxu0 0.0
  %744 = vmatprep.subr.mxu0 0.0
  %745 = vmatpush1.xpose.msra.mxu0 %v712
  %746 = vmatprep.subr.mxu0 0.0
  %747 = vmatpush2.xpose.msra.mxu0 0.0
  %748 = vmatprep.subr.mxu0 0.0
  %749 = vmatpush2.xpose.msra.mxu0 0.0
  %750 = vmatprep.subr.mxu0 0.0
  %751 = vmatpush2.xpose.msra.mxu0 0.0
  %752 = vmatprep.subr.mxu0 0.0
  %753 = vmatpush2.xpose.msra.mxu0 0.0
  %754 = vmatprep.subr.mxu0 0.0
  %755 = vmatpush2.xpose.msra.mxu0 0.0
  %756 = vmatprep.subr.mxu0 0.0
  %757 = vmatpush2.xpose.msra.mxu0 0.0
  %758 = vmatprep.subr.mxu0 0.0
  %759 = vmatpush2.xpose.msra.mxu0 0.0
  %760 = vmatprep.subr.mxu0 0.0
  %761 = vmatpush2.xpose.msra.mxu0 0.0
  %762 = vmatprep.subr.mxu0 0.0
  %763 = vmatpush2.xpose.msra.mxu0 0.0
  %764 = vmatprep.subr.mxu0 0.0
  %765 = vmatpush2.xpose.msra.mxu0 0.0
  %766 = vmatprep.subr.mxu0 0.0
  %767 = vmatpush2.xpose.msra.mxu0 0.0
  %768 = vmatprep.subr.mxu0 0.0
  %769 = vmatpush2.xpose.msra.mxu0 0.0
  %770 = vmatprep.subr.mxu0 0.0
  %771 = vmatpush2.xpose.msra.mxu0 0.0
  %772 = vmatprep.subr.mxu0 0.0
  %773 = vmatpush2.xpose.msra.mxu0 0.0
  %774 = vmatprep.subr.mxu0 0.0
  %775 = vmatpush2.xpose.msra.mxu0 0.0
  %776 = vmatprep.subr.mxu0 0.0
  %777 = vmatpush2.xpose.msra.mxu0 0.0
  %778 = vmatprep.mubr.f32.mxu0 0.0
  %779 = vmatmul.mubr.f32.gmra.mxu0 %v710
  %v780 = vpop.f32.mrf.mxu0
  %v781 = vadd.f32 0.0, %v780
  %v782 = vpop.f32.mrf.mxu0
  %783 = vdwg.mxu0
  %v784 = vmul.f32 %v781, 0.25
  %v785 = vadd.f32 %v784, %v617
  %v786 = vsel %vm276, %v785, -inf
  %787 = vmax.xlane.f32.xlu0 %v786
  %v788 = vpop.xlane.xlu0 %787
  %v789 = vsub.f32 %v785, %v788
  %v790 = vmul.f32 %v789, 1.442695
  %v791 = vpow.pop %v790
  %v792 = vsel %vm276, %v791, 0.0
  %793 = vadd.xlane.f32.xlu0 %v792
  %v794 = vpop.xlane.xlu0 %793
  %v795 = vrcp.pop %v794
  %v796 = vmul.f32 %v791, %v795
  %797 = vrot.lane.b32.xlu0 %v189, 48
  %v798 = vpop.permute.xlu0 %797
  %v801 = vsel %vm276, %v796, 0
  %803 = vmatprep.subr.mxu0 0.0
  %804 = vmatpush1.msra.mxu0 0.0
  %805 = vmatprep.subr.mxu0 0.0
  %806 = vmatpush1.msra.mxu0 0.0
  %807 = vmatprep.subr.mxu0 0.0
  %808 = vmatpush1.msra.mxu0 0.0
  %809 = vmatprep.subr.mxu0 0.0
  %810 = vmatpush1.msra.mxu0 0.0
  %811 = vmatprep.subr.mxu0 0.0
  %812 = vmatpush1.msra.mxu0 0.0
  %813 = vmatprep.subr.mxu0 0.0
  %814 = vmatpush1.msra.mxu0 0.0
  %815 = vmatprep.subr.mxu0 0.0
  %816 = vmatpush1.msra.mxu0 0.0
  %817 = vmatprep.subr.mxu0 0.0
  %818 = vmatpush1.msra.mxu0 0.0
  %819 = vmatprep.subr.mxu0 0.0
  %820 = vmatpush1.msra.mxu0 0.0
  %821 = vmatprep.subr.mxu0 0.0
  %822 = vmatpush1.msra.mxu0 0.0
  %823 = vmatprep.subr.mxu0 0.0
  %824 = vmatpush1.msra.mxu0 0.0
  %825 = vmatprep.subr.mxu0 0.0
  %826 = vmatpush1.msra.mxu0 0.0
  %827 = vmatprep.subr.mxu0 0.0
  %828 = vmatpush1.msra.mxu0 0.0
  %829 = vmatprep.subr.mxu0 0.0
  %830 = vmatpush1.msra.mxu0 0.0
  %831 = vmatprep.subr.mxu0 0.0
  %832 = vmatpush1.msra.mxu0 0.0
  %833 = vmatprep.subr.mxu0 0.0
  %834 = vmatpush1.msra.mxu0 %v798
  %835 = vmatprep.subr.mxu0 0.0
  %836 = vmatpush2.msra.mxu0 0.0
  %837 = vmatprep.subr.mxu0 0.0
  %838 = vmatpush2.msra.mxu0 0.0
  %839 = vmatprep.subr.mxu0 0.0
  %840 = vmatpush2.msra.mxu0 0.0
  %841 = vmatprep.subr.mxu0 0.0
  %842 = vmatpush2.msra.mxu0 0.0
  %843 = vmatprep.subr.mxu0 0.0
  %844 = vmatpush2.msra.mxu0 0.0
  %845 = vmatprep.subr.mxu0 0.0
  %846 = vmatpush2.msra.mxu0 0.0
  %847 = vmatprep.subr.mxu0 0.0
  %848 = vmatpush2.msra.mxu0 0.0
  %849 = vmatprep.subr.mxu0 0.0
  %850 = vmatpush2.msra.mxu0 0.0
  %851 = vmatprep.subr.mxu0 0.0
  %852 = vmatpush2.msra.mxu0 0.0
  %853 = vmatprep.subr.mxu0 0.0
  %854 = vmatpush2.msra.mxu0 0.0
  %855 = vmatprep.subr.mxu0 0.0
  %856 = vmatpush2.msra.mxu0 0.0
  %857 = vmatprep.subr.mxu0 0.0
  %858 = vmatpush2.msra.mxu0 0.0
  %859 = vmatprep.subr.mxu0 0.0
  %860 = vmatpush2.msra.mxu0 0.0
  %861 = vmatprep.subr.mxu0 0.0
  %862 = vmatpush2.msra.mxu0 0.0
  %863 = vmatprep.subr.mxu0 0.0
  %864 = vmatpush2.msra.mxu0 0.0
  %865 = vmatprep.subr.mxu0 0.0
  %866 = vmatpush2.msra.mxu0 0.0
  %867 = vmatprep.mubr.f32.mxu0 0.0
  %868 = vmatmul.mubr.f32.gmra.mxu0 %v801
  %v869 = vpop.f32.mrf.mxu0
  %v870 = vadd.f32 0.0, %v869
  %v871 = vpop.f32.mrf.mxu0
  %872 = vdwg.mxu0
  %874 = vrot.lane.b32.xlu0 %v870, 16
  %v875 = vpop.permute.xlu0 %874
  %v877 = vsel %vm195, %v703, %v875
  %v878 = vld [vmem:[%s8] sm:$0xff]
  %v879 = vld [vmem:[%s8 + $0x8] sm:$0xff]
  %v880 = vld [vmem:[%s8 + $0x10] sm:$0xff]
  %v881 = vld [vmem:[%s8 + $0x18] sm:$0xff]
  %v882 = vpack.c.bf16 %v877, %v535
  %v883 = vpack.c.bf16 %v879, %v878
  %v884 = vpack.c.bf16 %v881, %v880
  %v885 = vld [vmem:[%s9] sm:$0x1]
  %v887 = vlaneseq
  %v888 = vshrl.u32 %v887, 7
  %v889 = vsub.s32 0, %v888
  %v890 = vrot.slane %v885, %v889
  %v893 = vsel %vm87, %v882, 0
  %895 = vmatprep.subr.bf16.mxu0 0
  %896 = vmatpush1.bf16.msra.mxu0 0
  %897 = vmatprep.subr.bf16.mxu0 0
  %898 = vmatpush1.bf16.msra.mxu0 0
  %899 = vmatprep.subr.bf16.mxu0 0
  %900 = vmatpush1.bf16.msra.mxu0 0
  %901 = vmatprep.subr.bf16.mxu0 0
  %902 = vmatpush1.bf16.msra.mxu0 0
  %903 = vmatprep.subr.bf16.mxu0 0
  %904 = vmatpush1.bf16.msra.mxu0 0
  %905 = vmatprep.subr.bf16.mxu0 0
  %906 = vmatpush1.bf16.msra.mxu0 0
  %907 = vmatprep.subr.bf16.mxu0 0
  %908 = vmatpush1.bf16.msra.mxu0 %v884
  %909 = vmatprep.subr.bf16.mxu0 0
  %910 = vmatpush1.bf16.msra.mxu0 %v883
  %911 = vmatprep.subr.bf16.mxu0 0
  %912 = vmatpush2.bf16.msra.mxu0 0
  %913 = vmatprep.subr.bf16.mxu0 0
  %914 = vmatpush2.bf16.msra.mxu0 0
  %915 = vmatprep.subr.bf16.mxu0 0
  %916 = vmatpush2.bf16.msra.mxu0 0
  %917 = vmatprep.subr.bf16.mxu0 0
  %918 = vmatpush2.bf16.msra.mxu0 0
  %919 = vmatprep.subr.bf16.mxu0 0
  %920 = vmatpush2.bf16.msra.mxu0 0
  %921 = vmatprep.subr.bf16.mxu0 0
  %922 = vmatpush2.bf16.msra.mxu0 0
  %923 = vmatprep.subr.bf16.mxu0 0
  %924 = vmatpush2.bf16.msra.mxu0 0
  %925 = vmatprep.subr.bf16.mxu0 0
  %926 = vmatpush2.bf16.msra.mxu0 0
  %927 = vmatprep.mubr.bf16.mxu0 0
  %928 = vmatmul.mubr.bf16.gmra.mxu0 %v893
  %v929 = vpop.f32.mrf.mxu0
  %v930 = vadd.f32 %v890, %v929
  %v931 = vpop.f32.mrf.mxu0
  %v932 = vpop.f32.mrf.mxu0
  %v933 = vadd.f32 %v890, %v932
  %v934 = vpop.f32.mrf.mxu0
  %935 = vdwg.mxu0
  %v936 = vadd.f32 %v129, %v930
  %v937 = vadd.f32 %v130, %v933
  %v938 = vld [vmem:[%s14] sm:$0x1]
  %v939 = vld [vmem:[%s15] sm:$0x1]
  %v940 = vsel %vm87, %v936, 0.0
  %941 = vadd.xlane.f32.xlu0 %v940
  %v942 = vpop.xlane.xlu0 %941
  %v943 = vsel %vm87, %v937, 0.0
  %944 = vadd.xlane.f32.xlu0 %v943
  %v945 = vpop.xlane.xlu0 %944
  %v946 = vmul.f32 %v942, %v94
  %v947 = vmul.f32 %v945, %v94
  %v948 = vsub.f32 %v936, %v946
  %v949 = vsub.f32 %v937, %v947
  %v950 = vmul.f32 %v948, %v948
  %v951 = vmul.f32 %v949, %v949
  %v952 = vsel %vm87, %v950, 0.0
  %953 = vadd.xlane.f32.xlu0 %v952
  %v954 = vpop.xlane.xlu0 %953
  %v955 = vsel %vm87, %v951, 0.0
  %956 = vadd.xlane.f32.xlu0 %v955
  %v957 = vpop.xlane.xlu0 %956
  %v958 = vmul.f32 %v954, %v94
  %v959 = vmul.f32 %v957, %v94
  %v960 = vadd.f32 %v958, 1e-12
  %v961 = vadd.f32 %v959, 1e-12
  %v962 = vrsqrt.pop %v960
  %v963 = vrsqrt.pop %v961
  %v964 = vmul.f32 %v948, %v962
  %v965 = vmul.f32 %v949, %v963
  %v967 = vlaneseq
  %v968 = vshrl.u32 %v967, 7
  %v969 = vsub.s32 0, %v968
  %v970 = vrot.slane %v938, %v969
  %v972 = vmul.f32 %v964, %v970
  %v973 = vmul.f32 %v965, %v970
  %v975 = vlaneseq
  %v976 = vshrl.u32 %v975, 7
  %v977 = vsub.s32 0, %v976
  %v978 = vrot.slane %v939, %v977
  %v980 = vadd.f32 %v972, %v978
  %v981 = vadd.f32 %v973, %v978
  %v982 = vld [vmem:[%s10] sm:$0xff]
  %v983 = vld [vmem:[%s10 + $0x8] sm:$0xff]
  %v984 = vld [vmem:[%s10 + $0x10] sm:$0xff]
  %v985 = vld [vmem:[%s10 + $0x18] sm:$0xff]
  %v986 = vpack.c.bf16 %v981, %v980
  %v987 = vpack.c.bf16 %v983, %v982
  %v988 = vpack.c.bf16 %v985, %v984
  %v989 = vld [vmem:[%s11] sm:$0x1]
  %v991 = vlaneseq
  %v992 = vshrl.u32 %v991, 7
  %v993 = vsub.s32 0, %v992
  %v994 = vrot.slane %v989, %v993
  %v997 = vsel %vm87, %v986, 0
  %999 = vmatprep.subr.bf16.mxu0 0
  %1000 = vmatpush1.bf16.msra.mxu0 0
  %1001 = vmatprep.subr.bf16.mxu0 0
  %1002 = vmatpush1.bf16.msra.mxu0 0
  %1003 = vmatprep.subr.bf16.mxu0 0
  %1004 = vmatpush1.bf16.msra.mxu0 0
  %1005 = vmatprep.subr.bf16.mxu0 0
  %1006 = vmatpush1.bf16.msra.mxu0 0
  %1007 = vmatprep.subr.bf16.mxu0 0
  %1008 = vmatpush1.bf16.msra.mxu0 0
  %1009 = vmatprep.subr.bf16.mxu0 0
  %1010 = vmatpush1.bf16.msra.mxu0 0
  %1011 = vmatprep.subr.bf16.mxu0 0
  %1012 = vmatpush1.bf16.msra.mxu0 %v988
  %1013 = vmatprep.subr.bf16.mxu0 0
  %1014 = vmatpush1.bf16.msra.mxu0 %v987
  %1015 = vmatprep.subr.bf16.mxu0 0
  %1016 = vmatpush2.bf16.msra.mxu0 0
  %1017 = vmatprep.subr.bf16.mxu0 0
  %1018 = vmatpush2.bf16.msra.mxu0 0
  %1019 = vmatprep.subr.bf16.mxu0 0
  %1020 = vmatpush2.bf16.msra.mxu0 0
  %1021 = vmatprep.subr.bf16.mxu0 0
  %1022 = vmatpush2.bf16.msra.mxu0 0
  %1023 = vmatprep.subr.bf16.mxu0 0
  %1024 = vmatpush2.bf16.msra.mxu0 0
  %1025 = vmatprep.subr.bf16.mxu0 0
  %1026 = vmatpush2.bf16.msra.mxu0 0
  %1027 = vmatprep.subr.bf16.mxu0 0
  %1028 = vmatpush2.bf16.msra.mxu0 0
  %1029 = vmatprep.subr.bf16.mxu0 0
  %1030 = vmatpush2.bf16.msra.mxu0 0
  %1031 = vmatprep.mubr.bf16.mxu0 0
  %1032 = vmatmul.mubr.bf16.gmra.mxu0 %v997
  %v1033 = vpop.f32.mrf.mxu0
  %v1034 = vadd.f32 %v994, %v1033
  %v1035 = vpop.f32.mrf.mxu0
  %v1036 = vpop.f32.mrf.mxu0
  %v1037 = vadd.f32 %v994, %v1036
  %v1038 = vpop.f32.mrf.mxu0
  %1039 = vdwg.mxu0
  %v1040 = vmul.f32 %v1034, %v1034
  %v1041 = vmul.f32 %v1037, %v1037
  %v1042 = vmul.f32 %v1034, %v1040
  %v1043 = vmul.f32 %v1037, %v1041
  %v1044 = vmul.f32 %v1042, 0.044715
  %v1045 = vmul.f32 %v1043, 0.044715
  %v1046 = vadd.f32 %v1034, %v1044
  %v1047 = vadd.f32 %v1037, %v1045
  %v1048 = vmul.f32 %v1046, 0.7978846
  %v1049 = vmul.f32 %v1047, 0.7978846
  %v1050 = vtanh.pop %v1048
  %v1051 = vtanh.pop %v1049
  %v1052 = vadd.f32 %v1050, 1.0
  %v1053 = vadd.f32 %v1051, 1.0
  %v1054 = vmul.f32 %v1052, 0.5
  %v1055 = vmul.f32 %v1053, 0.5
  %v1056 = vmul.f32 %v1034, %v1054
  %v1057 = vmul.f32 %v1037, %v1055
  %v1058 = vld [vmem:[%s12] sm:$0xff]
  %v1059 = vld [vmem:[%s12 + $0x8] sm:$0xff]
  %v1060 = vld [vmem:[%s12 + $0x10] sm:$0xff]
  %v1061 = vld [vmem:[%s12 + $0x18] sm:$0xff]
  %v1062 = vld [vmem:[%s12 + $0x20] sm:$0xff]
  %v1063 = vld [vmem:[%s12 + $0x28] sm:$0xff]
  %v1064 = vld [vmem:[%s12 + $0x30] sm:$0xff]
  %v1065 = vld [vmem:[%s12 + $0x38] sm:$0xff]
  %v1066 = vpack.c.bf16 %v1057, %v1056
  %v1067 = vpack.c.bf16 %v1059, %v1058
  %v1068 = vpack.c.bf16 %v1061, %v1060
  %v1069 = vpack.c.bf16 %v1063, %v1062
  %v1070 = vpack.c.bf16 %v1065, %v1064
  %v1071 = vld [vmem:[%s13] sm:$0x1]
  %v1073 = vlaneseq
  %v1074 = vshrl.u32 %v1073, 7
  %v1075 = vsub.s32 0, %v1074
  %v1076 = vrot.slane %v1071, %v1075
  %vm1078 = vcmask 523264
  %v1080 = vsel %vm1078, %v1066, 0
  %1082 = vmatprep.subr.bf16.mxu0 0
  %1083 = vmatpush1.bf16.msra.mxu0 0
  %1084 = vmatprep.subr.bf16.mxu0 0
  %1085 = vmatpush1.bf16.msra.mxu0 0
  %1086 = vmatprep.subr.bf16.mxu0 0
  %1087 = vmatpush1.bf16.msra.mxu0 0
  %1088 = vmatprep.subr.bf16.mxu0 0
  %1089 = vmatpush1.bf16.msra.mxu0 0
  %1090 = vmatprep.subr.bf16.mxu0 0
  %1091 = vmatpush1.bf16.msra.mxu0 %v1070
  %1092 = vmatprep.subr.bf16.mxu0 0
  %1093 = vmatpush1.bf16.msra.mxu0 %v1069
  %1094 = vmatprep.subr.bf16.mxu0 0
  %1095 = vmatpush1.bf16.msra.mxu0 %v1068
  %1096 = vmatprep.subr.bf16.mxu0 0
  %1097 = vmatpush1.bf16.msra.mxu0 %v1067
  %1098 = vmatprep.subr.bf16.mxu0 0
  %1099 = vmatpush2.bf16.msra.mxu0 0
  %1100 = vmatprep.subr.bf16.mxu0 0
  %1101 = vmatpush2.bf16.msra.mxu0 0
  %1102 = vmatprep.subr.bf16.mxu0 0
  %1103 = vmatpush2.bf16.msra.mxu0 0
  %1104 = vmatprep.subr.bf16.mxu0 0
  %1105 = vmatpush2.bf16.msra.mxu0 0
  %1106 = vmatprep.subr.bf16.mxu0 0
  %1107 = vmatpush2.bf16.msra.mxu0 0
  %1108 = vmatprep.subr.bf16.mxu0 0
  %1109 = vmatpush2.bf16.msra.mxu0 0
  %1110 = vmatprep.subr.bf16.mxu0 0
  %1111 = vmatpush2.bf16.msra.mxu0 0
  %1112 = vmatprep.subr.bf16.mxu0 0
  %1113 = vmatpush2.bf16.msra.mxu0 0
  %1114 = vmatprep.mubr.bf16.mxu0 0
  %1115 = vmatmul.mubr.bf16.gmra.mxu0 %v1080
  %v1116 = vpop.f32.mrf.mxu0
  %v1117 = vadd.f32 %v1076, %v1116
  %v1118 = vpop.f32.mrf.mxu0
  %v1119 = vpop.f32.mrf.mxu0
  %v1120 = vadd.f32 %v1076, %v1119
  %v1121 = vpop.f32.mrf.mxu0
  %1122 = vdwg.mxu0
  %v1123 = vadd.f32 %v980, %v1117
  %v1124 = vadd.f32 %v981, %v1120
  %v1125 = vld [vmem:[%s16] sm:$0x1]
  %v1126 = vld [vmem:[%s17] sm:$0x1]
  %v1127 = vsel %vm87, %v1123, 0.0
  %1128 = vadd.xlane.f32.xlu0 %v1127
  %v1129 = vpop.xlane.xlu0 %1128
  %v1130 = vsel %vm87, %v1124, 0.0
  %1131 = vadd.xlane.f32.xlu0 %v1130
  %v1132 = vpop.xlane.xlu0 %1131
  %v1133 = vmul.f32 %v1129, %v94
  %v1134 = vmul.f32 %v1132, %v94
  %v1135 = vsub.f32 %v1123, %v1133
  %v1136 = vsub.f32 %v1124, %v1134
  %v1137 = vmul.f32 %v1135, %v1135
  %v1138 = vmul.f32 %v1136, %v1136
  %v1139 = vsel %vm87, %v1137, 0.0
  %1140 = vadd.xlane.f32.xlu0 %v1139
  %v1141 = vpop.xlane.xlu0 %1140
  %v1142 = vsel %vm87, %v1138, 0.0
  %1143 = vadd.xlane.f32.xlu0 %v1142
  %v1144 = vpop.xlane.xlu0 %1143
  %v1145 = vmul.f32 %v1141, %v94
  %v1146 = vmul.f32 %v1144, %v94
  %v1147 = vadd.f32 %v1145, 1e-12
  %v1148 = vadd.f32 %v1146, 1e-12
  %v1149 = vrsqrt.pop %v1147
  %v1150 = vrsqrt.pop %v1148
  %v1151 = vmul.f32 %v1135, %v1149
  %v1152 = vmul.f32 %v1136, %v1150
  %v1154 = vlaneseq
  %v1155 = vshrl.u32 %v1154, 7
  %v1156 = vsub.s32 0, %v1155
  %v1157 = vrot.slane %v1125, %v1156
  %v1159 = vmul.f32 %v1151, %v1157
  %v1160 = vmul.f32 %v1152, %v1157
  %v1162 = vlaneseq
  %v1163 = vshrl.u32 %v1162, 7
  %v1164 = vsub.s32 0, %v1163
  %v1165 = vrot.slane %v1126, %v1164
  %v1167 = vadd.f32 %v1159, %v1165
  %v1168 = vadd.f32 %v1160, %v1165
  %s1169 = scalar_lea.vmem %s6, 32
  %v1170 = vld [vmem:[%s1169] sm:$0xff]
  %v1171 = vld [vmem:[%s1169 + $0x8] sm:$0xff]
  %v1172 = vld [vmem:[%s1169 + $0x10] sm:$0xff]
  %v1173 = vld [vmem:[%s1169 + $0x18] sm:$0xff]
  %v1174 = vpack.c.bf16 %v1168, %v1167
  %v1175 = vpack.c.bf16 %v1171, %v1170
  %v1176 = vpack.c.bf16 %v1173, %v1172
  %s1177 = scalar_lea.vmem %s7, 1
  %v1178 = vld [vmem:[%s1177] sm:$0x1]
  %v1180 = vlaneseq
  %v1181 = vshrl.u32 %v1180, 7
  %v1182 = vsub.s32 0, %v1181
  %v1183 = vrot.slane %v1178, %v1182
  %v1186 = vsel %vm87, %v1174, 0
  %1188 = vmatprep.subr.bf16.mxu0 0
  %1189 = vmatpush1.bf16.msra.mxu0 0
  %1190 = vmatprep.subr.bf16.mxu0 0
  %1191 = vmatpush1.bf16.msra.mxu0 0
  %1192 = vmatprep.subr.bf16.mxu0 0
  %1193 = vmatpush1.bf16.msra.mxu0 0
  %1194 = vmatprep.subr.bf16.mxu0 0
  %1195 = vmatpush1.bf16.msra.mxu0 0
  %1196 = vmatprep.subr.bf16.mxu0 0
  %1197 = vmatpush1.bf16.msra.mxu0 0
  %1198 = vmatprep.subr.bf16.mxu0 0
  %1199 = vmatpush1.bf16.msra.mxu0 0
  %1200 = vmatprep.subr.bf16.mxu0 0
  %1201 = vmatpush1.bf16.msra.mxu0 %v1176
  %1202 = vmatprep.subr.bf16.mxu0 0
  %1203 = vmatpush1.bf16.msra.mxu0 %v1175
  %1204 = vmatprep.subr.bf16.mxu0 0
  %1205 = vmatpush2.bf16.msra.mxu0 0
  %1206 = vmatprep.subr.bf16.mxu0 0
  %1207 = vmatpush2.bf16.msra.mxu0 0
  %1208 = vmatprep.subr.bf16.mxu0 0
  %1209 = vmatpush2.bf16.msra.mxu0 0
  %1210 = vmatprep.subr.bf16.mxu0 0
  %1211 = vmatpush2.bf16.msra.mxu0 0
  %1212 = vmatprep.subr.bf16.mxu0 0
  %1213 = vmatpush2.bf16.msra.mxu0 0
  %1214 = vmatprep.subr.bf16.mxu0 0
  %1215 = vmatpush2.bf16.msra.mxu0 0
  %1216 = vmatprep.subr.bf16.mxu0 0
  %1217 = vmatpush2.bf16.msra.mxu0 0
  %1218 = vmatprep.subr.bf16.mxu0 0
  %1219 = vmatpush2.bf16.msra.mxu0 0
  %1220 = vmatprep.mubr.bf16.mxu0 0
  %1221 = vmatmul.mubr.bf16.gmra.mxu0 %v1186
  %v1222 = vpop.f32.mrf.mxu0
  %v1223 = vadd.f32 %v1183, %v1222
  %v1224 = vpop.f32.mrf.mxu0
  %v1225 = vpop.f32.mrf.mxu0
  %v1226 = vadd.f32 %v1183, %v1225
  %v1227 = vpop.f32.mrf.mxu0
  %1228 = vdwg.mxu0
  %1230 = vrot.lane.b32.xlu0 %v1223, 96
  %v1231 = vpop.permute.xlu0 %1230
  %v1232 = vsel %vm195, %v1223, 0
  %v1234 = vsel %vm195, %v1231, 0
  %1236 = vmatprep.subr.mxu0 0.0
  %1237 = vmatpush1.xpose.msra.mxu0 0.0
  %1238 = vmatprep.subr.mxu0 0.0
  %1239 = vmatpush1.xpose.msra.mxu0 0.0
  %1240 = vmatprep.subr.mxu0 0.0
  %1241 = vmatpush1.xpose.msra.mxu0 0.0
  %1242 = vmatprep.subr.mxu0 0.0
  %1243 = vmatpush1.xpose.msra.mxu0 0.0
  %1244 = vmatprep.subr.mxu0 0.0
  %1245 = vmatpush1.xpose.msra.mxu0 0.0
  %1246 = vmatprep.subr.mxu0 0.0
  %1247 = vmatpush1.xpose.msra.mxu0 0.0
  %1248 = vmatprep.subr.mxu0 0.0
  %1249 = vmatpush1.xpose.msra.mxu0 0.0
  %1250 = vmatprep.subr.mxu0 0.0
  %1251 = vmatpush1.xpose.msra.mxu0 0.0
  %1252 = vmatprep.subr.mxu0 0.0
  %1253 = vmatpush1.xpose.msra.mxu0 0.0
  %1254 = vmatprep.subr.mxu0 0.0
  %1255 = vmatpush1.xpose.msra.mxu0 0.0
  %1256 = vmatprep.subr.mxu0 0.0
  %1257 = vmatpush1.xpose.msra.mxu0 0.0
  %1258 = vmatprep.subr.mxu0 0.0
  %1259 = vmatpush1.xpose.msra.mxu0 0.0
  %1260 = vmatprep.subr.mxu0 0.0
  %1261 = vmatpush1.xpose.msra.mxu0 0.0
  %1262 = vmatprep.subr.mxu0 0.0
  %1263 = vmatpush1.xpose.msra.mxu0 0.0
  %1264 = vmatprep.subr.mxu0 0.0
  %1265 = vmatpush1.xpose.msra.mxu0 0.0
  %1266 = vmatprep.subr.mxu0 0.0
  %1267 = vmatpush1.xpose.msra.mxu0 %v1234
  %1268 = vmatprep.subr.mxu0 0.0
  %1269 = vmatpush2.xpose.msra.mxu0 0.0
  %1270 = vmatprep.subr.mxu0 0.0
  %1271 = vmatpush2.xpose.msra.mxu0 0.0
  %1272 = vmatprep.subr.mxu0 0.0
  %1273 = vmatpush2.xpose.msra.mxu0 0.0
  %1274 = vmatprep.subr.mxu0 0.0
  %1275 = vmatpush2.xpose.msra.mxu0 0.0
  %1276 = vmatprep.subr.mxu0 0.0
  %1277 = vmatpush2.xpose.msra.mxu0 0.0
  %1278 = vmatprep.subr.mxu0 0.0
  %1279 = vmatpush2.xpose.msra.mxu0 0.0
  %1280 = vmatprep.subr.mxu0 0.0
  %1281 = vmatpush2.xpose.msra.mxu0 0.0
  %1282 = vmatprep.subr.mxu0 0.0
  %1283 = vmatpush2.xpose.msra.mxu0 0.0
  %1284 = vmatprep.subr.mxu0 0.0
  %1285 = vmatpush2.xpose.msra.mxu0 0.0
  %1286 = vmatprep.subr.mxu0 0.0
  %1287 = vmatpush2.xpose.msra.mxu0 0.0
  %1288 = vmatprep.subr.mxu0 0.0
  %1289 = vmatpush2.xpose.msra.mxu0 0.0
  %1290 = vmatprep.subr.mxu0 0.0
  %1291 = vmatpush2.xpose.msra.mxu0 0.0
  %1292 = vmatprep.subr.mxu0 0.0
  %1293 = vmatpush2.xpose.msra.mxu0 0.0
  %1294 = vmatprep.subr.mxu0 0.0
  %1295 = vmatpush2.xpose.msra.mxu0 0.0
  %1296 = vmatprep.subr.mxu0 0.0
  %1297 = vmatpush2.xpose.msra.mxu0 0.0
  %1298 = vmatprep.subr.mxu0 0.0
  %1299 = vmatpush2.xpose.msra.mxu0 0.0
  %1300 = vmatprep.mubr.f32.mxu0 0.0
  %1301 = vmatmul.mubr.f32.gmra.mxu0 %v1232
  %v1302 = vpop.f32.mrf.mxu0
  %v1303 = vadd.f32 0.0, %v1302
  %v1304 = vpop.f32.mrf.mxu0
  %1305 = vdwg.mxu0
  %v1306 = vmul.f32 %v1303, 0.25
  %v1307 = vadd.f32 %v1306, %v274
  %v1308 = vsel %vm276, %v1307, -inf
  %1309 = vmax.xlane.f32.xlu0 %v1308
  %v1310 = vpop.xlane.xlu0 %1309
  %v1311 = vsub.f32 %v1307, %v1310
  %v1312 = vmul.f32 %v1311, 1.442695
  %v1313 = vpow.pop %v1312
  %v1314 = vsel %vm276, %v1313, 0.0
  %1315 = vadd.xlane.f32.xlu0 %v1314
  %v1316 = vpop.xlane.xlu0 %1315
  %v1317 = vrcp.pop %v1316
  %v1318 = vmul.f32 %v1313, %v1317
  %1319 = vrot.lane.b32.xlu0 %v1223, 64
  %v1320 = vpop.permute.xlu0 %1319
  %v1323 = vsel %vm276, %v1318, 0
  %1325 = vmatprep.subr.mxu0 0.0
  %1326 = vmatpush1.msra.mxu0 0.0
  %1327 = vmatprep.subr.mxu0 0.0
  %1328 = vmatpush1.msra.mxu0 0.0
  %1329 = vmatprep.subr.mxu0 0.0
  %1330 = vmatpush1.msra.mxu0 0.0
  %1331 = vmatprep.subr.mxu0 0.0
  %1332 = vmatpush1.msra.mxu0 0.0
  %1333 = vmatprep.subr.mxu0 0.0
  %1334 = vmatpush1.msra.mxu0 0.0
  %1335 = vmatprep.subr.mxu0 0.0
  %1336 = vmatpush1.msra.mxu0 0.0
  %1337 = vmatprep.subr.mxu0 0.0
  %1338 = vmatpush1.msra.mxu0 0.0
  %1339 = vmatprep.subr.mxu0 0.0
  %1340 = vmatpush1.msra.mxu0 0.0
  %1341 = vmatprep.subr.mxu0 0.0
  %1342 = vmatpush1.msra.mxu0 0.0
  %1343 = vmatprep.subr.mxu0 0.0
  %1344 = vmatpush1.msra.mxu0 0.0
  %1345 = vmatprep.subr.mxu0 0.0
  %1346 = vmatpush1.msra.mxu0 0.0
  %1347 = vmatprep.subr.mxu0 0.0
  %1348 = vmatpush1.msra.mxu0 0.0
  %1349 = vmatprep.subr.mxu0 0.0
  %1350 = vmatpush1.msra.mxu0 0.0
  %1351 = vmatprep.subr.mxu0 0.0
  %1352 = vmatpush1.msra.mxu0 0.0
  %1353 = vmatprep.subr.mxu0 0.0
  %1354 = vmatpush1.msra.mxu0 0.0
  %1355 = vmatprep.subr.mxu0 0.0
  %1356 = vmatpush1.msra.mxu0 %v1320
  %1357 = vmatprep.subr.mxu0 0.0
  %1358 = vmatpush2.msra.mxu0 0.0
  %1359 = vmatprep.subr.mxu0 0.0
  %1360 = vmatpush2.msra.mxu0 0.0
  %1361 = vmatprep.subr.mxu0 0.0
  %1362 = vmatpush2.msra.mxu0 0.0
  %1363 = vmatprep.subr.mxu0 0.0
  %1364 = vmatpush2.msra.mxu0 0.0
  %1365 = vmatprep.subr.mxu0 0.0
  %1366 = vmatpush2.msra.mxu0 0.0
  %1367 = vmatprep.subr.mxu0 0.0
  %1368 = vmatpush2.msra.mxu0 0.0
  %1369 = vmatprep.subr.mxu0 0.0
  %1370 = vmatpush2.msra.mxu0 0.0
  %1371 = vmatprep.subr.mxu0 0.0
  %1372 = vmatpush2.msra.mxu0 0.0
  %1373 = vmatprep.subr.mxu0 0.0
  %1374 = vmatpush2.msra.mxu0 0.0
  %1375 = vmatprep.subr.mxu0 0.0
  %1376 = vmatpush2.msra.mxu0 0.0
  %1377 = vmatprep.subr.mxu0 0.0
  %1378 = vmatpush2.msra.mxu0 0.0
  %1379 = vmatprep.subr.mxu0 0.0
  %1380 = vmatpush2.msra.mxu0 0.0
  %1381 = vmatprep.subr.mxu0 0.0
  %1382 = vmatpush2.msra.mxu0 0.0
  %1383 = vmatprep.subr.mxu0 0.0
  %1384 = vmatpush2.msra.mxu0 0.0
  %1385 = vmatprep.subr.mxu0 0.0
  %1386 = vmatpush2.msra.mxu0 0.0
  %1387 = vmatprep.subr.mxu0 0.0
  %1388 = vmatpush2.msra.mxu0 0.0
  %1389 = vmatprep.mubr.f32.mxu0 0.0
  %1390 = vmatmul.mubr.f32.gmra.mxu0 %v1323
  %v1391 = vpop.f32.mrf.mxu0
  %v1392 = vadd.f32 0.0, %v1391
  %v1393 = vpop.f32.mrf.mxu0
  %1394 = vdwg.mxu0
  %1395 = vrot.lane.b32.xlu0 %v1223, 112
  %v1396 = vpop.permute.xlu0 %1395
  %1397 = vrot.lane.b32.xlu0 %v1223, 80
  %v1398 = vpop.permute.xlu0 %1397
  %v1399 = vsel %vm195, %v1396, 0
  %v1401 = vsel %vm195, %v1398, 0
  %1403 = vmatprep.subr.mxu0 0.0
  %1404 = vmatpush1.xpose.msra.mxu0 0.0
  %1405 = vmatprep.subr.mxu0 0.0
  %1406 = vmatpush1.xpose.msra.mxu0 0.0
  %1407 = vmatprep.subr.mxu0 0.0
  %1408 = vmatpush1.xpose.msra.mxu0 0.0
  %1409 = vmatprep.subr.mxu0 0.0
  %1410 = vmatpush1.xpose.msra.mxu0 0.0
  %1411 = vmatprep.subr.mxu0 0.0
  %1412 = vmatpush1.xpose.msra.mxu0 0.0
  %1413 = vmatprep.subr.mxu0 0.0
  %1414 = vmatpush1.xpose.msra.mxu0 0.0
  %1415 = vmatprep.subr.mxu0 0.0
  %1416 = vmatpush1.xpose.msra.mxu0 0.0
  %1417 = vmatprep.subr.mxu0 0.0
  %1418 = vmatpush1.xpose.msra.mxu0 0.0
  %1419 = vmatprep.subr.mxu0 0.0
  %1420 = vmatpush1.xpose.msra.mxu0 0.0
  %1421 = vmatprep.subr.mxu0 0.0
  %1422 = vmatpush1.xpose.msra.mxu0 0.0
  %1423 = vmatprep.subr.mxu0 0.0
  %1424 = vmatpush1.xpose.msra.mxu0 0.0
  %1425 = vmatprep.subr.mxu0 0.0
  %1426 = vmatpush1.xpose.msra.mxu0 0.0
  %1427 = vmatprep.subr.mxu0 0.0
  %1428 = vmatpush1.xpose.msra.mxu0 0.0
  %1429 = vmatprep.subr.mxu0 0.0
  %1430 = vmatpush1.xpose.msra.mxu0 0.0
  %1431 = vmatprep.subr.mxu0 0.0
  %1432 = vmatpush1.xpose.msra.mxu0 0.0
  %1433 = vmatprep.subr.mxu0 0.0
  %1434 = vmatpush1.xpose.msra.mxu0 %v1401
  %1435 = vmatprep.subr.mxu0 0.0
  %1436 = vmatpush2.xpose.msra.mxu0 0.0
  %1437 = vmatprep.subr.mxu0 0.0
  %1438 = vmatpush2.xpose.msra.mxu0 0.0
  %1439 = vmatprep.subr.mxu0 0.0
  %1440 = vmatpush2.xpose.msra.mxu0 0.0
  %1441 = vmatprep.subr.mxu0 0.0
  %1442 = vmatpush2.xpose.msra.mxu0 0.0
  %1443 = vmatprep.subr.mxu0 0.0
  %1444 = vmatpush2.xpose.msra.mxu0 0.0
  %1445 = vmatprep.subr.mxu0 0.0
  %1446 = vmatpush2.xpose.msra.mxu0 0.0
  %1447 = vmatprep.subr.mxu0 0.0
  %1448 = vmatpush2.xpose.msra.mxu0 0.0
  %1449 = vmatprep.subr.mxu0 0.0
  %1450 = vmatpush2.xpose.msra.mxu0 0.0
  %1451 = vmatprep.subr.mxu0 0.0
  %1452 = vmatpush2.xpose.msra.mxu0 0.0
  %1453 = vmatprep.subr.mxu0 0.0
  %1454 = vmatpush2.xpose.msra.mxu0 0.0
  %1455 = vmatprep.subr.mxu0 0.0
  %1456 = vmatpush2.xpose.msra.mxu0 0.0
  %1457 = vmatprep.subr.mxu0 0.0
  %1458 = vmatpush2.xpose.msra.mxu0 0.0
  %1459 = vmatprep.subr.mxu0 0.0
  %1460 = vmatpush2.xpose.msra.mxu0 0.0
  %1461 = vmatprep.subr.mxu0 0.0
  %1462 = vmatpush2.xpose.msra.mxu0 0.0
  %1463 = vmatprep.subr.mxu0 0.0
  %1464 = vmatpush2.xpose.msra.mxu0 0.0
  %1465 = vmatprep.subr.mxu0 0.0
  %1466 = vmatpush2.xpose.msra.mxu0 0.0
  %1467 = vmatprep.mubr.f32.mxu0 0.0
  %1468 = vmatmul.mubr.f32.gmra.mxu0 %v1399
  %v1469 = vpop.f32.mrf.mxu0
  %v1470 = vadd.f32 0.0, %v1469
  %v1471 = vpop.f32.mrf.mxu0
  %1472 = vdwg.mxu0
  %v1473 = vmul.f32 %v1470, 0.25
  %v1474 = vadd.f32 %v1473, %v274
  %v1475 = vsel %vm276, %v1474, -inf
  %1476 = vmax.xlane.f32.xlu0 %v1475
  %v1477 = vpop.xlane.xlu0 %1476
  %v1478 = vsub.f32 %v1474, %v1477
  %v1479 = vmul.f32 %v1478, 1.442695
  %v1480 = vpow.pop %v1479
  %v1481 = vsel %vm276, %v1480, 0.0
  %1482 = vadd.xlane.f32.xlu0 %v1481
  %v1483 = vpop.xlane.xlu0 %1482
  %v1484 = vrcp.pop %v1483
  %v1485 = vmul.f32 %v1480, %v1484
  %1486 = vrot.lane.b32.xlu0 %v1223, 48
  %v1487 = vpop.permute.xlu0 %1486
  %v1490 = vsel %vm276, %v1485, 0
  %1492 = vmatprep.subr.mxu0 0.0
  %1493 = vmatpush1.msra.mxu0 0.0
  %1494 = vmatprep.subr.mxu0 0.0
  %1495 = vmatpush1.msra.mxu0 0.0
  %1496 = vmatprep.subr.mxu0 0.0
  %1497 = vmatpush1.msra.mxu0 0.0
  %1498 = vmatprep.subr.mxu0 0.0
  %1499 = vmatpush1.msra.mxu0 0.0
  %1500 = vmatprep.subr.mxu0 0.0
  %1501 = vmatpush1.msra.mxu0 0.0
  %1502 = vmatprep.subr.mxu0 0.0
  %1503 = vmatpush1.msra.mxu0 0.0
  %1504 = vmatprep.subr.mxu0 0.0
  %1505 = vmatpush1.msra.mxu0 0.0
  %1506 = vmatprep.subr.mxu0 0.0
  %1507 = vmatpush1.msra.mxu0 0.0
  %1508 = vmatprep.subr.mxu0 0.0
  %1509 = vmatpush1.msra.mxu0 0.0
  %1510 = vmatprep.subr.mxu0 0.0
  %1511 = vmatpush1.msra.mxu0 0.0
  %1512 = vmatprep.subr.mxu0 0.0
  %1513 = vmatpush1.msra.mxu0 0.0
  %1514 = vmatprep.subr.mxu0 0.0
  %1515 = vmatpush1.msra.mxu0 0.0
  %1516 = vmatprep.subr.mxu0 0.0
  %1517 = vmatpush1.msra.mxu0 0.0
  %1518 = vmatprep.subr.mxu0 0.0
  %1519 = vmatpush1.msra.mxu0 0.0
  %1520 = vmatprep.subr.mxu0 0.0
  %1521 = vmatpush1.msra.mxu0 0.0
  %1522 = vmatprep.subr.mxu0 0.0
  %1523 = vmatpush1.msra.mxu0 %v1487
  %1524 = vmatprep.subr.mxu0 0.0
  %1525 = vmatpush2.msra.mxu0 0.0
  %1526 = vmatprep.subr.mxu0 0.0
  %1527 = vmatpush2.msra.mxu0 0.0
  %1528 = vmatprep.subr.mxu0 0.0
  %1529 = vmatpush2.msra.mxu0 0.0
  %1530 = vmatprep.subr.mxu0 0.0
  %1531 = vmatpush2.msra.mxu0 0.0
  %1532 = vmatprep.subr.mxu0 0.0
  %1533 = vmatpush2.msra.mxu0 0.0
  %1534 = vmatprep.subr.mxu0 0.0
  %1535 = vmatpush2.msra.mxu0 0.0
  %1536 = vmatprep.subr.mxu0 0.0
  %1537 = vmatpush2.msra.mxu0 0.0
  %1538 = vmatprep.subr.mxu0 0.0
  %1539 = vmatpush2.msra.mxu0 0.0
  %1540 = vmatprep.subr.mxu0 0.0
  %1541 = vmatpush2.msra.mxu0 0.0
  %1542 = vmatprep.subr.mxu0 0.0
  %1543 = vmatpush2.msra.mxu0 0.0
  %1544 = vmatprep.subr.mxu0 0.0
  %1545 = vmatpush2.msra.mxu0 0.0
  %1546 = vmatprep.subr.mxu0 0.0
  %1547 = vmatpush2.msra.mxu0 0.0
  %1548 = vmatprep.subr.mxu0 0.0
  %1549 = vmatpush2.msra.mxu0 0.0
  %1550 = vmatprep.subr.mxu0 0.0
  %1551 = vmatpush2.msra.mxu0 0.0
  %1552 = vmatprep.subr.mxu0 0.0
  %1553 = vmatpush2.msra.mxu0 0.0
  %1554 = vmatprep.subr.mxu0 0.0
  %1555 = vmatpush2.msra.mxu0 0.0
  %1556 = vmatprep.mubr.f32.mxu0 0.0
  %1557 = vmatmul.mubr.f32.gmra.mxu0 %v1490
  %v1558 = vpop.f32.mrf.mxu0
  %v1559 = vadd.f32 0.0, %v1558
  %v1560 = vpop.f32.mrf.mxu0
  %1561 = vdwg.mxu0
  %1563 = vrot.lane.b32.xlu0 %v1559, 16
  %v1564 = vpop.permute.xlu0 %1563
  %v1566 = vsel %vm195, %v1392, %v1564
  %1568 = vrot.lane.b32.xlu0 %v1226, 96
  %v1569 = vpop.permute.xlu0 %1568
  %v1570 = vsel %vm195, %v1226, 0
  %v1572 = vsel %vm195, %v1569, 0
  %1574 = vmatprep.subr.mxu0 0.0
  %1575 = vmatpush1.xpose.msra.mxu0 0.0
  %1576 = vmatprep.subr.mxu0 0.0
  %1577 = vmatpush1.xpose.msra.mxu0 0.0
  %1578 = vmatprep.subr.mxu0 0.0
  %1579 = vmatpush1.xpose.msra.mxu0 0.0
  %1580 = vmatprep.subr.mxu0 0.0
  %1581 = vmatpush1.xpose.msra.mxu0 0.0
  %1582 = vmatprep.subr.mxu0 0.0
  %1583 = vmatpush1.xpose.msra.mxu0 0.0
  %1584 = vmatprep.subr.mxu0 0.0
  %1585 = vmatpush1.xpose.msra.mxu0 0.0
  %1586 = vmatprep.subr.mxu0 0.0
  %1587 = vmatpush1.xpose.msra.mxu0 0.0
  %1588 = vmatprep.subr.mxu0 0.0
  %1589 = vmatpush1.xpose.msra.mxu0 0.0
  %1590 = vmatprep.subr.mxu0 0.0
  %1591 = vmatpush1.xpose.msra.mxu0 0.0
  %1592 = vmatprep.subr.mxu0 0.0
  %1593 = vmatpush1.xpose.msra.mxu0 0.0
  %1594 = vmatprep.subr.mxu0 0.0
  %1595 = vmatpush1.xpose.msra.mxu0 0.0
  %1596 = vmatprep.subr.mxu0 0.0
  %1597 = vmatpush1.xpose.msra.mxu0 0.0
  %1598 = vmatprep.subr.mxu0 0.0
  %1599 = vmatpush1.xpose.msra.mxu0 0.0
  %1600 = vmatprep.subr.mxu0 0.0
  %1601 = vmatpush1.xpose.msra.mxu0 0.0
  %1602 = vmatprep.subr.mxu0 0.0
  %1603 = vmatpush1.xpose.msra.mxu0 0.0
  %1604 = vmatprep.subr.mxu0 0.0
  %1605 = vmatpush1.xpose.msra.mxu0 %v1572
  %1606 = vmatprep.subr.mxu0 0.0
  %1607 = vmatpush2.xpose.msra.mxu0 0.0
  %1608 = vmatprep.subr.mxu0 0.0
  %1609 = vmatpush2.xpose.msra.mxu0 0.0
  %1610 = vmatprep.subr.mxu0 0.0
  %1611 = vmatpush2.xpose.msra.mxu0 0.0
  %1612 = vmatprep.subr.mxu0 0.0
  %1613 = vmatpush2.xpose.msra.mxu0 0.0
  %1614 = vmatprep.subr.mxu0 0.0
  %1615 = vmatpush2.xpose.msra.mxu0 0.0
  %1616 = vmatprep.subr.mxu0 0.0
  %1617 = vmatpush2.xpose.msra.mxu0 0.0
  %1618 = vmatprep.subr.mxu0 0.0
  %1619 = vmatpush2.xpose.msra.mxu0 0.0
  %1620 = vmatprep.subr.mxu0 0.0
  %1621 = vmatpush2.xpose.msra.mxu0 0.0
  %1622 = vmatprep.subr.mxu0 0.0
  %1623 = vmatpush2.xpose.msra.mxu0 0.0
  %1624 = vmatprep.subr.mxu0 0.0
  %1625 = vmatpush2.xpose.msra.mxu0 0.0
  %1626 = vmatprep.subr.mxu0 0.0
  %1627 = vmatpush2.xpose.msra.mxu0 0.0
  %1628 = vmatprep.subr.mxu0 0.0
  %1629 = vmatpush2.xpose.msra.mxu0 0.0
  %1630 = vmatprep.subr.mxu0 0.0
  %1631 = vmatpush2.xpose.msra.mxu0 0.0
  %1632 = vmatprep.subr.mxu0 0.0
  %1633 = vmatpush2.xpose.msra.mxu0 0.0
  %1634 = vmatprep.subr.mxu0 0.0
  %1635 = vmatpush2.xpose.msra.mxu0 0.0
  %1636 = vmatprep.subr.mxu0 0.0
  %1637 = vmatpush2.xpose.msra.mxu0 0.0
  %1638 = vmatprep.mubr.f32.mxu0 0.0
  %1639 = vmatmul.mubr.f32.gmra.mxu0 %v1570
  %v1640 = vpop.f32.mrf.mxu0
  %v1641 = vadd.f32 0.0, %v1640
  %v1642 = vpop.f32.mrf.mxu0
  %1643 = vdwg.mxu0
  %v1644 = vmul.f32 %v1641, 0.25
  %v1645 = vadd.f32 %v1644, %v617
  %v1646 = vsel %vm276, %v1645, -inf
  %1647 = vmax.xlane.f32.xlu0 %v1646
  %v1648 = vpop.xlane.xlu0 %1647
  %v1649 = vsub.f32 %v1645, %v1648
  %v1650 = vmul.f32 %v1649, 1.442695
  %v1651 = vpow.pop %v1650
  %v1652 = vsel %vm276, %v1651, 0.0
  %1653 = vadd.xlane.f32.xlu0 %v1652
  %v1654 = vpop.xlane.xlu0 %1653
  %v1655 = vrcp.pop %v1654
  %v1656 = vmul.f32 %v1651, %v1655
  %1657 = vrot.lane.b32.xlu0 %v1226, 64
  %v1658 = vpop.permute.xlu0 %1657
  %v1661 = vsel %vm276, %v1656, 0
  %1663 = vmatprep.subr.mxu0 0.0
  %1664 = vmatpush1.msra.mxu0 0.0
  %1665 = vmatprep.subr.mxu0 0.0
  %1666 = vmatpush1.msra.mxu0 0.0
  %1667 = vmatprep.subr.mxu0 0.0
  %1668 = vmatpush1.msra.mxu0 0.0
  %1669 = vmatprep.subr.mxu0 0.0
  %1670 = vmatpush1.msra.mxu0 0.0
  %1671 = vmatprep.subr.mxu0 0.0
  %1672 = vmatpush1.msra.mxu0 0.0
  %1673 = vmatprep.subr.mxu0 0.0
  %1674 = vmatpush1.msra.mxu0 0.0
  %1675 = vmatprep.subr.mxu0 0.0
  %1676 = vmatpush1.msra.mxu0 0.0
  %1677 = vmatprep.subr.mxu0 0.0
  %1678 = vmatpush1.msra.mxu0 0.0
  %1679 = vmatprep.subr.mxu0 0.0
  %1680 = vmatpush1.msra.mxu0 0.0
  %1681 = vmatprep.subr.mxu0 0.0
  %1682 = vmatpush1.msra.mxu0 0.0
  %1683 = vmatprep.subr.mxu0 0.0
  %1684 = vmatpush1.msra.mxu0 0.0
  %1685 = vmatprep.subr.mxu0 0.0
  %1686 = vmatpush1.msra.mxu0 0.0
  %1687 = vmatprep.subr.mxu0 0.0
  %1688 = vmatpush1.msra.mxu0 0.0
  %1689 = vmatprep.subr.mxu0 0.0
  %1690 = vmatpush1.msra.mxu0 0.0
  %1691 = vmatprep.subr.mxu0 0.0
  %1692 = vmatpush1.msra.mxu0 0.0
  %1693 = vmatprep.subr.mxu0 0.0
  %1694 = vmatpush1.msra.mxu0 %v1658
  %1695 = vmatprep.subr.mxu0 0.0
  %1696 = vmatpush2.msra.mxu0 0.0
  %1697 = vmatprep.subr.mxu0 0.0
  %1698 = vmatpush2.msra.mxu0 0.0
  %1699 = vmatprep.subr.mxu0 0.0
  %1700 = vmatpush2.msra.mxu0 0.0
  %1701 = vmatprep.subr.mxu0 0.0
  %1702 = vmatpush2.msra.mxu0 0.0
  %1703 = vmatprep.subr.mxu0 0.0
  %1704 = vmatpush2.msra.mxu0 0.0
  %1705 = vmatprep.subr.mxu0 0.0
  %1706 = vmatpush2.msra.mxu0 0.0
  %1707 = vmatprep.subr.mxu0 0.0
  %1708 = vmatpush2.msra.mxu0 0.0
  %1709 = vmatprep.subr.mxu0 0.0
  %1710 = vmatpush2.msra.mxu0 0.0
  %1711 = vmatprep.subr.mxu0 0.0
  %1712 = vmatpush2.msra.mxu0 0.0
  %1713 = vmatprep.subr.mxu0 0.0
  %1714 = vmatpush2.msra.mxu0 0.0
  %1715 = vmatprep.subr.mxu0 0.0
  %1716 = vmatpush2.msra.mxu0 0.0
  %1717 = vmatprep.subr.mxu0 0.0
  %1718 = vmatpush2.msra.mxu0 0.0
  %1719 = vmatprep.subr.mxu0 0.0
  %1720 = vmatpush2.msra.mxu0 0.0
  %1721 = vmatprep.subr.mxu0 0.0
  %1722 = vmatpush2.msra.mxu0 0.0
  %1723 = vmatprep.subr.mxu0 0.0
  %1724 = vmatpush2.msra.mxu0 0.0
  %1725 = vmatprep.subr.mxu0 0.0
  %1726 = vmatpush2.msra.mxu0 0.0
  %1727 = vmatprep.mubr.f32.mxu0 0.0
  %1728 = vmatmul.mubr.f32.gmra.mxu0 %v1661
  %v1729 = vpop.f32.mrf.mxu0
  %v1730 = vadd.f32 0.0, %v1729
  %v1731 = vpop.f32.mrf.mxu0
  %1732 = vdwg.mxu0
  %1733 = vrot.lane.b32.xlu0 %v1226, 112
  %v1734 = vpop.permute.xlu0 %1733
  %1735 = vrot.lane.b32.xlu0 %v1226, 80
  %v1736 = vpop.permute.xlu0 %1735
  %v1737 = vsel %vm195, %v1734, 0
  %v1739 = vsel %vm195, %v1736, 0
  %1741 = vmatprep.subr.mxu0 0.0
  %1742 = vmatpush1.xpose.msra.mxu0 0.0
  %1743 = vmatprep.subr.mxu0 0.0
  %1744 = vmatpush1.xpose.msra.mxu0 0.0
  %1745 = vmatprep.subr.mxu0 0.0
  %1746 = vmatpush1.xpose.msra.mxu0 0.0
  %1747 = vmatprep.subr.mxu0 0.0
  %1748 = vmatpush1.xpose.msra.mxu0 0.0
  %1749 = vmatprep.subr.mxu0 0.0
  %1750 = vmatpush1.xpose.msra.mxu0 0.0
  %1751 = vmatprep.subr.mxu0 0.0
  %1752 = vmatpush1.xpose.msra.mxu0 0.0
  %1753 = vmatprep.subr.mxu0 0.0
  %1754 = vmatpush1.xpose.msra.mxu0 0.0
  %1755 = vmatprep.subr.mxu0 0.0
  %1756 = vmatpush1.xpose.msra.mxu0 0.0
  %1757 = vmatprep.subr.mxu0 0.0
  %1758 = vmatpush1.xpose.msra.mxu0 0.0
  %1759 = vmatprep.subr.mxu0 0.0
  %1760 = vmatpush1.xpose.msra.mxu0 0.0
  %1761 = vmatprep.subr.mxu0 0.0
  %1762 = vmatpush1.xpose.msra.mxu0 0.0
  %1763 = vmatprep.subr.mxu0 0.0
  %1764 = vmatpush1.xpose.msra.mxu0 0.0
  %1765 = vmatprep.subr.mxu0 0.0
  %1766 = vmatpush1.xpose.msra.mxu0 0.0
  %1767 = vmatprep.subr.mxu0 0.0
  %1768 = vmatpush1.xpose.msra.mxu0 0.0
  %1769 = vmatprep.subr.mxu0 0.0
  %1770 = vmatpush1.xpose.msra.mxu0 0.0
  %1771 = vmatprep.subr.mxu0 0.0
  %1772 = vmatpush1.xpose.msra.mxu0 %v1739
  %1773 = vmatprep.subr.mxu0 0.0
  %1774 = vmatpush2.xpose.msra.mxu0 0.0
  %1775 = vmatprep.subr.mxu0 0.0
  %1776 = vmatpush2.xpose.msra.mxu0 0.0
  %1777 = vmatprep.subr.mxu0 0.0
  %1778 = vmatpush2.xpose.msra.mxu0 0.0
  %1779 = vmatprep.subr.mxu0 0.0
  %1780 = vmatpush2.xpose.msra.mxu0 0.0
  %1781 = vmatprep.subr.mxu0 0.0
  %1782 = vmatpush2.xpose.msra.mxu0 0.0
  %1783 = vmatprep.subr.mxu0 0.0
  %1784 = vmatpush2.xpose.msra.mxu0 0.0
  %1785 = vmatprep.subr.mxu0 0.0
  %1786 = vmatpush2.xpose.msra.mxu0 0.0
  %1787 = vmatprep.subr.mxu0 0.0
  %1788 = vmatpush2.xpose.msra.mxu0 0.0
  %1789 = vmatprep.subr.mxu0 0.0
  %1790 = vmatpush2.xpose.msra.mxu0 0.0
  %1791 = vmatprep.subr.mxu0 0.0
  %1792 = vmatpush2.xpose.msra.mxu0 0.0
  %1793 = vmatprep.subr.mxu0 0.0
  %1794 = vmatpush2.xpose.msra.mxu0 0.0
  %1795 = vmatprep.subr.mxu0 0.0
  %1796 = vmatpush2.xpose.msra.mxu0 0.0
  %1797 = vmatprep.subr.mxu0 0.0
  %1798 = vmatpush2.xpose.msra.mxu0 0.0
  %1799 = vmatprep.subr.mxu0 0.0
  %1800 = vmatpush2.xpose.msra.mxu0 0.0
  %1801 = vmatprep.subr.mxu0 0.0
  %1802 = vmatpush2.xpose.msra.mxu0 0.0
  %1803 = vmatprep.subr.mxu0 0.0
  %1804 = vmatpush2.xpose.msra.mxu0 0.0
  %1805 = vmatprep.mubr.f32.mxu0 0.0
  %1806 = vmatmul.mubr.f32.gmra.mxu0 %v1737
  %v1807 = vpop.f32.mrf.mxu0
  %v1808 = vadd.f32 0.0, %v1807
  %v1809 = vpop.f32.mrf.mxu0
  %1810 = vdwg.mxu0
  %v1811 = vmul.f32 %v1808, 0.25
  %v1812 = vadd.f32 %v1811, %v617
  %v1813 = vsel %vm276, %v1812, -inf
  %1814 = vmax.xlane.f32.xlu0 %v1813
  %v1815 = vpop.xlane.xlu0 %1814
  %v1816 = vsub.f32 %v1812, %v1815
  %v1817 = vmul.f32 %v1816, 1.442695
  %v1818 = vpow.pop %v1817
  %v1819 = vsel %vm276, %v1818, 0.0
  %1820 = vadd.xlane.f32.xlu0 %v1819
  %v1821 = vpop.xlane.xlu0 %1820
  %v1822 = vrcp.pop %v1821
  %v1823 = vmul.f32 %v1818, %v1822
  %1824 = vrot.lane.b32.xlu0 %v1226, 48
  %v1825 = vpop.permute.xlu0 %1824
  %v1828 = vsel %vm276, %v1823, 0
  %1830 = vmatprep.subr.mxu0 0.0
  %1831 = vmatpush1.msra.mxu0 0.0
  %1832 = vmatprep.subr.mxu0 0.0
  %1833 = vmatpush1.msra.mxu0 0.0
  %1834 = vmatprep.subr.mxu0 0.0
  %1835 = vmatpush1.msra.mxu0 0.0
  %1836 = vmatprep.subr.mxu0 0.0
  %1837 = vmatpush1.msra.mxu0 0.0
  %1838 = vmatprep.subr.mxu0 0.0
  %1839 = vmatpush1.msra.mxu0 0.0
  %1840 = vmatprep.subr.mxu0 0.0
  %1841 = vmatpush1.msra.mxu0 0.0
  %1842 = vmatprep.subr.mxu0 0.0
  %1843 = vmatpush1.msra.mxu0 0.0
  %1844 = vmatprep.subr.mxu0 0.0
  %1845 = vmatpush1.msra.mxu0 0.0
  %1846 = vmatprep.subr.mxu0 0.0
  %1847 = vmatpush1.msra.mxu0 0.0
  %1848 = vmatprep.subr.mxu0 0.0
  %1849 = vmatpush1.msra.mxu0 0.0
  %1850 = vmatprep.subr.mxu0 0.0
  %1851 = vmatpush1.msra.mxu0 0.0
  %1852 = vmatprep.subr.mxu0 0.0
  %1853 = vmatpush1.msra.mxu0 0.0
  %1854 = vmatprep.subr.mxu0 0.0
  %1855 = vmatpush1.msra.mxu0 0.0
  %1856 = vmatprep.subr.mxu0 0.0
  %1857 = vmatpush1.msra.mxu0 0.0
  %1858 = vmatprep.subr.mxu0 0.0
  %1859 = vmatpush1.msra.mxu0 0.0
  %1860 = vmatprep.subr.mxu0 0.0
  %1861 = vmatpush1.msra.mxu0 %v1825
  %1862 = vmatprep.subr.mxu0 0.0
  %1863 = vmatpush2.msra.mxu0 0.0
  %1864 = vmatprep.subr.mxu0 0.0
  %1865 = vmatpush2.msra.mxu0 0.0
  %1866 = vmatprep.subr.mxu0 0.0
  %1867 = vmatpush2.msra.mxu0 0.0
  %1868 = vmatprep.subr.mxu0 0.0
  %1869 = vmatpush2.msra.mxu0 0.0
  %1870 = vmatprep.subr.mxu0 0.0
  %1871 = vmatpush2.msra.mxu0 0.0
  %1872 = vmatprep.subr.mxu0 0.0
  %1873 = vmatpush2.msra.mxu0 0.0
  %1874 = vmatprep.subr.mxu0 0.0
  %1875 = vmatpush2.msra.mxu0 0.0
  %1876 = vmatprep.subr.mxu0 0.0
  %1877 = vmatpush2.msra.mxu0 0.0
  %1878 = vmatprep.subr.mxu0 0.0
  %1879 = vmatpush2.msra.mxu0 0.0
  %1880 = vmatprep.subr.mxu0 0.0
  %1881 = vmatpush2.msra.mxu0 0.0
  %1882 = vmatprep.subr.mxu0 0.0
  %1883 = vmatpush2.msra.mxu0 0.0
  %1884 = vmatprep.subr.mxu0 0.0
  %1885 = vmatpush2.msra.mxu0 0.0
  %1886 = vmatprep.subr.mxu0 0.0
  %1887 = vmatpush2.msra.mxu0 0.0
  %1888 = vmatprep.subr.mxu0 0.0
  %1889 = vmatpush2.msra.mxu0 0.0
  %1890 = vmatprep.subr.mxu0 0.0
  %1891 = vmatpush2.msra.mxu0 0.0
  %1892 = vmatprep.subr.mxu0 0.0
  %1893 = vmatpush2.msra.mxu0 0.0
  %1894 = vmatprep.mubr.f32.mxu0 0.0
  %1895 = vmatmul.mubr.f32.gmra.mxu0 %v1828
  %v1896 = vpop.f32.mrf.mxu0
  %v1897 = vadd.f32 0.0, %v1896
  %v1898 = vpop.f32.mrf.mxu0
  %1899 = vdwg.mxu0
  %1901 = vrot.lane.b32.xlu0 %v1897, 16
  %v1902 = vpop.permute.xlu0 %1901
  %v1904 = vsel %vm195, %v1730, %v1902
  %s1905 = scalar_lea.vmem %s8, 32
  %v1906 = vld [vmem:[%s1905] sm:$0xff]
  %v1907 = vld [vmem:[%s1905 + $0x8] sm:$0xff]
  %v1908 = vld [vmem:[%s1905 + $0x10] sm:$0xff]
  %v1909 = vld [vmem:[%s1905 + $0x18] sm:$0xff]
  %v1910 = vpack.c.bf16 %v1904, %v1566
  %v1911 = vpack.c.bf16 %v1907, %v1906
  %v1912 = vpack.c.bf16 %v1909, %v1908
  %s1913 = scalar_lea.vmem %s9, 1
  %v1914 = vld [vmem:[%s1913] sm:$0x1]
  %v1916 = vlaneseq
  %v1917 = vshrl.u32 %v1916, 7
  %v1918 = vsub.s32 0, %v1917
  %v1919 = vrot.slane %v1914, %v1918
  %v1922 = vsel %vm87, %v1910, 0
  %1924 = vmatprep.subr.bf16.mxu0 0
  %1925 = vmatpush1.bf16.msra.mxu0 0
  %1926 = vmatprep.subr.bf16.mxu0 0
  %1927 = vmatpush1.bf16.msra.mxu0 0
  %1928 = vmatprep.subr.bf16.mxu0 0
  %1929 = vmatpush1.bf16.msra.mxu0 0
  %1930 = vmatprep.subr.bf16.mxu0 0
  %1931 = vmatpush1.bf16.msra.mxu0 0
  %1932 = vmatprep.subr.bf16.mxu0 0
  %1933 = vmatpush1.bf16.msra.mxu0 0
  %1934 = vmatprep.subr.bf16.mxu0 0
  %1935 = vmatpush1.bf16.msra.mxu0 0
  %1936 = vmatprep.subr.bf16.mxu0 0
  %1937 = vmatpush1.bf16.msra.mxu0 %v1912
  %1938 = vmatprep.subr.bf16.mxu0 0
  %1939 = vmatpush1.bf16.msra.mxu0 %v1911
  %1940 = vmatprep.subr.bf16.mxu0 0
  %1941 = vmatpush2.bf16.msra.mxu0 0
  %1942 = vmatprep.subr.bf16.mxu0 0
  %1943 = vmatpush2.bf16.msra.mxu0 0
  %1944 = vmatprep.subr.bf16.mxu0 0
  %1945 = vmatpush2.bf16.msra.mxu0 0
  %1946 = vmatprep.subr.bf16.mxu0 0
  %1947 = vmatpush2.bf16.msra.mxu0 0
  %1948 = vmatprep.subr.bf16.mxu0 0
  %1949 = vmatpush2.bf16.msra.mxu0 0
  %1950 = vmatprep.subr.bf16.mxu0 0
  %1951 = vmatpush2.bf16.msra.mxu0 0
  %1952 = vmatprep.subr.bf16.mxu0 0
  %1953 = vmatpush2.bf16.msra.mxu0 0
  %1954 = vmatprep.subr.bf16.mxu0 0
  %1955 = vmatpush2.bf16.msra.mxu0 0
  %1956 = vmatprep.mubr.bf16.mxu0 0
  %1957 = vmatmul.mubr.bf16.gmra.mxu0 %v1922
  %v1958 = vpop.f32.mrf.mxu0
  %v1959 = vadd.f32 %v1919, %v1958
  %v1960 = vpop.f32.mrf.mxu0
  %v1961 = vpop.f32.mrf.mxu0
  %v1962 = vadd.f32 %v1919, %v1961
  %v1963 = vpop.f32.mrf.mxu0
  %1964 = vdwg.mxu0
  %v1965 = vadd.f32 %v1167, %v1959
  %v1966 = vadd.f32 %v1168, %v1962
  %s1967 = scalar_lea.vmem %s14, 1
  %v1968 = vld [vmem:[%s1967] sm:$0x1]
  %s1969 = scalar_lea.vmem %s15, 1
  %v1970 = vld [vmem:[%s1969] sm:$0x1]
  %v1971 = vsel %vm87, %v1965, 0.0
  %1972 = vadd.xlane.f32.xlu0 %v1971
  %v1973 = vpop.xlane.xlu0 %1972
  %v1974 = vsel %vm87, %v1966, 0.0
  %1975 = vadd.xlane.f32.xlu0 %v1974
  %v1976 = vpop.xlane.xlu0 %1975
  %v1977 = vmul.f32 %v1973, %v94
  %v1978 = vmul.f32 %v1976, %v94
  %v1979 = vsub.f32 %v1965, %v1977
  %v1980 = vsub.f32 %v1966, %v1978
  %v1981 = vmul.f32 %v1979, %v1979
  %v1982 = vmul.f32 %v1980, %v1980
  %v1983 = vsel %vm87, %v1981, 0.0
  %1984 = vadd.xlane.f32.xlu0 %v1983
  %v1985 = vpop.xlane.xlu0 %1984
  %v1986 = vsel %vm87, %v1982, 0.0
  %1987 = vadd.xlane.f32.xlu0 %v1986
  %v1988 = vpop.xlane.xlu0 %1987
  %v1989 = vmul.f32 %v1985, %v94
  %v1990 = vmul.f32 %v1988, %v94
  %v1991 = vadd.f32 %v1989, 1e-12
  %v1992 = vadd.f32 %v1990, 1e-12
  %v1993 = vrsqrt.pop %v1991
  %v1994 = vrsqrt.pop %v1992
  %v1995 = vmul.f32 %v1979, %v1993
  %v1996 = vmul.f32 %v1980, %v1994
  %v1998 = vlaneseq
  %v1999 = vshrl.u32 %v1998, 7
  %v2000 = vsub.s32 0, %v1999
  %v2001 = vrot.slane %v1968, %v2000
  %v2003 = vmul.f32 %v1995, %v2001
  %v2004 = vmul.f32 %v1996, %v2001
  %v2006 = vlaneseq
  %v2007 = vshrl.u32 %v2006, 7
  %v2008 = vsub.s32 0, %v2007
  %v2009 = vrot.slane %v1970, %v2008
  %v2011 = vadd.f32 %v2003, %v2009
  %v2012 = vadd.f32 %v2004, %v2009
  %s2013 = scalar_lea.vmem %s10, 32
  %v2014 = vld [vmem:[%s2013] sm:$0xff]
  %v2015 = vld [vmem:[%s2013 + $0x8] sm:$0xff]
  %v2016 = vld [vmem:[%s2013 + $0x10] sm:$0xff]
  %v2017 = vld [vmem:[%s2013 + $0x18] sm:$0xff]
  %v2018 = vpack.c.bf16 %v2012, %v2011
  %v2019 = vpack.c.bf16 %v2015, %v2014
  %v2020 = vpack.c.bf16 %v2017, %v2016
  %s2021 = scalar_lea.vmem %s11, 1
  %v2022 = vld [vmem:[%s2021] sm:$0x1]
  %v2024 = vlaneseq
  %v2025 = vshrl.u32 %v2024, 7
  %v2026 = vsub.s32 0, %v2025
  %v2027 = vrot.slane %v2022, %v2026
  %v2030 = vsel %vm87, %v2018, 0
  %2032 = vmatprep.subr.bf16.mxu0 0
  %2033 = vmatpush1.bf16.msra.mxu0 0
  %2034 = vmatprep.subr.bf16.mxu0 0
  %2035 = vmatpush1.bf16.msra.mxu0 0
  %2036 = vmatprep.subr.bf16.mxu0 0
  %2037 = vmatpush1.bf16.msra.mxu0 0
  %2038 = vmatprep.subr.bf16.mxu0 0
  %2039 = vmatpush1.bf16.msra.mxu0 0
  %2040 = vmatprep.subr.bf16.mxu0 0
  %2041 = vmatpush1.bf16.msra.mxu0 0
  %2042 = vmatprep.subr.bf16.mxu0 0
  %2043 = vmatpush1.bf16.msra.mxu0 0
  %2044 = vmatprep.subr.bf16.mxu0 0
  %2045 = vmatpush1.bf16.msra.mxu0 %v2020
  %2046 = vmatprep.subr.bf16.mxu0 0
  %2047 = vmatpush1.bf16.msra.mxu0 %v2019
  %2048 = vmatprep.subr.bf16.mxu0 0
  %2049 = vmatpush2.bf16.msra.mxu0 0
  %2050 = vmatprep.subr.bf16.mxu0 0
  %2051 = vmatpush2.bf16.msra.mxu0 0
  %2052 = vmatprep.subr.bf16.mxu0 0
  %2053 = vmatpush2.bf16.msra.mxu0 0
  %2054 = vmatprep.subr.bf16.mxu0 0
  %2055 = vmatpush2.bf16.msra.mxu0 0
  %2056 = vmatprep.subr.bf16.mxu0 0
  %2057 = vmatpush2.bf16.msra.mxu0 0
  %2058 = vmatprep.subr.bf16.mxu0 0
  %2059 = vmatpush2.bf16.msra.mxu0 0
  %2060 = vmatprep.subr.bf16.mxu0 0
  %2061 = vmatpush2.bf16.msra.mxu0 0
  %2062 = vmatprep.subr.bf16.mxu0 0
  %2063 = vmatpush2.bf16.msra.mxu0 0
  %2064 = vmatprep.mubr.bf16.mxu0 0
  %2065 = vmatmul.mubr.bf16.gmra.mxu0 %v2030
  %v2066 = vpop.f32.mrf.mxu0
  %v2067 = vadd.f32 %v2027, %v2066
  %v2068 = vpop.f32.mrf.mxu0
  %v2069 = vpop.f32.mrf.mxu0
  %v2070 = vadd.f32 %v2027, %v2069
  %v2071 = vpop.f32.mrf.mxu0
  %2072 = vdwg.mxu0
  %v2073 = vmul.f32 %v2067, %v2067
  %v2074 = vmul.f32 %v2070, %v2070
  %v2075 = vmul.f32 %v2067, %v2073
  %v2076 = vmul.f32 %v2070, %v2074
  %v2077 = vmul.f32 %v2075, 0.044715
  %v2078 = vmul.f32 %v2076, 0.044715
  %v2079 = vadd.f32 %v2067, %v2077
  %v2080 = vadd.f32 %v2070, %v2078
  %v2081 = vmul.f32 %v2079, 0.7978846
  %v2082 = vmul.f32 %v2080, 0.7978846
  %v2083 = vtanh.pop %v2081
  %v2084 = vtanh.pop %v2082
  %v2085 = vadd.f32 %v2083, 1.0
  %v2086 = vadd.f32 %v2084, 1.0
  %v2087 = vmul.f32 %v2085, 0.5
  %v2088 = vmul.f32 %v2086, 0.5
  %v2089 = vmul.f32 %v2067, %v2087
  %v2090 = vmul.f32 %v2070, %v2088
  %s2091 = scalar_lea.vmem %s12, 64
  %v2092 = vld [vmem:[%s2091] sm:$0xff]
  %v2093 = vld [vmem:[%s2091 + $0x8] sm:$0xff]
  %v2094 = vld [vmem:[%s2091 + $0x10] sm:$0xff]
  %v2095 = vld [vmem:[%s2091 + $0x18] sm:$0xff]
  %v2096 = vld [vmem:[%s2091 + $0x20] sm:$0xff]
  %v2097 = vld [vmem:[%s2091 + $0x28] sm:$0xff]
  %v2098 = vld [vmem:[%s2091 + $0x30] sm:$0xff]
  %v2099 = vld [vmem:[%s2091 + $0x38] sm:$0xff]
  %v2100 = vpack.c.bf16 %v2090, %v2089
  %v2101 = vpack.c.bf16 %v2093, %v2092
  %v2102 = vpack.c.bf16 %v2095, %v2094
  %v2103 = vpack.c.bf16 %v2097, %v2096
  %v2104 = vpack.c.bf16 %v2099, %v2098
  %s2105 = scalar_lea.vmem %s13, 1
  %v2106 = vld [vmem:[%s2105] sm:$0x1]
  %v2108 = vlaneseq
  %v2109 = vshrl.u32 %v2108, 7
  %v2110 = vsub.s32 0, %v2109
  %v2111 = vrot.slane %v2106, %v2110
  %v2114 = vsel %vm1078, %v2100, 0
  %2116 = vmatprep.subr.bf16.mxu0 0
  %2117 = vmatpush1.bf16.msra.mxu0 0
  %2118 = vmatprep.subr.bf16.mxu0 0
  %2119 = vmatpush1.bf16.msra.mxu0 0
  %2120 = vmatprep.subr.bf16.mxu0 0
  %2121 = vmatpush1.bf16.msra.mxu0 0
  %2122 = vmatprep.subr.bf16.mxu0 0
  %2123 = vmatpush1.bf16.msra.mxu0 0
  %2124 = vmatprep.subr.bf16.mxu0 0
  %2125 = vmatpush1.bf16.msra.mxu0 %v2104
  %2126 = vmatprep.subr.bf16.mxu0 0
  %2127 = vmatpush1.bf16.msra.mxu0 %v2103
  %2128 = vmatprep.subr.bf16.mxu0 0
  %2129 = vmatpush1.bf16.msra.mxu0 %v2102
  %2130 = vmatprep.subr.bf16.mxu0 0
  %2131 = vmatpush1.bf16.msra.mxu0 %v2101
  %2132 = vmatprep.subr.bf16.mxu0 0
  %2133 = vmatpush2.bf16.msra.mxu0 0
  %2134 = vmatprep.subr.bf16.mxu0 0
  %2135 = vmatpush2.bf16.msra.mxu0 0
  %2136 = vmatprep.subr.bf16.mxu0 0
  %2137 = vmatpush2.bf16.msra.mxu0 0
  %2138 = vmatprep.subr.bf16.mxu0 0
  %2139 = vmatpush2.bf16.msra.mxu0 0
  %2140 = vmatprep.subr.bf16.mxu0 0
  %2141 = vmatpush2.bf16.msra.mxu0 0
  %2142 = vmatprep.subr.bf16.mxu0 0
  %2143 = vmatpush2.bf16.msra.mxu0 0
  %2144 = vmatprep.subr.bf16.mxu0 0
  %2145 = vmatpush2.bf16.msra.mxu0 0
  %2146 = vmatprep.subr.bf16.mxu0 0
  %2147 = vmatpush2.bf16.msra.mxu0 0
  %2148 = vmatprep.mubr.bf16.mxu0 0
  %2149 = vmatmul.mubr.bf16.gmra.mxu0 %v2114
  %v2150 = vpop.f32.mrf.mxu0
  %v2151 = vadd.f32 %v2111, %v2150
  %v2152 = vpop.f32.mrf.mxu0
  %v2153 = vpop.f32.mrf.mxu0
  %v2154 = vadd.f32 %v2111, %v2153
  %v2155 = vpop.f32.mrf.mxu0
  %2156 = vdwg.mxu0
  %v2157 = vadd.f32 %v2011, %v2151
  %v2158 = vadd.f32 %v2012, %v2154
  %s2159 = scalar_lea.vmem %s16, 1
  %v2160 = vld [vmem:[%s2159] sm:$0x1]
  %s2161 = scalar_lea.vmem %s17, 1
  %v2162 = vld [vmem:[%s2161] sm:$0x1]
  %v2163 = vsel %vm87, %v2157, 0.0
  %2164 = vadd.xlane.f32.xlu0 %v2163
  %v2165 = vpop.xlane.xlu0 %2164
  %v2166 = vsel %vm87, %v2158, 0.0
  %2167 = vadd.xlane.f32.xlu0 %v2166
  %v2168 = vpop.xlane.xlu0 %2167
  %v2169 = vmul.f32 %v2165, %v94
  %v2170 = vmul.f32 %v2168, %v94
  %v2171 = vsub.f32 %v2157, %v2169
  %v2172 = vsub.f32 %v2158, %v2170
  %v2173 = vmul.f32 %v2171, %v2171
  %v2174 = vmul.f32 %v2172, %v2172
  %v2175 = vsel %vm87, %v2173, 0.0
  %2176 = vadd.xlane.f32.xlu0 %v2175
  %v2177 = vpop.xlane.xlu0 %2176
  %v2178 = vsel %vm87, %v2174, 0.0
  %2179 = vadd.xlane.f32.xlu0 %v2178
  %v2180 = vpop.xlane.xlu0 %2179
  %v2181 = vmul.f32 %v2177, %v94
  %v2182 = vmul.f32 %v2180, %v94
  %v2183 = vadd.f32 %v2181, 1e-12
  %v2184 = vadd.f32 %v2182, 1e-12
  %v2185 = vrsqrt.pop %v2183
  %v2186 = vrsqrt.pop %v2184
  %v2187 = vmul.f32 %v2171, %v2185
  %v2188 = vmul.f32 %v2172, %v2186
  %v2190 = vlaneseq
  %v2191 = vshrl.u32 %v2190, 7
  %v2192 = vsub.s32 0, %v2191
  %v2193 = vrot.slane %v2160, %v2192
  %v2195 = vmul.f32 %v2187, %v2193
  %v2196 = vmul.f32 %v2188, %v2193
  %v2198 = vlaneseq
  %v2199 = vshrl.u32 %v2198, 7
  %v2200 = vsub.s32 0, %v2199
  %v2201 = vrot.slane %v2162, %v2200
  %v2203 = vadd.f32 %v2195, %v2201
  %v2204 = vadd.f32 %v2196, %v2201
  %v2205 = vld [vmem:[%s18] sm:$0xff]
  %v2206 = vld [vmem:[%s18 + $0x8] sm:$0xff]
  %v2207 = vld [vmem:[%s18 + $0x10] sm:$0xff]
  %v2208 = vld [vmem:[%s18 + $0x18] sm:$0xff]
  %v2209 = vld [vmem:[%s19] sm:$0x1]
  %v2211 = vlaneseq
  %v2212 = vshrl.u32 %v2211, 7
  %v2213 = vsub.s32 0, %v2212
  %v2214 = vrot.slane %v2209, %v2213
  %v2217 = vsel %vm87, %v2203, 0
  %v2220 = vsel %vm87, %v2204, 0
  %2222 = vmatprep.subr.mxu0 0.0
  %2223 = vmatpush1.msra.mxu0 0.0
  %2224 = vmatprep.subr.mxu0 0.0
  %2225 = vmatpush1.msra.mxu0 0.0
  %2226 = vmatprep.subr.mxu0 0.0
  %2227 = vmatpush1.msra.mxu0 0.0
  %2228 = vmatprep.subr.mxu0 0.0
  %2229 = vmatpush1.msra.mxu0 0.0
  %2230 = vmatprep.subr.mxu0 0.0
  %2231 = vmatpush1.msra.mxu0 0.0
  %2232 = vmatprep.subr.mxu0 0.0
  %2233 = vmatpush1.msra.mxu0 0.0
  %2234 = vmatprep.subr.mxu0 0.0
  %2235 = vmatpush1.msra.mxu0 0.0
  %2236 = vmatprep.subr.mxu0 0.0
  %2237 = vmatpush1.msra.mxu0 0.0
  %2238 = vmatprep.subr.mxu0 0.0
  %2239 = vmatpush1.msra.mxu0 0.0
  %2240 = vmatprep.subr.mxu0 0.0
  %2241 = vmatpush1.msra.mxu0 0.0
  %2242 = vmatprep.subr.mxu0 0.0
  %2243 = vmatpush1.msra.mxu0 0.0
  %2244 = vmatprep.subr.mxu0 0.0
  %2245 = vmatpush1.msra.mxu0 0.0
  %2246 = vmatprep.subr.mxu0 0.0
  %2247 = vmatpush1.msra.mxu0 %v2208
  %2248 = vmatprep.subr.mxu0 0.0
  %2249 = vmatpush1.msra.mxu0 %v2207
  %2250 = vmatprep.subr.mxu0 0.0
  %2251 = vmatpush1.msra.mxu0 %v2206
  %2252 = vmatprep.subr.mxu0 0.0
  %2253 = vmatpush1.msra.mxu0 %v2205
  %2254 = vmatprep.subr.mxu0 0.0
  %2255 = vmatpush2.msra.mxu0 0.0
  %2256 = vmatprep.subr.mxu0 0.0
  %2257 = vmatpush2.msra.mxu0 0.0
  %2258 = vmatprep.subr.mxu0 0.0
  %2259 = vmatpush2.msra.mxu0 0.0
  %2260 = vmatprep.subr.mxu0 0.0
  %2261 = vmatpush2.msra.mxu0 0.0
  %2262 = vmatprep.subr.mxu0 0.0
  %2263 = vmatpush2.msra.mxu0 0.0
  %2264 = vmatprep.subr.mxu0 0.0
  %2265 = vmatpush2.msra.mxu0 0.0
  %2266 = vmatprep.subr.mxu0 0.0
  %2267 = vmatpush2.msra.mxu0 0.0
  %2268 = vmatprep.subr.mxu0 0.0
  %2269 = vmatpush2.msra.mxu0 0.0
  %2270 = vmatprep.subr.mxu0 0.0
  %2271 = vmatpush2.msra.mxu0 0.0
  %2272 = vmatprep.subr.mxu0 0.0
  %2273 = vmatpush2.msra.mxu0 0.0
  %2274 = vmatprep.subr.mxu0 0.0
  %2275 = vmatpush2.msra.mxu0 0.0
  %2276 = vmatprep.subr.mxu0 0.0
  %2277 = vmatpush2.msra.mxu0 0.0
  %2278 = vmatprep.subr.mxu0 0.0
  %2279 = vmatpush2.msra.mxu0 0.0
  %2280 = vmatprep.subr.mxu0 0.0
  %2281 = vmatpush2.msra.mxu0 0.0
  %2282 = vmatprep.subr.mxu0 0.0
  %2283 = vmatpush2.msra.mxu0 0.0
  %2284 = vmatprep.subr.mxu0 0.0
  %2285 = vmatpush2.msra.mxu0 0.0
  %2286 = vmatprep.mubr.f32.mxu0 0.0
  %2287 = vmatmul.mubr.f32.gmra.mxu0 %v2217
  %v2288 = vpop.f32.mrf.mxu0
  %v2289 = vadd.f32 %v2214, %v2288
  %v2290 = vpop.f32.mrf.mxu0
  %2291 = vmatprep.mubr.f32.mxu0 0.0
  %2292 = vmatmul.mubr.f32.gmra.mxu0 %v2220
  %v2293 = vpop.f32.mrf.mxu0
  %v2294 = vadd.f32 %v2214, %v2293
  %v2295 = vpop.f32.mrf.mxu0
  %2296 = vdwg.mxu0
  %vm2297 = vcmask 39936
  %v2298 = vsel %vm2297, %v2289, -inf
  %2299 = vmax.xlane.f32.xlu0 %v2298
  %v2300 = vpop.xlane.xlu0 %2299
  %v2301 = vsel %vm2297, %v2294, -inf
  %2302 = vmax.xlane.f32.xlu0 %v2301
  %v2303 = vpop.xlane.xlu0 %2302
  %v2304 = vsub.f32 %v2289, %v2300
  %v2305 = vsub.f32 %v2294, %v2303
  %v2306 = vmul.f32 %v2304, 1.442695
  %v2307 = vpow.pop %v2306
  %v2308 = vmul.f32 %v2305, 1.442695
  %v2309 = vpow.pop %v2308
  %v2310 = vsel %vm2297, %v2307, 0.0
  %2311 = vadd.xlane.f32.xlu0 %v2310
  %v2312 = vpop.xlane.xlu0 %2311
  %v2313 = vsel %vm2297, %v2309, 0.0
  %2314 = vadd.xlane.f32.xlu0 %v2313
  %v2315 = vpop.xlane.xlu0 %2314
  %v2316 = vlog2.pop %v2312
  %v2317 = vmul.f32 %v2316, 0.6931472
  %v2318 = vlog2.pop %v2315
  %v2319 = vmul.f32 %v2318, 0.6931472
  %v2320 = vadd.f32 %v2317, %v2300
  %v2321 = vadd.f32 %v2319, %v2303
  %v2322 = vlaneseq
  %v2323 = vand.u32 %v2322, 127
  %v2324 = vld [vmem:[%s20] sm:$0xff]
  %v2325 = vld [vmem:[%s20 + $0x8] sm:$0xff]
  %2326 = vset.pattern.permute.xlu0 0
  %2327 = vperm.xlu0 %2326, %v2324
  %v2328 = vpop.permute.xlu0 %2327
  %2329 = vset.pattern.permute.xlu0 0
  %2330 = vperm.xlu0 %2329, %v2325
  %v2331 = vpop.permute.xlu0 %2330
  %vm2332 = vcmp.eq.s32.totalorder %v2323, %v2328
  %vm2333 = vcmp.eq.s32.totalorder %v2323, %v2331
  %v2334 = vsel %vm2332, %v2289, 0.0
  %v2335 = vsel %vm2333, %v2294, 0.0
  %v2336 = vsel %vm2297, %v2334, 0.0
  %2337 = vadd.xlane.f32.xlu0 %v2336
  %v2338 = vpop.xlane.xlu0 %2337
  %v2339 = vsel %vm2297, %v2335, 0.0
  %2340 = vadd.xlane.f32.xlu0 %v2339
  %v2341 = vpop.xlane.xlu0 %2340
  %v2342 = vsub.f32 %v2320, %v2338
  %v2343 = vsub.f32 %v2321, %v2341
  %v2344 = vld [vmem:[%s21] sm:$0xff]
  %v2345 = vld [vmem:[%s21 + $0x8] sm:$0xff]
  %vm2346 = vcmp.eq.s32.totalorder %v2344, 1
  %vm2347 = vcmp.eq.s32.totalorder %v2345, 1
  %v2348 = vld [vmem:[%s22] sm:$0xff]
  %v2349 = vld [vmem:[%s22 + $0x8] sm:$0xff]
  %vm2350 = vcmp.eq.s32.totalorder %v2348, 0
  %vm2351 = vcmp.eq.s32.totalorder %v2349, 0
  %vm2352 = vmand %vm2350, %vm2346
  %vm2353 = vmand %vm2351, %vm2347
  %v2354 = vsel %vm2352, 1.0, 0.0
  %v2355 = vsel %vm2353, 1.0, 0.0
  %vm2356 = vcmp.eq.s32.totalorder %v2348, 1
  %vm2357 = vcmp.eq.s32.totalorder %v2349, 1
  %vm2358 = vmand %vm2356, %vm2346
  %vm2359 = vmand %vm2357, %vm2347
  %v2360 = vsel %vm2358, 1.0, 0.0
  %v2361 = vsel %vm2359, 1.0, 0.0
  %v2362 = vmul.f32 %v2342, %v2354
  %v2363 = vmul.f32 %v2343, %v2355
  %v2364 = vmul.f32 %v2342, %v2360
  %v2365 = vmul.f32 %v2343, %v2361
  %2368 = vrot.lane.b32.xlu0 %v2354, 1
  %v2369 = vpop.permute.xlu0 %2368
  %2370 = vrot.lane.b32.xlu0 %v2355, 1
  %v2371 = vpop.permute.xlu0 %2370
  %2376 = vrot.lane.b32.xlu0 %v2364, 2
  %v2377 = vpop.permute.xlu0 %2376
  %2378 = vrot.lane.b32.xlu0 %v2365, 2
  %v2379 = vpop.permute.xlu0 %2378
  %2384 = vrot.lane.b32.xlu0 %v2360, 3
  %v2385 = vpop.permute.xlu0 %2384
  %2386 = vrot.lane.b32.xlu0 %v2361, 3
  %v2387 = vpop.permute.xlu0 %2386
  %vm2390 = vcmask 7168
  %v2391 = vsel %vm2390, %v2362, %v2369
  %v2392 = vsel %vm2390, %v2363, %v2371
  %vm2393 = vcmask 15360
  %v2394 = vsel %vm2393, %v2391, %v2377
  %v2395 = vsel %vm2393, %v2392, %v2379
  %vm2396 = vcmask 23552
  %v2397 = vsel %vm2396, %v2394, %v2385
  %v2398 = vsel %vm2396, %v2395, %v2387
  %vm2399 = vcmask 31744
  %v2400 = vsel %vm2399, %v2397, 0.0
  %v2401 = vsel %vm2399, %v2398, 0.0
  %v2402 = vadd.f32 %v2400, %v2401
  %v2403 = vrot.slane %v2402, 4
  %v2404 = vadd.f32 %v2402, %v2403
  %v2405 = vrot.slane %v2404, 2
  %v2406 = vadd.f32 %v2404, %v2405
  %v2407 = vrot.slane %v2406, 1
  %v2408 = vadd.f32 %v2406, %v2407
  %vm2409 = vcmask 24576
  %2410 = vst.msk [vmem:[%s23] sm:$0x1] %vm2409, %v2408
  // Predicated region
  $region94: #{_lambda_.1} parent=0 // pred_check
    _
  $region95: #{_lambda_.1} parent=0 // pred_check_branch
    %2412 = sbr.rel (0) target = $region97
  $region96: #{_lambda_.1} parent=0 // pred_region
    _
  $region97: #{_lambda_.1} parent=0 // pred_fallthru
    _
  // Predicated region
  $region98: #{_lambda_.1} parent=0 // pred_check
    _
  $region99: #{_lambda_.1} parent=0 // pred_check_branch
    %2414 = sbr.rel (0) target = $region101
  $region100: #{_lambda_.1} parent=0 // pred_region
    _
  $region101: #{_lambda_.1} parent=0 // pred_fallthru
    _

</llo_original>
